<compile_context>
chip_gen: v7x
topology: tpu7x:2x2x1
jax: 0.10.0
libtpu: 0.0.40
codegen_flags: <defaults>
</compile_context>

<pallas_src>
import jax
import jax.numpy as jnp
from jax.experimental import pallas as pl
from jax.experimental.pallas import tpu as pltpu

EPS = 1e-5
EXPANSION = 4

_COMPILER_PARAMS = pltpu.CompilerParams(
    dimension_semantics=("parallel",),
    vmem_limit_bytes=48 * 1024 * 1024,   # leaves headroom on v7x (64 MiB physical)
)


# ----------------------------- kernels ------------------------------------- #

def _write_partial_stats(s_ref, y):
    """y: (M, C) f32 ; s_ref block: (1, 2, C) -> per-tile sum / sum of squares."""
    C = y.shape[1]
    s_ref[0:1, 0:1, :] = jnp.sum(y, axis=0, keepdims=True).reshape(1, 1, C)
    s_ref[0:1, 1:2, :] = jnp.sum(y * y, axis=0, keepdims=True).reshape(1, 1, C)


def conv1_kernel(x_ref, w1_ref, t1_ref, s1_ref):
    """1x1 conv (bf16 MXU) + per-tile BN1 partial stats."""
    _, H, W, Cin = x_ref.shape
    P = w1_ref.shape[1]
    xf = x_ref[...].reshape(H * W, Cin).astype(jnp.bfloat16)
    y1 = jnp.dot(xf, w1_ref[...], preferred_element_type=jnp.float32)
    t1_ref[...] = y1.reshape(1, H, W, P)
    _write_partial_stats(s1_ref, y1)


def conv2_kernel(t1_ref, sc1_ref, sh1_ref, w2_ref, t2_ref, s2_ref,
                 pad_ref, col_ref):
    """BN1 affine + ReLU, 3x3 conv as ONE im2col matmul, BN2 partial stats."""
    _, H, W, P = t1_ref.shape
    y1 = t1_ref[...].reshape(H * W, P)
    o1 = jnp.maximum(y1 * sc1_ref[...] + sh1_ref[...], 0.0)

    # zero only the 1-wide halo border, then drop the activations inside
    zrow = jnp.zeros((1, W + 2, P), jnp.float32)
    zcol = jnp.zeros((H, 1, P), jnp.float32)
    pad_ref[0:1, :, :] = zrow
    pad_ref[H + 1:H + 2, :, :] = zrow
    pad_ref[1:H + 1, 0:1, :] = zcol
    pad_ref[1:H + 1, W + 1:W + 2, :] = zcol
    pad_ref[1:H + 1, 1:W + 1, :] = o1.reshape(H, W, P)

    # im2col: 9 shifted windows laid out along the contraction (lane) axis
    for dh in range(3):
        for dw in range(3):
            tap = dh * 3 + dw
            col_ref[:, tap * P:(tap + 1) * P] = (
                pad_ref[dh:dh + H, dw:dw + W, :].reshape(H * W, P))

    y2 = jnp.dot(col_ref[...].astype(jnp.bfloat16), w2_ref[...],
                 preferred_element_type=jnp.float32)
    t2_ref[...] = y2.reshape(1, H, W, P)
    _write_partial_stats(s2_ref, y2)


def conv3_kernel(t2_ref, sc2_ref, sh2_ref, w3_ref, t3_ref, s3_ref):
    """BN2 affine + ReLU, 1x1 expansion conv, BN3 partial stats."""
    _, H, W, P = t2_ref.shape
    C4 = w3_ref.shape[1]
    y2 = t2_ref[...].reshape(H * W, P)
    o2 = jnp.maximum(y2 * sc2_ref[...] + sh2_ref[...], 0.0).astype(jnp.bfloat16)
    y3 = jnp.dot(o2, w3_ref[...], preferred_element_type=jnp.float32)
    t3_ref[...] = y3.reshape(1, H, W, C4)
    _write_partial_stats(s3_ref, y3)


def epilogue_kernel(t3_ref, x_ref, sc3_ref, sh3_ref, out_ref):
    """BN3 affine + identity residual + final ReLU (lane-dense store)."""
    _, H, W, C4 = t3_ref.shape
    y3 = t3_ref[...].reshape(H * W, C4)
    res = x_ref[...].reshape(H * W, C4)
    out = jnp.maximum(y3 * sc3_ref[...] + sh3_ref[...] + res, 0.0)
    out_ref[...] = out.reshape(1, H, W, C4)


# ----------------------------- wrapper -------------------------------------- #

def _image_spec(H, W, C):
    return pl.BlockSpec((1, H, W, C), lambda n: (n, 0, 0, 0))


def _stats_spec(C):
    return pl.BlockSpec((1, 2, C), lambda n: (n, 0, 0))


def _const_spec(shape):
    nd = len(shape)
    return pl.BlockSpec(shape, lambda n: (0,) * nd)


def _scale_shift(partial_stats, gamma, beta, count):
    """Cross-tile reduction of (sum, sumsq) -> per-channel BN scale / shift."""
    s = jnp.sum(partial_stats, axis=0)                       # (2, C)
    mean = s[0] / count
    var = jnp.maximum(s[1] / count - mean * mean, 0.0)       # biased (training) var
    scale = gamma.reshape(-1) * jax.lax.rsqrt(var + EPS)
    shift = beta.reshape(-1) - mean * scale
    return scale.reshape(1, -1), shift.reshape(1, -1)


@jax.jit
def bottleneck_forward(x_nchw, params):
    w1, g1, b1, w2, g2, b2, w3, g3, b3 = params
    x = jnp.transpose(x_nchw, (0, 2, 3, 1)).astype(jnp.float32)   # NCHW -> NHWC
    N, H, W, Cin = x.shape
    P = w1.shape[1]
    C4 = w3.shape[1]
    M = N * H * W
    assert Cin == C4, "identity residual requires inplanes == planes * expansion"

    # stage 1: conv1 (1x1) + BN1 partial stats
    t1, s1 = pl.pallas_call(
        conv1_kernel,
        grid=(N,),
        in_specs=[_image_spec(H, W, Cin), _const_spec(w1.shape)],
        out_specs=(_image_spec(H, W, P), _stats_spec(P)),
        out_shape=(jax.ShapeDtypeStruct((N, H, W, P), jnp.float32),
                   jax.ShapeDtypeStruct((N, 2, P), jnp.float32)),
        compiler_params=_COMPILER_PARAMS,
    )(x, w1)
    sc1, sh1 = _scale_shift(s1, g1, b1, M)

    # stage 2: BN1 + ReLU + conv2 (3x3 via im2col) + BN2 partial stats
    t2, s2 = pl.pallas_call(
        conv2_kernel,
        grid=(N,),
        in_specs=[_image_spec(H, W, P), _const_spec(sc1.shape),
                  _const_spec(sh1.shape), _const_spec(w2.shape)],
        out_specs=(_image_spec(H, W, P), _stats_spec(P)),
        out_shape=(jax.ShapeDtypeStruct((N, H, W, P), jnp.float32),
                   jax.ShapeDtypeStruct((N, 2, P), jnp.float32)),
        scratch_shapes=[pltpu.VMEM((H + 2, W + 2, P), jnp.float32),
                        pltpu.VMEM((H * W, 9 * P), jnp.float32)],
        compiler_params=_COMPILER_PARAMS,
    )(t1, sc1, sh1, w2)
    sc2, sh2 = _scale_shift(s2, g2, b2, M)

    # stage 3: BN2 + ReLU + conv3 (1x1 expansion) + BN3 partial stats
    t3, s3 = pl.pallas_call(
        conv3_kernel,
        grid=(N,),
        in_specs=[_image_spec(H, W, P), _const_spec(sc2.shape),
                  _const_spec(sh2.shape), _const_spec(w3.shape)],
        out_specs=(_image_spec(H, W, C4), _stats_spec(C4)),
        out_shape=(jax.ShapeDtypeStruct((N, H, W, C4), jnp.float32),
                   jax.ShapeDtypeStruct((N, 2, C4), jnp.float32)),
        compiler_params=_COMPILER_PARAMS,
    )(t2, sc2, sh2, w3)
    sc3, sh3 = _scale_shift(s3, g3, b3, M)

    # stage 4: BN3 affine + residual add + final ReLU
    out_nhwc = pl.pallas_call(
        epilogue_kernel,
        grid=(N,),
        in_specs=[_image_spec(H, W, C4), _image_spec(H, W, C4),
                  _const_spec(sc3.shape), _const_spec(sh3.shape)],
        out_specs=_image_spec(H, W, C4),
        out_shape=jax.ShapeDtypeStruct((N, H, W, C4), jnp.float32),
        compiler_params=_COMPILER_PARAMS,
    )(t3, x, sc3, sh3)

    return jnp.transpose(out_nhwc, (0, 3, 1, 2))              # NHWC -> NCHW


# ----------------------------- params & reference --------------------------- #

def init_params(key, inplanes, planes):
    """Deterministic synthetic parameters (shapes follow the PyTorch module)."""
    ks = jax.random.split(key, 9)
    # PyTorch conv weights are (Cout, Cin, kh, kw); pre-layout + bf16 for the MXU.
    w1_t = 0.1 * jax.random.normal(ks[0], (planes, inplanes, 1, 1), jnp.float32)
    w2_t = 0.1 * jax.random.normal(ks[1], (planes, planes, 3, 3), jnp.float32)
    w3_t = 0.1 * jax.random.normal(ks[2], (planes * EXPANSION, planes, 1, 1),
                                   jnp.float32)
    w1 = jnp.transpose(w1_t[:, :, 0, 0], (1, 0)).astype(jnp.bfloat16)     # (Cin, P)
    w2 = jnp.transpose(w2_t, (2, 3, 1, 0)).reshape(9 * planes, planes)    # (9P, P)
    w2 = w2.astype(jnp.bfloat16)
    w3 = jnp.transpose(w3_t[:, :, 0, 0], (1, 0)).astype(jnp.bfloat16)     # (P, 4P)

    def bn_params(kg, kb, c):
        g = (1.0 + 0.1 * jax.random.normal(kg, (1, c))).astype(jnp.float32)
        b = (0.1 * jax.random.normal(kb, (1, c))).astype(jnp.float32)
        return g, b

    g1, b1 = bn_params(ks[3], ks[4], planes)
    g2, b2 = bn_params(ks[5], ks[6], planes)
    g3, b3 = bn_params(ks[7], ks[8], planes * EXPANSION)
    return (w1, g1, b1, w2, g2, b2, w3, g3, b3)


def reference_forward(x_nchw, params):
    """Pure-JAX reference (training-mode BN) with matching bf16 matmul inputs."""
    w1, g1, b1, w2, g2, b2, w3, g3, b3 = params
    x = jnp.transpose(x_nchw, (0, 2, 3, 1)).astype(jnp.float32)
    P = w1.shape[1]

    def bn(y, g, b):
        mean = jnp.mean(y, axis=(0, 1, 2), keepdims=True)
        var = jnp.mean((y - mean) ** 2, axis=(0, 1, 2), keepdims=True)
        scale = g.reshape(1, 1, 1, -1) * jax.lax.rsqrt(var + EPS)
        return (y - mean) * scale + b.reshape(1, 1, 1, -1)

    y1 = jnp.einsum("nhwc,cp->nhwp", x.astype(jnp.bfloat16), w1,
                    preferred_element_type=jnp.float32)
    o1 = jnp.maximum(bn(y1, g1, b1), 0.0)
    y2 = jax.lax.conv_general_dilated(
        o1.astype(jnp.bfloat16), w2.reshape(3, 3, P, P),
        window_strides=(1, 1), padding="SAME",
        dimension_numbers=("NHWC", "HWIO", "NHWC"),
        preferred_element_type=jnp.float32)
    o2 = jnp.maximum(bn(y2, g2, b2), 0.0)
    y3 = jnp.einsum("nhwp,pc->nhwc", o2.astype(jnp.bfloat16), w3,
                    preferred_element_type=jnp.float32)
    out = jnp.maximum(bn(y3, g3, b3) + x, 0.0)
    return jnp.transpose(out, (0, 3, 1, 2))


if __name__ == "__main__":
    key = jax.random.PRNGKey(0)
    kx, kp = jax.random.split(key)

    planes = 32
    inplanes = planes * EXPANSION          # 128: identity residual (downsample=None)
    N, H, W = 2, 16, 16
    x = jax.random.normal(kx, (N, inplanes, H, W), jnp.float32)   # NCHW input
    params = init_params(kp, inplanes, planes)

    out = jax.block_until_ready(bottleneck_forward(x, params))
    assert out.shape == (N, inplanes, H, W)
    assert bool(jnp.all(out >= 0.0))                              # final ReLU

    ref = jax.block_until_ready(reference_forward(x, params))
    max_err = float(jnp.max(jnp.abs(out - ref)))
    assert max_err < 1e-1, f"mismatch vs reference: max abs err {max_err}"
    print("KERNEL_OK")
</pallas_src>

<mosaic_0001>
module attributes {stable_mosaic.version = 11 : i64} {
  func.func @conv1_kernel(%arg0: i32, %arg1: memref<1x16x16x128xf32, #tpu.memory_space<vmem>>, %arg2: memref<128x32xbf16, #tpu.memory_space<vmem>>, %arg3: memref<1x16x16x32xf32, #tpu.memory_space<vmem>>, %arg4: memref<1x2x32xf32, #tpu.memory_space<vmem>>) attributes {dimension_semantics = [#tpu.dimension_semantics<parallel>], iteration_bounds = array<i64: 2>, scalar_prefetch = 0 : i64, scratch_operands = 0 : i64, tpu.core_type = #tpu.core_type<tc>, window_params = [{transform_indices = @transform_0, window_bounds = array<i64: 1, 16, 16, 128>}, {pipeline_mode = #tpu.pipeline_mode<synchronous>, transform_indices = @transform_1, window_bounds = array<i64: 128, 32>}, {transform_indices = @transform_2, window_bounds = array<i64: 1, 16, 16, 32>}, {transform_indices = @transform_3, window_bounds = array<i64: 1, 2, 32>}]} {
    %c0 = arith.constant 0 : index
    %c0_0 = arith.constant 0 : index
    %c0_1 = arith.constant 0 : index
    %c0_2 = arith.constant 0 : index
    %0 = vector.load %arg1[%c0, %c0_0, %c0_1, %c0_2] : memref<1x16x16x128xf32, #tpu.memory_space<vmem>>, vector<1x16x16x128xf32>
    %1 = vector.shape_cast %0 : vector<1x16x16x128xf32> to vector<256x128xf32>
    %2 = arith.truncf %1 : vector<256x128xf32> to vector<256x128xbf16>
    %c0_3 = arith.constant 0 : index
    %c0_4 = arith.constant 0 : index
    %3 = vector.load %arg2[%c0_3, %c0_4] : memref<128x32xbf16, #tpu.memory_space<vmem>>, vector<128x32xbf16>
    %cst = arith.constant dense<0.000000e+00> : vector<256x32xf32>
    %4 = tpu.matmul %2, %3, %cst {dimension_numbers = #tpu.dot_dimension_numbers<[1], [0], [0], [1], [0, 0, 1, 1], [], []>} : vector<256x128xbf16>, vector<128x32xbf16>, vector<256x32xf32> -> vector<256x32xf32>
    %5 = vector.shape_cast %4 : vector<256x32xf32> to vector<1x16x16x32xf32>
    %c0_5 = arith.constant 0 : index
    %c0_6 = arith.constant 0 : index
    %c0_7 = arith.constant 0 : index
    %c0_8 = arith.constant 0 : index
    %6 = vector.load %arg3[%c0_5, %c0_6, %c0_7, %c0_8] : memref<1x16x16x32xf32, #tpu.memory_space<vmem>>, vector<1x16x16x32xf32>
    tpu.vector_store %arg3[%c0_5, %c0_6, %c0_7, %c0_8], %5 {strides = array<i32>} : memref<1x16x16x32xf32, #tpu.memory_space<vmem>>, vector<1x16x16x32xf32>,
    %cst_9 = arith.constant dense<0.000000e+00> : vector<32xf32>
    %7 = vector.multi_reduction <add>, %4, %cst_9 [0] : vector<256x32xf32> to vector<32xf32>
    %8 = vector.shape_cast %7 : vector<32xf32> to vector<1x32xf32>
    %9 = vector.shape_cast %8 : vector<1x32xf32> to vector<1x1x32xf32>
    %c0_10 = arith.constant 0 : index
    %c0_11 = arith.constant 0 : index
    %c0_12 = arith.constant 0 : index
    %10 = vector.load %arg4[%c0_10, %c0_11, %c0_12] : memref<1x2x32xf32, #tpu.memory_space<vmem>>, vector<1x1x32xf32>
    tpu.vector_store %arg4[%c0_10, %c0_11, %c0_12], %9 {strides = array<i32>} : memref<1x2x32xf32, #tpu.memory_space<vmem>>, vector<1x1x32xf32>,
    %11 = arith.mulf %4, %4 : vector<256x32xf32>
    %cst_13 = arith.constant dense<0.000000e+00> : vector<32xf32>
    %12 = vector.multi_reduction <add>, %11, %cst_13 [0] : vector<256x32xf32> to vector<32xf32>
    %13 = vector.shape_cast %12 : vector<32xf32> to vector<1x32xf32>
    %14 = vector.shape_cast %13 : vector<1x32xf32> to vector<1x1x32xf32>
    %c0_14 = arith.constant 0 : index
    %c1 = arith.constant 1 : index
    %c0_15 = arith.constant 0 : index
    %15 = vector.load %arg4[%c0_14, %c1, %c0_15] : memref<1x2x32xf32, #tpu.memory_space<vmem>>, vector<1x1x32xf32>
    tpu.vector_store %arg4[%c0_14, %c1, %c0_15], %14 {strides = array<i32>} : memref<1x2x32xf32, #tpu.memory_space<vmem>>, vector<1x1x32xf32>,
    return
  }
  func.func @transform_0(%arg0: i32) -> (i32, i32, i32, i32) {
    %c0_i32 = arith.constant 0 : i32
    %c0_i32_0 = arith.constant 0 : i32
    %c0_i32_1 = arith.constant 0 : i32
    %c0_i32_2 = arith.constant 0 : i32
    return %arg0, %c0_i32, %c0_i32_0, %c0_i32_1 : i32, i32, i32, i32
  }
  func.func @transform_1(%arg0: i32) -> (i32, i32) {
    %c0_i32 = arith.constant 0 : i32
    %c0_i32_0 = arith.constant 0 : i32
    %c0_i32_1 = arith.constant 0 : i32
    return %c0_i32, %c0_i32_0 : i32, i32
  }
  func.func @transform_2(%arg0: i32) -> (i32, i32, i32, i32) {
    %c0_i32 = arith.constant 0 : i32
    %c0_i32_0 = arith.constant 0 : i32
    %c0_i32_1 = arith.constant 0 : i32
    %c0_i32_2 = arith.constant 0 : i32
    return %arg0, %c0_i32, %c0_i32_0, %c0_i32_1 : i32, i32, i32, i32
  }
  func.func @transform_3(%arg0: i32) -> (i32, i32, i32) {
    %c0_i32 = arith.constant 0 : i32
    %c0_i32_0 = arith.constant 0 : i32
    %c0_i32_1 = arith.constant 0 : i32
    return %arg0, %c0_i32, %c0_i32_0 : i32, i32, i32
  }
}

module attributes {stable_mosaic.version = 11 : i64} {
  func.func @conv3_kernel(%arg0: i32, %arg1: memref<1x16x16x32xf32, #tpu.memory_space<vmem>>, %arg2: memref<1x32xf32, #tpu.memory_space<vmem>>, %arg3: memref<1x32xf32, #tpu.memory_space<vmem>>, %arg4: memref<32x128xbf16, #tpu.memory_space<vmem>>, %arg5: memref<1x16x16x128xf32, #tpu.memory_space<vmem>>, %arg6: memref<1x2x128xf32, #tpu.memory_space<vmem>>) attributes {dimension_semantics = [#tpu.dimension_semantics<parallel>], iteration_bounds = array<i64: 2>, scalar_prefetch = 0 : i64, scratch_operands = 0 : i64, tpu.core_type = #tpu.core_type<tc>, window_params = [{transform_indices = @transform_0, window_bounds = array<i64: 1, 16, 16, 32>}, {pipeline_mode = #tpu.pipeline_mode<synchronous>, transform_indices = @transform_1, window_bounds = array<i64: 1, 32>}, {pipeline_mode = #tpu.pipeline_mode<synchronous>, transform_indices = @transform_2, window_bounds = array<i64: 1, 32>}, {pipeline_mode = #tpu.pipeline_mode<synchronous>, transform_indices = @transform_3, window_bounds = array<i64: 32, 128>}, {transform_indices = @transform_4, window_bounds = array<i64: 1, 16, 16, 128>}, {transform_indices = @transform_5, window_bounds = array<i64: 1, 2, 128>}]} {
    %c0 = arith.constant 0 : index
    %c0_0 = arith.constant 0 : index
    %c0_1 = arith.constant 0 : index
    %c0_2 = arith.constant 0 : index
    %0 = vector.load %arg1[%c0, %c0_0, %c0_1, %c0_2] : memref<1x16x16x32xf32, #tpu.memory_space<vmem>>, vector<1x16x16x32xf32>
    %1 = vector.shape_cast %0 : vector<1x16x16x32xf32> to vector<256x32xf32>
    %c0_3 = arith.constant 0 : index
    %c0_4 = arith.constant 0 : index
    %2 = vector.load %arg2[%c0_3, %c0_4] : memref<1x32xf32, #tpu.memory_space<vmem>>, vector<1x32xf32>
    %3 = vector.broadcast %2 : vector<1x32xf32> to vector<256x32xf32>
    %4 = arith.mulf %1, %3 : vector<256x32xf32>
    %c0_5 = arith.constant 0 : index
    %c0_6 = arith.constant 0 : index
    %5 = vector.load %arg3[%c0_5, %c0_6] : memref<1x32xf32, #tpu.memory_space<vmem>>, vector<1x32xf32>
    %6 = vector.broadcast %5 : vector<1x32xf32> to vector<256x32xf32>
    %7 = arith.addf %4, %6 : vector<256x32xf32>
    %cst = arith.constant 0.000000e+00 : f32
    %8 = vector.broadcast %cst : f32 to vector<256x32xf32>
    %9 = arith.maximumf %7, %8 : vector<256x32xf32>
    %10 = arith.truncf %9 : vector<256x32xf32> to vector<256x32xbf16>
    %c0_7 = arith.constant 0 : index
    %c0_8 = arith.constant 0 : index
    %11 = vector.load %arg4[%c0_7, %c0_8] : memref<32x128xbf16, #tpu.memory_space<vmem>>, vector<32x128xbf16>
    %cst_9 = arith.constant dense<0.000000e+00> : vector<256x128xf32>
    %12 = tpu.matmul %10, %11, %cst_9 {dimension_numbers = #tpu.dot_dimension_numbers<[1], [0], [0], [1], [0, 0, 1, 1], [], []>} : vector<256x32xbf16>, vector<32x128xbf16>, vector<256x128xf32> -> vector<256x128xf32>
    %13 = vector.shape_cast %12 : vector<256x128xf32> to vector<1x16x16x128xf32>
    %c0_10 = arith.constant 0 : index
    %c0_11 = arith.constant 0 : index
    %c0_12 = arith.constant 0 : index
    %c0_13 = arith.constant 0 : index
    %14 = vector.load %arg5[%c0_10, %c0_11, %c0_12, %c0_13] : memref<1x16x16x128xf32, #tpu.memory_space<vmem>>, vector<1x16x16x128xf32>
    tpu.vector_store %arg5[%c0_10, %c0_11, %c0_12, %c0_13], %13 {strides = array<i32>} : memref<1x16x16x128xf32, #tpu.memory_space<vmem>>, vector<1x16x16x128xf32>,
    %cst_14 = arith.constant dense<0.000000e+00> : vector<128xf32>
    %15 = vector.multi_reduction <add>, %12, %cst_14 [0] : vector<256x128xf32> to vector<128xf32>
    %16 = vector.shape_cast %15 : vector<128xf32> to vector<1x128xf32>
    %17 = vector.shape_cast %16 : vector<1x128xf32> to vector<1x1x128xf32>
    %c0_15 = arith.constant 0 : index
    %c0_16 = arith.constant 0 : index
    %c0_17 = arith.constant 0 : index
    %18 = vector.load %arg6[%c0_15, %c0_16, %c0_17] : memref<1x2x128xf32, #tpu.memory_space<vmem>>, vector<1x1x128xf32>
    tpu.vector_store %arg6[%c0_15, %c0_16, %c0_17], %17 {strides = array<i32>} : memref<1x2x128xf32, #tpu.memory_space<vmem>>, vector<1x1x128xf32>,
    %19 = arith.mulf %12, %12 : vector<256x128xf32>
    %cst_18 = arith.constant dense<0.000000e+00> : vector<128xf32>
    %20 = vector.multi_reduction <add>, %19, %cst_18 [0] : vector<256x128xf32> to vector<128xf32>
    %21 = vector.shape_cast %20 : vector<128xf32> to vector<1x128xf32>
    %22 = vector.shape_cast %21 : vector<1x128xf32> to vector<1x1x128xf32>
    %c0_19 = arith.constant 0 : index
    %c1 = arith.constant 1 : index
    %c0_20 = arith.constant 0 : index
    %23 = vector.load %arg6[%c0_19, %c1, %c0_20] : memref<1x2x128xf32, #tpu.memory_space<vmem>>, vector<1x1x128xf32>
    tpu.vector_store %arg6[%c0_19, %c1, %c0_20], %22 {strides = array<i32>} : memref<1x2x128xf32, #tpu.memory_space<vmem>>, vector<1x1x128xf32>,
    return
  }
  func.func @transform_0(%arg0: i32) -> (i32, i32, i32, i32) {
    %c0_i32 = arith.constant 0 : i32
    %c0_i32_0 = arith.constant 0 : i32
    %c0_i32_1 = arith.constant 0 : i32
    %c0_i32_2 = arith.constant 0 : i32
    return %arg0, %c0_i32, %c0_i32_0, %c0_i32_1 : i32, i32, i32, i32
  }
  func.func @transform_1(%arg0: i32) -> (i32, i32) {
    %c0_i32 = arith.constant 0 : i32
    %c0_i32_0 = arith.constant 0 : i32
    %c0_i32_1 = arith.constant 0 : i32
    return %c0_i32, %c0_i32_0 : i32, i32
  }
  func.func @transform_2(%arg0: i32) -> (i32, i32) {
    %c0_i32 = arith.constant 0 : i32
    %c0_i32_0 = arith.constant 0 : i32
    %c0_i32_1 = arith.constant 0 : i32
    return %c0_i32, %c0_i32_0 : i32, i32
  }
  func.func @transform_3(%arg0: i32) -> (i32, i32) {
    %c0_i32 = arith.constant 0 : i32
    %c0_i32_0 = arith.constant 0 : i32
    %c0_i32_1 = arith.constant 0 : i32
    return %c0_i32, %c0_i32_0 : i32, i32
  }
  func.func @transform_4(%arg0: i32) -> (i32, i32, i32, i32) {
    %c0_i32 = arith.constant 0 : i32
    %c0_i32_0 = arith.constant 0 : i32
    %c0_i32_1 = arith.constant 0 : i32
    %c0_i32_2 = arith.constant 0 : i32
    return %arg0, %c0_i32, %c0_i32_0, %c0_i32_1 : i32, i32, i32, i32
  }
  func.func @transform_5(%arg0: i32) -> (i32, i32, i32) {
    %c0_i32 = arith.constant 0 : i32
    %c0_i32_0 = arith.constant 0 : i32
    %c0_i32_1 = arith.constant 0 : i32
    return %arg0, %c0_i32, %c0_i32_0 : i32, i32, i32
  }
}

module attributes {stable_mosaic.version = 11 : i64} {
  func.func @conv2_kernel(%arg0: i32, %arg1: memref<1x16x16x32xf32, #tpu.memory_space<vmem>>, %arg2: memref<1x32xf32, #tpu.memory_space<vmem>>, %arg3: memref<1x32xf32, #tpu.memory_space<vmem>>, %arg4: memref<288x32xbf16, #tpu.memory_space<vmem>>, %arg5: memref<1x16x16x32xf32, #tpu.memory_space<vmem>>, %arg6: memref<1x2x32xf32, #tpu.memory_space<vmem>>, %arg7: memref<18x18x32xf32, #tpu.memory_space<vmem>>, %arg8: memref<256x288xf32, #tpu.memory_space<vmem>>) attributes {dimension_semantics = [#tpu.dimension_semantics<parallel>], iteration_bounds = array<i64: 2>, scalar_prefetch = 0 : i64, scratch_operands = 2 : i64, tpu.core_type = #tpu.core_type<tc>, window_params = [{transform_indices = @transform_0, window_bounds = array<i64: 1, 16, 16, 32>}, {pipeline_mode = #tpu.pipeline_mode<synchronous>, transform_indices = @transform_1, window_bounds = array<i64: 1, 32>}, {pipeline_mode = #tpu.pipeline_mode<synchronous>, transform_indices = @transform_2, window_bounds = array<i64: 1, 32>}, {pipeline_mode = #tpu.pipeline_mode<synchronous>, transform_indices = @transform_3, window_bounds = array<i64: 288, 32>}, {transform_indices = @transform_4, window_bounds = array<i64: 1, 16, 16, 32>}, {transform_indices = @transform_5, window_bounds = array<i64: 1, 2, 32>}]} {
    %c0 = arith.constant 0 : index
    %c0_0 = arith.constant 0 : index
    %c0_1 = arith.constant 0 : index
    %c0_2 = arith.constant 0 : index
    %0 = vector.load %arg1[%c0, %c0_0, %c0_1, %c0_2] : memref<1x16x16x32xf32, #tpu.memory_space<vmem>>, vector<1x16x16x32xf32>
    %1 = vector.shape_cast %0 : vector<1x16x16x32xf32> to vector<256x32xf32>
    %c0_3 = arith.constant 0 : index
    %c0_4 = arith.constant 0 : index
    %2 = vector.load %arg2[%c0_3, %c0_4] : memref<1x32xf32, #tpu.memory_space<vmem>>, vector<1x32xf32>
    %3 = vector.broadcast %2 : vector<1x32xf32> to vector<256x32xf32>
    %4 = arith.mulf %1, %3 : vector<256x32xf32>
    %c0_5 = arith.constant 0 : index
    %c0_6 = arith.constant 0 : index
    %5 = vector.load %arg3[%c0_5, %c0_6] : memref<1x32xf32, #tpu.memory_space<vmem>>, vector<1x32xf32>
    %6 = vector.broadcast %5 : vector<1x32xf32> to vector<256x32xf32>
    %7 = arith.addf %4, %6 : vector<256x32xf32>
    %cst = arith.constant 0.000000e+00 : f32
    %8 = vector.broadcast %cst : f32 to vector<256x32xf32>
    %9 = arith.maximumf %7, %8 : vector<256x32xf32>
    %cst_7 = arith.constant 0.000000e+00 : f32
    %10 = vector.broadcast %cst_7 : f32 to vector<1x18x32xf32>
    %cst_8 = arith.constant 0.000000e+00 : f32
    %11 = vector.broadcast %cst_8 : f32 to vector<16x1x32xf32>
    %c0_9 = arith.constant 0 : index
    %c0_10 = arith.constant 0 : index
    %c0_11 = arith.constant 0 : index
    %12 = vector.load %arg7[%c0_9, %c0_10, %c0_11] : memref<18x18x32xf32, #tpu.memory_space<vmem>>, vector<1x18x32xf32>
    tpu.vector_store %arg7[%c0_9, %c0_10, %c0_11], %10 {strides = array<i32>} : memref<18x18x32xf32, #tpu.memory_space<vmem>>, vector<1x18x32xf32>,
    %c17 = arith.constant 17 : index
    %c0_12 = arith.constant 0 : index
    %c0_13 = arith.constant 0 : index
    %13 = vector.load %arg7[%c17, %c0_12, %c0_13] : memref<18x18x32xf32, #tpu.memory_space<vmem>>, vector<1x18x32xf32>
    tpu.vector_store %arg7[%c17, %c0_12, %c0_13], %10 {strides = array<i32>} : memref<18x18x32xf32, #tpu.memory_space<vmem>>, vector<1x18x32xf32>,
    %c1 = arith.constant 1 : index
    %c0_14 = arith.constant 0 : index
    %c0_15 = arith.constant 0 : index
    %14 = vector.load %arg7[%c1, %c0_14, %c0_15] : memref<18x18x32xf32, #tpu.memory_space<vmem>>, vector<16x1x32xf32>
    tpu.vector_store %arg7[%c1, %c0_14, %c0_15], %11 {strides = array<i32>} : memref<18x18x32xf32, #tpu.memory_space<vmem>>, vector<16x1x32xf32>,
    %c1_16 = arith.constant 1 : index
    %c17_17 = arith.constant 17 : index
    %c0_18 = arith.constant 0 : index
    %15 = vector.load %arg7[%c1_16, %c17_17, %c0_18] : memref<18x18x32xf32, #tpu.memory_space<vmem>>, vector<16x1x32xf32>
    tpu.vector_store %arg7[%c1_16, %c17_17, %c0_18], %11 {strides = array<i32>} : memref<18x18x32xf32, #tpu.memory_space<vmem>>, vector<16x1x32xf32>,
    %16 = vector.shape_cast %9 : vector<256x32xf32> to vector<16x16x32xf32>
    %c1_19 = arith.constant 1 : index
    %c1_20 = arith.constant 1 : index
    %c0_21 = arith.constant 0 : index
    %17 = vector.load %arg7[%c1_19, %c1_20, %c0_21] : memref<18x18x32xf32, #tpu.memory_space<vmem>>, vector<16x16x32xf32>
    tpu.vector_store %arg7[%c1_19, %c1_20, %c0_21], %16 {strides = array<i32>} : memref<18x18x32xf32, #tpu.memory_space<vmem>>, vector<16x16x32xf32>,
    %c0_22 = arith.constant 0 : index
    %c0_23 = arith.constant 0 : index
    %c0_24 = arith.constant 0 : index
    %18 = vector.load %arg7[%c0_22, %c0_23, %c0_24] : memref<18x18x32xf32, #tpu.memory_space<vmem>>, vector<16x16x32xf32>
    %19 = vector.shape_cast %18 : vector<16x16x32xf32> to vector<256x32xf32>
    %c0_25 = arith.constant 0 : index
    %c0_26 = arith.constant 0 : index
    %20 = vector.load %arg8[%c0_25, %c0_26] : memref<256x288xf32, #tpu.memory_space<vmem>>, vector<256x32xf32>
    tpu.vector_store %arg8[%c0_25, %c0_26], %19 {strides = array<i32>} : memref<256x288xf32, #tpu.memory_space<vmem>>, vector<256x32xf32>,
    %c0_27 = arith.constant 0 : index
    %c1_28 = arith.constant 1 : index
    %c0_29 = arith.constant 0 : index
    %21 = vector.load %arg7[%c0_27, %c1_28, %c0_29] : memref<18x18x32xf32, #tpu.memory_space<vmem>>, vector<16x16x32xf32>
    %22 = vector.shape_cast %21 : vector<16x16x32xf32> to vector<256x32xf32>
    %c0_30 = arith.constant 0 : index
    %c32 = arith.constant 32 : index
    %23 = vector.load %arg8[%c0_30, %c32] : memref<256x288xf32, #tpu.memory_space<vmem>>, vector<256x32xf32>
    tpu.vector_store %arg8[%c0_30, %c32], %22 {strides = array<i32>} : memref<256x288xf32, #tpu.memory_space<vmem>>, vector<256x32xf32>,
    %c0_31 = arith.constant 0 : index
    %c2 = arith.constant 2 : index
    %c0_32 = arith.constant 0 : index
    %24 = vector.load %arg7[%c0_31, %c2, %c0_32] : memref<18x18x32xf32, #tpu.memory_space<vmem>>, vector<16x16x32xf32>
    %25 = vector.shape_cast %24 : vector<16x16x32xf32> to vector<256x32xf32>
    %c0_33 = arith.constant 0 : index
    %c64 = arith.constant 64 : index
    %26 = vector.load %arg8[%c0_33, %c64] : memref<256x288xf32, #tpu.memory_space<vmem>>, vector<256x32xf32>
    tpu.vector_store %arg8[%c0_33, %c64], %25 {strides = array<i32>} : memref<256x288xf32, #tpu.memory_space<vmem>>, vector<256x32xf32>,
    %c1_34 = arith.constant 1 : index
    %c0_35 = arith.constant 0 : index
    %c0_36 = arith.constant 0 : index
    %27 = vector.load %arg7[%c1_34, %c0_35, %c0_36] : memref<18x18x32xf32, #tpu.memory_space<vmem>>, vector<16x16x32xf32>
    %28 = vector.shape_cast %27 : vector<16x16x32xf32> to vector<256x32xf32>
    %c0_37 = arith.constant 0 : index
    %c96 = arith.constant 96 : index
    %29 = vector.load %arg8[%c0_37, %c96] : memref<256x288xf32, #tpu.memory_space<vmem>>, vector<256x32xf32>
    tpu.vector_store %arg8[%c0_37, %c96], %28 {strides = array<i32>} : memref<256x288xf32, #tpu.memory_space<vmem>>, vector<256x32xf32>,
    %c1_38 = arith.constant 1 : index
    %c1_39 = arith.constant 1 : index
    %c0_40 = arith.constant 0 : index
    %30 = vector.load %arg7[%c1_38, %c1_39, %c0_40] : memref<18x18x32xf32, #tpu.memory_space<vmem>>, vector<16x16x32xf32>
    %31 = vector.shape_cast %30 : vector<16x16x32xf32> to vector<256x32xf32>
    %c0_41 = arith.constant 0 : index
    %c128 = arith.constant 128 : index
    %32 = vector.load %arg8[%c0_41, %c128] : memref<256x288xf32, #tpu.memory_space<vmem>>, vector<256x32xf32>
    tpu.vector_store %arg8[%c0_41, %c128], %31 {strides = array<i32>} : memref<256x288xf32, #tpu.memory_space<vmem>>, vector<256x32xf32>,
    %c1_42 = arith.constant 1 : index
    %c2_43 = arith.constant 2 : index
    %c0_44 = arith.constant 0 : index
    %33 = vector.load %arg7[%c1_42, %c2_43, %c0_44] : memref<18x18x32xf32, #tpu.memory_space<vmem>>, vector<16x16x32xf32>
    %34 = vector.shape_cast %33 : vector<16x16x32xf32> to vector<256x32xf32>
    %c0_45 = arith.constant 0 : index
    %c160 = arith.constant 160 : index
    %35 = vector.load %arg8[%c0_45, %c160] : memref<256x288xf32, #tpu.memory_space<vmem>>, vector<256x32xf32>
    tpu.vector_store %arg8[%c0_45, %c160], %34 {strides = array<i32>} : memref<256x288xf32, #tpu.memory_space<vmem>>, vector<256x32xf32>,
    %c2_46 = arith.constant 2 : index
    %c0_47 = arith.constant 0 : index
    %c0_48 = arith.constant 0 : index
    %36 = vector.load %arg7[%c2_46, %c0_47, %c0_48] : memref<18x18x32xf32, #tpu.memory_space<vmem>>, vector<16x16x32xf32>
    %37 = vector.shape_cast %36 : vector<16x16x32xf32> to vector<256x32xf32>
    %c0_49 = arith.constant 0 : index
    %c192 = arith.constant 192 : index
    %38 = vector.load %arg8[%c0_49, %c192] : memref<256x288xf32, #tpu.memory_space<vmem>>, vector<256x32xf32>
    tpu.vector_store %arg8[%c0_49, %c192], %37 {strides = array<i32>} : memref<256x288xf32, #tpu.memory_space<vmem>>, vector<256x32xf32>,
    %c2_50 = arith.constant 2 : index
    %c1_51 = arith.constant 1 : index
    %c0_52 = arith.constant 0 : index
    %39 = vector.load %arg7[%c2_50, %c1_51, %c0_52] : memref<18x18x32xf32, #tpu.memory_space<vmem>>, vector<16x16x32xf32>
    %40 = vector.shape_cast %39 : vector<16x16x32xf32> to vector<256x32xf32>
    %c0_53 = arith.constant 0 : index
    %c224 = arith.constant 224 : index
    %41 = vector.load %arg8[%c0_53, %c224] : memref<256x288xf32, #tpu.memory_space<vmem>>, vector<256x32xf32>
    tpu.vector_store %arg8[%c0_53, %c224], %40 {strides = array<i32>} : memref<256x288xf32, #tpu.memory_space<vmem>>, vector<256x32xf32>,
    %c2_54 = arith.constant 2 : index
    %c2_55 = arith.constant 2 : index
    %c0_56 = arith.constant 0 : index
    %42 = vector.load %arg7[%c2_54, %c2_55, %c0_56] : memref<18x18x32xf32, #tpu.memory_space<vmem>>, vector<16x16x32xf32>
    %43 = vector.shape_cast %42 : vector<16x16x32xf32> to vector<256x32xf32>
    %c0_57 = arith.constant 0 : index
    %c256 = arith.constant 256 : index
    %44 = vector.load %arg8[%c0_57, %c256] : memref<256x288xf32, #tpu.memory_space<vmem>>, vector<256x32xf32>
    tpu.vector_store %arg8[%c0_57, %c256], %43 {strides = array<i32>} : memref<256x288xf32, #tpu.memory_space<vmem>>, vector<256x32xf32>,
    %c0_58 = arith.constant 0 : index
    %c0_59 = arith.constant 0 : index
    %45 = vector.load %arg8[%c0_58, %c0_59] : memref<256x288xf32, #tpu.memory_space<vmem>>, vector<256x288xf32>
    %46 = arith.truncf %45 : vector<256x288xf32> to vector<256x288xbf16>
    %c0_60 = arith.constant 0 : index
    %c0_61 = arith.constant 0 : index
    %47 = vector.load %arg4[%c0_60, %c0_61] : memref<288x32xbf16, #tpu.memory_space<vmem>>, vector<288x32xbf16>
    %cst_62 = arith.constant dense<0.000000e+00> : vector<256x32xf32>
    %48 = tpu.matmul %46, %47, %cst_62 {dimension_numbers = #tpu.dot_dimension_numbers<[1], [0], [0], [1], [0, 0, 1, 1], [], []>} : vector<256x288xbf16>, vector<288x32xbf16>, vector<256x32xf32> -> vector<256x32xf32>
    %49 = vector.shape_cast %48 : vector<256x32xf32> to vector<1x16x16x32xf32>
    %c0_63 = arith.constant 0 : index
    %c0_64 = arith.constant 0 : index
    %c0_65 = arith.constant 0 : index
    %c0_66 = arith.constant 0 : index
    %50 = vector.load %arg5[%c0_63, %c0_64, %c0_65, %c0_66] : memref<1x16x16x32xf32, #tpu.memory_space<vmem>>, vector<1x16x16x32xf32>
    tpu.vector_store %arg5[%c0_63, %c0_64, %c0_65, %c0_66], %49 {strides = array<i32>} : memref<1x16x16x32xf32, #tpu.memory_space<vmem>>, vector<1x16x16x32xf32>,
    %cst_67 = arith.constant dense<0.000000e+00> : vector<32xf32>
    %51 = vector.multi_reduction <add>, %48, %cst_67 [0] : vector<256x32xf32> to vector<32xf32>
    %52 = vector.shape_cast %51 : vector<32xf32> to vector<1x32xf32>
    %53 = vector.shape_cast %52 : vector<1x32xf32> to vector<1x1x32xf32>
    %c0_68 = arith.constant 0 : index
    %c0_69 = arith.constant 0 : index
    %c0_70 = arith.constant 0 : index
    %54 = vector.load %arg6[%c0_68, %c0_69, %c0_70] : memref<1x2x32xf32, #tpu.memory_space<vmem>>, vector<1x1x32xf32>
    tpu.vector_store %arg6[%c0_68, %c0_69, %c0_70], %53 {strides = array<i32>} : memref<1x2x32xf32, #tpu.memory_space<vmem>>, vector<1x1x32xf32>,
    %55 = arith.mulf %48, %48 : vector<256x32xf32>
    %cst_71 = arith.constant dense<0.000000e+00> : vector<32xf32>
    %56 = vector.multi_reduction <add>, %55, %cst_71 [0] : vector<256x32xf32> to vector<32xf32>
    %57 = vector.shape_cast %56 : vector<32xf32> to vector<1x32xf32>
    %58 = vector.shape_cast %57 : vector<1x32xf32> to vector<1x1x32xf32>
    %c0_72 = arith.constant 0 : index
    %c1_73 = arith.constant 1 : index
    %c0_74 = arith.constant 0 : index
    %59 = vector.load %arg6[%c0_72, %c1_73, %c0_74] : memref<1x2x32xf32, #tpu.memory_space<vmem>>, vector<1x1x32xf32>
    tpu.vector_store %arg6[%c0_72, %c1_73, %c0_74], %58 {strides = array<i32>} : memref<1x2x32xf32, #tpu.memory_space<vmem>>, vector<1x1x32xf32>,
    return
  }
  func.func @transform_0(%arg0: i32) -> (i32, i32, i32, i32) {
    %c0_i32 = arith.constant 0 : i32
    %c0_i32_0 = arith.constant 0 : i32
    %c0_i32_1 = arith.constant 0 : i32
    %c0_i32_2 = arith.constant 0 : i32
    return %arg0, %c0_i32, %c0_i32_0, %c0_i32_1 : i32, i32, i32, i32
  }
  func.func @transform_1(%arg0: i32) -> (i32, i32) {
    %c0_i32 = arith.constant 0 : i32
    %c0_i32_0 = arith.constant 0 : i32
    %c0_i32_1 = arith.constant 0 : i32
    return %c0_i32, %c0_i32_0 : i32, i32
  }
  func.func @transform_2(%arg0: i32) -> (i32, i32) {
    %c0_i32 = arith.constant 0 : i32
    %c0_i32_0 = arith.constant 0 : i32
    %c0_i32_1 = arith.constant 0 : i32
    return %c0_i32, %c0_i32_0 : i32, i32
  }
  func.func @transform_3(%arg0: i32) -> (i32, i32) {
    %c0_i32 = arith.constant 0 : i32
    %c0_i32_0 = arith.constant 0 : i32
    %c0_i32_1 = arith.constant 0 : i32
    return %c0_i32, %c0_i32_0 : i32, i32
  }
  func.func @transform_4(%arg0: i32) -> (i32, i32, i32, i32) {
    %c0_i32 = arith.constant 0 : i32
    %c0_i32_0 = arith.constant 0 : i32
    %c0_i32_1 = arith.constant 0 : i32
    %c0_i32_2 = arith.constant 0 : i32
    return %arg0, %c0_i32, %c0_i32_0, %c0_i32_1 : i32, i32, i32, i32
  }
  func.func @transform_5(%arg0: i32) -> (i32, i32, i32) {
    %c0_i32 = arith.constant 0 : i32
    %c0_i32_0 = arith.constant 0 : i32
    %c0_i32_1 = arith.constant 0 : i32
    return %arg0, %c0_i32, %c0_i32_0 : i32, i32, i32
  }
}

module attributes {stable_mosaic.version = 11 : i64} {
  func.func @epilogue_kernel(%arg0: i32, %arg1: memref<1x16x16x128xf32, #tpu.memory_space<vmem>>, %arg2: memref<1x16x16x128xf32, #tpu.memory_space<vmem>>, %arg3: memref<1x128xf32, #tpu.memory_space<vmem>>, %arg4: memref<1x128xf32, #tpu.memory_space<vmem>>, %arg5: memref<1x16x16x128xf32, #tpu.memory_space<vmem>>) attributes {dimension_semantics = [#tpu.dimension_semantics<parallel>], iteration_bounds = array<i64: 2>, scalar_prefetch = 0 : i64, scratch_operands = 0 : i64, tpu.core_type = #tpu.core_type<tc>, window_params = [{transform_indices = @transform_0, window_bounds = array<i64: 1, 16, 16, 128>}, {transform_indices = @transform_1, window_bounds = array<i64: 1, 16, 16, 128>}, {pipeline_mode = #tpu.pipeline_mode<synchronous>, transform_indices = @transform_2, window_bounds = array<i64: 1, 128>}, {pipeline_mode = #tpu.pipeline_mode<synchronous>, transform_indices = @transform_3, window_bounds = array<i64: 1, 128>}, {transform_indices = @transform_4, window_bounds = array<i64: 1, 16, 16, 128>}]} {
    %c0 = arith.constant 0 : index
    %c0_0 = arith.constant 0 : index
    %c0_1 = arith.constant 0 : index
    %c0_2 = arith.constant 0 : index
    %0 = vector.load %arg1[%c0, %c0_0, %c0_1, %c0_2] : memref<1x16x16x128xf32, #tpu.memory_space<vmem>>, vector<1x16x16x128xf32>
    %1 = vector.shape_cast %0 : vector<1x16x16x128xf32> to vector<256x128xf32>
    %c0_3 = arith.constant 0 : index
    %c0_4 = arith.constant 0 : index
    %c0_5 = arith.constant 0 : index
    %c0_6 = arith.constant 0 : index
    %2 = vector.load %arg2[%c0_3, %c0_4, %c0_5, %c0_6] : memref<1x16x16x128xf32, #tpu.memory_space<vmem>>, vector<1x16x16x128xf32>
    %3 = vector.shape_cast %2 : vector<1x16x16x128xf32> to vector<256x128xf32>
    %c0_7 = arith.constant 0 : index
    %c0_8 = arith.constant 0 : index
    %4 = vector.load %arg3[%c0_7, %c0_8] : memref<1x128xf32, #tpu.memory_space<vmem>>, vector<1x128xf32>
    %5 = vector.broadcast %4 : vector<1x128xf32> to vector<256x128xf32>
    %6 = arith.mulf %1, %5 : vector<256x128xf32>
    %c0_9 = arith.constant 0 : index
    %c0_10 = arith.constant 0 : index
    %7 = vector.load %arg4[%c0_9, %c0_10] : memref<1x128xf32, #tpu.memory_space<vmem>>, vector<1x128xf32>
    %8 = vector.broadcast %7 : vector<1x128xf32> to vector<256x128xf32>
    %9 = arith.addf %6, %8 : vector<256x128xf32>
    %10 = arith.addf %9, %3 : vector<256x128xf32>
    %cst = arith.constant 0.000000e+00 : f32
    %11 = vector.broadcast %cst : f32 to vector<256x128xf32>
    %12 = arith.maximumf %10, %11 : vector<256x128xf32>
    %13 = vector.shape_cast %12 : vector<256x128xf32> to vector<1x16x16x128xf32>
    %c0_11 = arith.constant 0 : index
    %c0_12 = arith.constant 0 : index
    %c0_13 = arith.constant 0 : index
    %c0_14 = arith.constant 0 : index
    %14 = vector.load %arg5[%c0_11, %c0_12, %c0_13, %c0_14] : memref<1x16x16x128xf32, #tpu.memory_space<vmem>>, vector<1x16x16x128xf32>
    tpu.vector_store %arg5[%c0_11, %c0_12, %c0_13, %c0_14], %13 {strides = array<i32>} : memref<1x16x16x128xf32, #tpu.memory_space<vmem>>, vector<1x16x16x128xf32>,
    return
  }
  func.func @transform_0(%arg0: i32) -> (i32, i32, i32, i32) {
    %c0_i32 = arith.constant 0 : i32
    %c0_i32_0 = arith.constant 0 : i32
    %c0_i32_1 = arith.constant 0 : i32
    %c0_i32_2 = arith.constant 0 : i32
    return %arg0, %c0_i32, %c0_i32_0, %c0_i32_1 : i32, i32, i32, i32
  }
  func.func @transform_1(%arg0: i32) -> (i32, i32, i32, i32) {
    %c0_i32 = arith.constant 0 : i32
    %c0_i32_0 = arith.constant 0 : i32
    %c0_i32_1 = arith.constant 0 : i32
    %c0_i32_2 = arith.constant 0 : i32
    return %arg0, %c0_i32, %c0_i32_0, %c0_i32_1 : i32, i32, i32, i32
  }
  func.func @transform_2(%arg0: i32) -> (i32, i32) {
    %c0_i32 = arith.constant 0 : i32
    %c0_i32_0 = arith.constant 0 : i32
    %c0_i32_1 = arith.constant 0 : i32
    return %c0_i32, %c0_i32_0 : i32, i32
  }
  func.func @transform_3(%arg0: i32) -> (i32, i32) {
    %c0_i32 = arith.constant 0 : i32
    %c0_i32_0 = arith.constant 0 : i32
    %c0_i32_1 = arith.constant 0 : i32
    return %c0_i32, %c0_i32_0 : i32, i32
  }
  func.func @transform_4(%arg0: i32) -> (i32, i32, i32, i32) {
    %c0_i32 = arith.constant 0 : i32
    %c0_i32_0 = arith.constant 0 : i32
    %c0_i32_1 = arith.constant 0 : i32
    %c0_i32_2 = arith.constant 0 : i32
    return %arg0, %c0_i32, %c0_i32_0, %c0_i32_1 : i32, i32, i32, i32
  }
}

</mosaic_0001>

<llo_original>
// kernel: bottleneck_forward.7
$region0: #{bottleneck_forward.7}
  #allocation0 [shape = 'u32[]', space=smem, size = 0x4, offset = 0x4, fixed_abs, tag = 'smem constant byte address 0x4 - core index']
  #allocation1 [shape = 'u32[144,128]{1,0:T(1,128)}', space=vmem, size = 0x12000, scoped, tag = 'internal scratch']
  %s0 = inlined_call_operand.vmem [shape: f32[2,16,16,128], index: 0, kind: input, shape index: {}]
  %s1 = inlined_call_operand.vmem [shape: f32[2,16,16,128], index: 1, kind: input, shape index: {}]
  %s2 = inlined_call_operand.vmem [shape: f32[1,128], index: 2, kind: input, shape index: {}]
  %s3 = inlined_call_operand.vmem [shape: f32[1,128], index: 3, kind: input, shape index: {}]
  %s4 = inlined_call_operand.hbm [shape: f32[2,16,16,128], index: 4, kind: output, shape index: {}]
  %s5 = sld [smem:[#allocation0]]
  $region49: #{bottleneck_forward.7} parent=0
    _
  %s7 = ssub.s32 1, %s5
  %s8 = scalar_select 0, %s7, %s5
  $region1: #{bottleneck_forward.7} parent=0
    #allocation2 [shape = 'u8[262144]{0}', space=vmem, size = 0x40000, scoped, tag = 'output window, operand 0']
    #allocation3 [shape = 's32[2]{0}', space=sflag, size = 0x8, scoped, tag = 'scoped memory for bottleneck_forward.7']
    %9 = vsyncpa [#allocation3], 0
    %s10 = scalar_lea.sflag [#allocation3], 1
    %11 = vsyncpa %s10, 0
    loop: start=0, step=1, limit=4
    $region2: #{bottleneck_forward.7} parent=1 // loop_pre_header
      _
    $region3: #{bottleneck_forward.7} parent=1 // loop_header
      %s13 = sphi 0, %s17
      %p14 = scmp.ge.s32.totalorder %s13, 4
      %s23 = sphi 0, %s25
      %s26 = sphi 0, %s23
      %s27 = sphi 0, %s26
      %s43 = sphi 0, %s27
      %s49 = sphi 0, %s51
      %s52 = sphi 0, %s49
      %s53 = sphi 0, %s52
      %s69 = sphi 0, %s53
      %s73 = sphi 0, %s73
      %s75 = sphi 0, %s73
      %s76 = sphi 0, %s75
      %s90 = sphi 0, %s76
      %s94 = sphi 0, %s94
      %s96 = sphi 0, %s94
      %s97 = sphi 0, %s96
      %s111 = sphi 0, %s97
      %s117 = sphi 0, %s119
      %s120 = sphi 0, %s117
      %s121 = sphi 0, %s120
      %s137 = sphi 0, %s121
    $region4: #{bottleneck_forward.7} parent=1 // loop_header_branch
      %16 = sbr.rel (%p14) target = $region8
    $region5: #{bottleneck_forward.7} parent=1 // loop_body
      %s18 = ssub.s32 %s13, 1
      %s19 = ssub.s32 %s13, 2
      %s20 = sadd.s32 %s13, 1
      %s21 = ssub.s32 %s13, %s20
      %p22 = scmp.eq.s32.totalorder %s21, 0
      %s24 = sadd.s32 %s23, 1
      %s25 = scalar_select %p22, %s23, %s24
      %p28 = pneg %p22
      %p29 = scmp.eq.s32.totalorder %s13, 1
      %p30 = por %p28, %p29
      %p31 = scmp.ne.s32.totalorder %s23, %s26
      %p32 = scmp.eq.s32.totalorder %s13, 0
      %p33 = por %p31, %p32
      %p34 = scmp.ne.s32.totalorder %s23, %s26
      %p35 = scmp.eq.s32.totalorder %s18, 1
      %p36 = por %p34, %p35
      %p37 = scmp.ne.s32.totalorder %s26, %s27
      %p38 = scmp.eq.s32.totalorder %s18, 0
      %p39 = por %p37, %p38
      %p40 = scmp.ne.s32.totalorder %s26, %s27
      %p41 = scmp.eq.s32.totalorder %s19, 1
      %p42 = por %p40, %p41
      %p44 = scmp.ne.s32.totalorder %s27, %s43
      %p45 = scmp.eq.s32.totalorder %s19, 0
      %p46 = por %p44, %p45
      %s47 = ssub.s32 %s13, %s20
      %p48 = scmp.eq.s32.totalorder %s47, 0
      %s50 = sadd.s32 %s49, 1
      %s51 = scalar_select %p48, %s49, %s50
      %p54 = pneg %p48
      %p55 = scmp.eq.s32.totalorder %s13, 1
      %p56 = por %p54, %p55
      %p57 = scmp.ne.s32.totalorder %s49, %s52
      %p58 = scmp.eq.s32.totalorder %s13, 0
      %p59 = por %p57, %p58
      %p60 = scmp.ne.s32.totalorder %s49, %s52
      %p61 = scmp.eq.s32.totalorder %s18, 1
      %p62 = por %p60, %p61
      %p63 = scmp.ne.s32.totalorder %s52, %s53
      %p64 = scmp.eq.s32.totalorder %s18, 0
      %p65 = por %p63, %p64
      %p66 = scmp.ne.s32.totalorder %s52, %s53
      %p67 = scmp.eq.s32.totalorder %s19, 1
      %p68 = por %p66, %p67
      %p70 = scmp.ne.s32.totalorder %s53, %s69
      %p71 = scmp.eq.s32.totalorder %s19, 0
      %p72 = por %p70, %p71
      %s74 = sadd.s32 %s73, 1
      %p77 = scmp.eq.s32.totalorder %s13, 1
      %p78 = scmp.ne.s32.totalorder %s73, %s75
      %p79 = scmp.eq.s32.totalorder %s13, 0
      %p80 = por %p78, %p79
      %p81 = scmp.ne.s32.totalorder %s73, %s75
      %p82 = scmp.eq.s32.totalorder %s18, 1
      %p83 = por %p81, %p82
      %p84 = scmp.ne.s32.totalorder %s75, %s76
      %p85 = scmp.eq.s32.totalorder %s18, 0
      %p86 = por %p84, %p85
      %p87 = scmp.ne.s32.totalorder %s75, %s76
      %p88 = scmp.eq.s32.totalorder %s19, 1
      %p89 = por %p87, %p88
      %p91 = scmp.ne.s32.totalorder %s76, %s90
      %p92 = scmp.eq.s32.totalorder %s19, 0
      %p93 = por %p91, %p92
      %s95 = sadd.s32 %s94, 1
      %p98 = scmp.eq.s32.totalorder %s13, 1
      %p99 = scmp.ne.s32.totalorder %s94, %s96
      %p100 = scmp.eq.s32.totalorder %s13, 0
      %p101 = por %p99, %p100
      %p102 = scmp.ne.s32.totalorder %s94, %s96
      %p103 = scmp.eq.s32.totalorder %s18, 1
      %p104 = por %p102, %p103
      %p105 = scmp.ne.s32.totalorder %s96, %s97
      %p106 = scmp.eq.s32.totalorder %s18, 0
      %p107 = por %p105, %p106
      %p108 = scmp.ne.s32.totalorder %s96, %s97
      %p109 = scmp.eq.s32.totalorder %s19, 1
      %p110 = por %p108, %p109
      %p112 = scmp.ne.s32.totalorder %s97, %s111
      %p113 = scmp.eq.s32.totalorder %s19, 0
      %p114 = por %p112, %p113
      %s115 = ssub.s32 %s13, %s20
      %p116 = scmp.eq.s32.totalorder %s115, 0
      %s118 = sadd.s32 %s117, 1
      %s119 = scalar_select %p116, %s117, %s118
      %p122 = pneg %p116
      %p123 = scmp.eq.s32.totalorder %s13, 1
      %p124 = por %p122, %p123
      %p125 = scmp.ne.s32.totalorder %s117, %s120
      %p126 = scmp.eq.s32.totalorder %s13, 0
      %p127 = por %p125, %p126
      %p128 = scmp.ne.s32.totalorder %s117, %s120
      %p129 = scmp.eq.s32.totalorder %s18, 1
      %p130 = por %p128, %p129
      %p131 = scmp.ne.s32.totalorder %s120, %s121
      %p132 = scmp.eq.s32.totalorder %s18, 0
      %p133 = por %p131, %p132
      %p134 = scmp.ne.s32.totalorder %s120, %s121
      %p135 = scmp.eq.s32.totalorder %s19, 1
      %p136 = por %p134, %p135
      %p138 = scmp.ne.s32.totalorder %s121, %s137
      %p139 = scmp.eq.s32.totalorder %s19, 0
      %p140 = por %p138, %p139
      %p141 = scmp.le.s32.totalorder 1, %s13
      %p142 = scmp.lt.s32.totalorder %s13, 3
      %p143 = pnand %p141, %p142
      %p144 = pneg %p143
      // Predicated region
      $region9: #{bottleneck_forward.7} parent=5 // pred_check
        _
      $region10: #{bottleneck_forward.7} parent=5 // pred_check_branch
        %146 = sbr.rel (%p143) target = $region12
      $region11: #{bottleneck_forward.7} parent=5 // pred_region
        %s147 = ssub.s32 %s13, 1
        // Predicated region
        $region13: #{bottleneck_forward.7} parent=11 // pred_check
          %p148 = pneg %p86
        $region14: #{bottleneck_forward.7} parent=11 // pred_check_branch
          %150 = sbr.rel (%p148) target = $region16
        $region15: #{bottleneck_forward.7} parent=11 // pred_region
          _
        $region16: #{bottleneck_forward.7} parent=11 // pred_fallthru
          _
        // Predicated region
        $region17: #{bottleneck_forward.7} parent=11 // pred_check
          %p151 = pneg %p107
        $region18: #{bottleneck_forward.7} parent=11 // pred_check_branch
          %153 = sbr.rel (%p151) target = $region20
        $region19: #{bottleneck_forward.7} parent=11 // pred_region
          _
        $region20: #{bottleneck_forward.7} parent=11 // pred_fallthru
          _
      $region12: #{bottleneck_forward.7} parent=5 // pred_fallthru
        _
      %p154 = scmp.lt.s32.totalorder %s13, 2
      // Predicated region
      $region21: #{bottleneck_forward.7} parent=5 // pred_check
        %p155 = pneg %p154
      $region22: #{bottleneck_forward.7} parent=5 // pred_check_branch
        %157 = sbr.rel (%p155) target = $region24
      $region23: #{bottleneck_forward.7} parent=5 // pred_region
        // Predicated region
        $region25: #{bottleneck_forward.7} parent=23 // pred_check
          %p158 = pneg %p33
        $region26: #{bottleneck_forward.7} parent=23 // pred_check_branch
          %160 = sbr.rel (%p158) target = $region28
        $region27: #{bottleneck_forward.7} parent=23 // pred_region
          %p161 = scmp.lt.s32.totalorder %s13, 1
          %s162 = scalar_select %p161, %s13, 1
          %s163 = smul.addr %s162, 32
          %s164 = smul.addr %s163, 8
          %s165 = scalar_lea.vmem %s0, %s164
        $region28: #{bottleneck_forward.7} parent=23 // pred_fallthru
          _
        // Predicated region
        $region29: #{bottleneck_forward.7} parent=23 // pred_check
          %p166 = pneg %p59
        $region30: #{bottleneck_forward.7} parent=23 // pred_check_branch
          %168 = sbr.rel (%p166) target = $region32
        $region31: #{bottleneck_forward.7} parent=23 // pred_region
          %p169 = scmp.lt.s32.totalorder %s13, 1
          %s170 = scalar_select %p169, %s13, 1
          %s171 = smul.addr %s170, 32
          %s172 = smul.addr %s171, 8
          %s173 = scalar_lea.vmem %s1, %s172
        $region32: #{bottleneck_forward.7} parent=23 // pred_fallthru
          _
      $region24: #{bottleneck_forward.7} parent=5 // pred_fallthru
        _
      %p174 = scmp.le.s32.totalorder 1, %s13
      %p175 = scmp.lt.s32.totalorder %s13, 3
      %p176 = pnand %p174, %p175
      %p177 = pneg %p176
      // Predicated region
      $region33: #{bottleneck_forward.7} parent=5 // pred_check
        _
      $region34: #{bottleneck_forward.7} parent=5 // pred_check_branch
        %179 = sbr.rel (%p176) target = $region36
      $region35: #{bottleneck_forward.7} parent=5 // pred_region
        %s180 = ssub.s32 %s13, 1
        %p181 = scmp.lt.s32.totalorder %s18, 1
        %s182 = scalar_select %p181, %s18, 1
        %s183 = smul.addr %s182, 32
        %s184 = smul.addr %s183, 8
        %s185 = scalar_lea.vmem %s0, %s184
        %p186 = pneg %p39
        %p187 = pneg %p36
        %p188 = scmp.lt.s32.totalorder %s18, 1
        %s189 = scalar_select %p188, %s18, 1
        %s190 = smul.addr %s189, 32
        %s191 = smul.addr %s190, 8
        %s192 = scalar_lea.vmem %s1, %s191
        %p193 = pneg %p65
        %p194 = pneg %p62
        %p195 = pneg %p86
        %p196 = pneg %p83
        %p197 = pneg %p107
        %p198 = pneg %p104
        %p199 = pneg %p133
        %p200 = pneg %p130
        %s201 = sand.u32 %s120, 1
        %s202 = scalar_lea.sflag [#allocation3], %s201
        %s203 = sand.u32 %s120, 1
        %s204 = smul.addr %s203, 256
        %s205 = scalar_lea.vmem [#allocation2], %s204
        %p206 = scmp.lt.s32.totalorder %s18, 1
        %s207 = scalar_select %p206, %s18, 1
        %s208 = smul.addr %s207, 32
        %s209 = smul.addr %s208, 8
        %s210 = scalar_lea.vmem %s0, %s209
        %p211 = scmp.lt.s32.totalorder %s18, 1
        %s212 = scalar_select %p211, %s18, 1
        %s213 = smul.addr %s212, 32
        %s214 = smul.addr %s213, 8
        %s215 = scalar_lea.vmem %s1, %s214
        %v216 = vld [vmem:[%s210] sm:$0xff]
        %v217 = vld [vmem:[%s210 + $0x8] sm:$0xff]
        %v218 = vld [vmem:[%s210 + $0x10] sm:$0xff]
        %v219 = vld [vmem:[%s210 + $0x18] sm:$0xff]
        %v220 = vld [vmem:[%s210 + $0x20] sm:$0xff]
        %v221 = vld [vmem:[%s210 + $0x28] sm:$0xff]
        %v222 = vld [vmem:[%s210 + $0x30] sm:$0xff]
        %v223 = vld [vmem:[%s210 + $0x38] sm:$0xff]
        %v224 = vld [vmem:[%s210 + $0x40] sm:$0xff]
        %v225 = vld [vmem:[%s210 + $0x48] sm:$0xff]
        %v226 = vld [vmem:[%s210 + $0x50] sm:$0xff]
        %v227 = vld [vmem:[%s210 + $0x58] sm:$0xff]
        %v228 = vld [vmem:[%s210 + $0x60] sm:$0xff]
        %v229 = vld [vmem:[%s210 + $0x68] sm:$0xff]
        %v230 = vld [vmem:[%s210 + $0x70] sm:$0xff]
        %v231 = vld [vmem:[%s210 + $0x78] sm:$0xff]
        %v232 = vld [vmem:[%s210 + $0x80] sm:$0xff]
        %v233 = vld [vmem:[%s210 + $0x88] sm:$0xff]
        %v234 = vld [vmem:[%s210 + $0x90] sm:$0xff]
        %v235 = vld [vmem:[%s210 + $0x98] sm:$0xff]
        %v236 = vld [vmem:[%s210 + $0xa0] sm:$0xff]
        %v237 = vld [vmem:[%s210 + $0xa8] sm:$0xff]
        %v238 = vld [vmem:[%s210 + $0xb0] sm:$0xff]
        %v239 = vld [vmem:[%s210 + $0xb8] sm:$0xff]
        %v240 = vld [vmem:[%s210 + $0xc0] sm:$0xff]
        %v241 = vld [vmem:[%s210 + $0xc8] sm:$0xff]
        %v242 = vld [vmem:[%s210 + $0xd0] sm:$0xff]
        %v243 = vld [vmem:[%s210 + $0xd8] sm:$0xff]
        %v244 = vld [vmem:[%s210 + $0xe0] sm:$0xff]
        %v245 = vld [vmem:[%s210 + $0xe8] sm:$0xff]
        %v246 = vld [vmem:[%s210 + $0xf0] sm:$0xff]
        %v247 = vld [vmem:[%s210 + $0xf8] sm:$0xff]
        %v248 = vld [vmem:[%s215] sm:$0xff]
        %v249 = vld [vmem:[%s215 + $0x8] sm:$0xff]
        %v250 = vld [vmem:[%s215 + $0x10] sm:$0xff]
        %v251 = vld [vmem:[%s215 + $0x18] sm:$0xff]
        %v252 = vld [vmem:[%s215 + $0x20] sm:$0xff]
        %v253 = vld [vmem:[%s215 + $0x28] sm:$0xff]
        %v254 = vld [vmem:[%s215 + $0x30] sm:$0xff]
        %v255 = vld [vmem:[%s215 + $0x38] sm:$0xff]
        %v256 = vld [vmem:[%s215 + $0x40] sm:$0xff]
        %v257 = vld [vmem:[%s215 + $0x48] sm:$0xff]
        %v258 = vld [vmem:[%s215 + $0x50] sm:$0xff]
        %v259 = vld [vmem:[%s215 + $0x58] sm:$0xff]
        %v260 = vld [vmem:[%s215 + $0x60] sm:$0xff]
        %v261 = vld [vmem:[%s215 + $0x68] sm:$0xff]
        %v262 = vld [vmem:[%s215 + $0x70] sm:$0xff]
        %v263 = vld [vmem:[%s215 + $0x78] sm:$0xff]
        %v264 = vld [vmem:[%s215 + $0x80] sm:$0xff]
        %v265 = vld [vmem:[%s215 + $0x88] sm:$0xff]
        %v266 = vld [vmem:[%s215 + $0x90] sm:$0xff]
        %v267 = vld [vmem:[%s215 + $0x98] sm:$0xff]
        %v268 = vld [vmem:[%s215 + $0xa0] sm:$0xff]
        %v269 = vld [vmem:[%s215 + $0xa8] sm:$0xff]
        %v270 = vld [vmem:[%s215 + $0xb0] sm:$0xff]
        %v271 = vld [vmem:[%s215 + $0xb8] sm:$0xff]
        %v272 = vld [vmem:[%s215 + $0xc0] sm:$0xff]
        %v273 = vld [vmem:[%s215 + $0xc8] sm:$0xff]
        %v274 = vld [vmem:[%s215 + $0xd0] sm:$0xff]
        %v275 = vld [vmem:[%s215 + $0xd8] sm:$0xff]
        %v276 = vld [vmem:[%s215 + $0xe0] sm:$0xff]
        %v277 = vld [vmem:[%s215 + $0xe8] sm:$0xff]
        %v278 = vld [vmem:[%s215 + $0xf0] sm:$0xff]
        %v279 = vld [vmem:[%s215 + $0xf8] sm:$0xff]
        %v280 = vld [vmem:[%s2] sm:$0x1]
        %v282 = vlaneseq
        %v283 = vshrl.u32 %v282, 7
        %v284 = vsub.s32 0, %v283
        %v285 = vrot.slane %v280, %v284
        %v287 = vmul.f32 %v216, %v285
        %v288 = vmul.f32 %v217, %v285
        %v289 = vmul.f32 %v218, %v285
        %v290 = vmul.f32 %v219, %v285
        %v291 = vmul.f32 %v220, %v285
        %v292 = vmul.f32 %v221, %v285
        %v293 = vmul.f32 %v222, %v285
        %v294 = vmul.f32 %v223, %v285
        %v295 = vmul.f32 %v224, %v285
        %v296 = vmul.f32 %v225, %v285
        %v297 = vmul.f32 %v226, %v285
        %v298 = vmul.f32 %v227, %v285
        %v299 = vmul.f32 %v228, %v285
        %v300 = vmul.f32 %v229, %v285
        %v301 = vmul.f32 %v230, %v285
        %v302 = vmul.f32 %v231, %v285
        %v303 = vmul.f32 %v232, %v285
        %v304 = vmul.f32 %v233, %v285
        %v305 = vmul.f32 %v234, %v285
        %v306 = vmul.f32 %v235, %v285
        %v307 = vmul.f32 %v236, %v285
        %v308 = vmul.f32 %v237, %v285
        %v309 = vmul.f32 %v238, %v285
        %v310 = vmul.f32 %v239, %v285
        %v311 = vmul.f32 %v240, %v285
        %v312 = vmul.f32 %v241, %v285
        %v313 = vmul.f32 %v242, %v285
        %v314 = vmul.f32 %v243, %v285
        %v315 = vmul.f32 %v244, %v285
        %v316 = vmul.f32 %v245, %v285
        %v317 = vmul.f32 %v246, %v285
        %v318 = vmul.f32 %v247, %v285
        %v319 = vld [vmem:[%s3] sm:$0x1]
        %v321 = vlaneseq
        %v322 = vshrl.u32 %v321, 7
        %v323 = vsub.s32 0, %v322
        %v324 = vrot.slane %v319, %v323
        %v326 = vadd.f32 %v287, %v324
        %v327 = vadd.f32 %v288, %v324
        %v328 = vadd.f32 %v289, %v324
        %v329 = vadd.f32 %v290, %v324
        %v330 = vadd.f32 %v291, %v324
        %v331 = vadd.f32 %v292, %v324
        %v332 = vadd.f32 %v293, %v324
        %v333 = vadd.f32 %v294, %v324
        %v334 = vadd.f32 %v295, %v324
        %v335 = vadd.f32 %v296, %v324
        %v336 = vadd.f32 %v297, %v324
        %v337 = vadd.f32 %v298, %v324
        %v338 = vadd.f32 %v299, %v324
        %v339 = vadd.f32 %v300, %v324
        %v340 = vadd.f32 %v301, %v324
        %v341 = vadd.f32 %v302, %v324
        %v342 = vadd.f32 %v303, %v324
        %v343 = vadd.f32 %v304, %v324
        %v344 = vadd.f32 %v305, %v324
        %v345 = vadd.f32 %v306, %v324
        %v346 = vadd.f32 %v307, %v324
        %v347 = vadd.f32 %v308, %v324
        %v348 = vadd.f32 %v309, %v324
        %v349 = vadd.f32 %v310, %v324
        %v350 = vadd.f32 %v311, %v324
        %v351 = vadd.f32 %v312, %v324
        %v352 = vadd.f32 %v313, %v324
        %v353 = vadd.f32 %v314, %v324
        %v354 = vadd.f32 %v315, %v324
        %v355 = vadd.f32 %v316, %v324
        %v356 = vadd.f32 %v317, %v324
        %v357 = vadd.f32 %v318, %v324
        %v358 = vadd.f32 %v326, %v248
        %v359 = vadd.f32 %v327, %v249
        %v360 = vadd.f32 %v328, %v250
        %v361 = vadd.f32 %v329, %v251
        %v362 = vadd.f32 %v330, %v252
        %v363 = vadd.f32 %v331, %v253
        %v364 = vadd.f32 %v332, %v254
        %v365 = vadd.f32 %v333, %v255
        %v366 = vadd.f32 %v334, %v256
        %v367 = vadd.f32 %v335, %v257
        %v368 = vadd.f32 %v336, %v258
        %v369 = vadd.f32 %v337, %v259
        %v370 = vadd.f32 %v338, %v260
        %v371 = vadd.f32 %v339, %v261
        %v372 = vadd.f32 %v340, %v262
        %v373 = vadd.f32 %v341, %v263
        %v374 = vadd.f32 %v342, %v264
        %v375 = vadd.f32 %v343, %v265
        %v376 = vadd.f32 %v344, %v266
        %v377 = vadd.f32 %v345, %v267
        %v378 = vadd.f32 %v346, %v268
        %v379 = vadd.f32 %v347, %v269
        %v380 = vadd.f32 %v348, %v270
        %v381 = vadd.f32 %v349, %v271
        %v382 = vadd.f32 %v350, %v272
        %v383 = vadd.f32 %v351, %v273
        %v384 = vadd.f32 %v352, %v274
        %v385 = vadd.f32 %v353, %v275
        %v386 = vadd.f32 %v354, %v276
        %v387 = vadd.f32 %v355, %v277
        %v388 = vadd.f32 %v356, %v278
        %v389 = vadd.f32 %v357, %v279
        %v390 = vmax.f32 %v358, 0.0
        %v391 = vmax.f32 %v359, 0.0
        %v392 = vmax.f32 %v360, 0.0
        %v393 = vmax.f32 %v361, 0.0
        %v394 = vmax.f32 %v362, 0.0
        %v395 = vmax.f32 %v363, 0.0
        %v396 = vmax.f32 %v364, 0.0
        %v397 = vmax.f32 %v365, 0.0
        %v398 = vmax.f32 %v366, 0.0
        %v399 = vmax.f32 %v367, 0.0
        %v400 = vmax.f32 %v368, 0.0
        %v401 = vmax.f32 %v369, 0.0
        %v402 = vmax.f32 %v370, 0.0
        %v403 = vmax.f32 %v371, 0.0
        %v404 = vmax.f32 %v372, 0.0
        %v405 = vmax.f32 %v373, 0.0
        %v406 = vmax.f32 %v374, 0.0
        %v407 = vmax.f32 %v375, 0.0
        %v408 = vmax.f32 %v376, 0.0
        %v409 = vmax.f32 %v377, 0.0
        %v410 = vmax.f32 %v378, 0.0
        %v411 = vmax.f32 %v379, 0.0
        %v412 = vmax.f32 %v380, 0.0
        %v413 = vmax.f32 %v381, 0.0
        %v414 = vmax.f32 %v382, 0.0
        %v415 = vmax.f32 %v383, 0.0
        %v416 = vmax.f32 %v384, 0.0
        %v417 = vmax.f32 %v385, 0.0
        %v418 = vmax.f32 %v386, 0.0
        %v419 = vmax.f32 %v387, 0.0
        %v420 = vmax.f32 %v388, 0.0
        %v421 = vmax.f32 %v389, 0.0
        %422 = vst [vmem:[%s205] sm:$0xff] %v390
        %423 = vst [vmem:[%s205 + $0x8] sm:$0xff] %v391
        %424 = vst [vmem:[%s205 + $0x10] sm:$0xff] %v392
        %425 = vst [vmem:[%s205 + $0x18] sm:$0xff] %v393
        %426 = vst [vmem:[%s205 + $0x20] sm:$0xff] %v394
        %427 = vst [vmem:[%s205 + $0x28] sm:$0xff] %v395
        %428 = vst [vmem:[%s205 + $0x30] sm:$0xff] %v396
        %429 = vst [vmem:[%s205 + $0x38] sm:$0xff] %v397
        %430 = vst [vmem:[%s205 + $0x40] sm:$0xff] %v398
        %431 = vst [vmem:[%s205 + $0x48] sm:$0xff] %v399
        %432 = vst [vmem:[%s205 + $0x50] sm:$0xff] %v400
        %433 = vst [vmem:[%s205 + $0x58] sm:$0xff] %v401
        %434 = vst [vmem:[%s205 + $0x60] sm:$0xff] %v402
        %435 = vst [vmem:[%s205 + $0x68] sm:$0xff] %v403
        %436 = vst [vmem:[%s205 + $0x70] sm:$0xff] %v404
        %437 = vst [vmem:[%s205 + $0x78] sm:$0xff] %v405
        %438 = vst [vmem:[%s205 + $0x80] sm:$0xff] %v406
        %439 = vst [vmem:[%s205 + $0x88] sm:$0xff] %v407
        %440 = vst [vmem:[%s205 + $0x90] sm:$0xff] %v408
        %441 = vst [vmem:[%s205 + $0x98] sm:$0xff] %v409
        %442 = vst [vmem:[%s205 + $0xa0] sm:$0xff] %v410
        %443 = vst [vmem:[%s205 + $0xa8] sm:$0xff] %v411
        %444 = vst [vmem:[%s205 + $0xb0] sm:$0xff] %v412
        %445 = vst [vmem:[%s205 + $0xb8] sm:$0xff] %v413
        %446 = vst [vmem:[%s205 + $0xc0] sm:$0xff] %v414
        %447 = vst [vmem:[%s205 + $0xc8] sm:$0xff] %v415
        %448 = vst [vmem:[%s205 + $0xd0] sm:$0xff] %v416
        %449 = vst [vmem:[%s205 + $0xd8] sm:$0xff] %v417
        %450 = vst [vmem:[%s205 + $0xe0] sm:$0xff] %v418
        %451 = vst [vmem:[%s205 + $0xe8] sm:$0xff] %v419
        %452 = vst [vmem:[%s205 + $0xf0] sm:$0xff] %v420
        %453 = vst [vmem:[%s205 + $0xf8] sm:$0xff] %v421
        %s454 = sand.u32 %s120, 1
        %s455 = scalar_lea.sflag [#allocation3], %s454
        %s456 = sand.u32 %s120, 1
        %s457 = smul.addr %s456, 256
        %s458 = scalar_lea.vmem [#allocation2], %s457
        // Predicated region
        $region37: #{bottleneck_forward.7} parent=35 // pred_check
          %p459 = pneg %p130
        $region38: #{bottleneck_forward.7} parent=35 // pred_check_branch
          %461 = sbr.rel (%p459) target = $region40
        $region39: #{bottleneck_forward.7} parent=35 // pred_region
          %s463 = ssub.s32 4096, 4096
          %464 = vsyncadd %s455, %s463
          %s465 = smul.addr %s18, 32
          %s466 = smul.addr %s465, 128
          %s467 = scalar_lea.hbm %s4, %s466
          %s468 = sshll.u32 %s458, 4
          %s469 = int_to_ptr.vmem [resolvable:$true] %s468
          %474 = dma.vmem_to_hbm [thread:$0]  %s469, 4096, %s467, %s455, 128, 128, 8
        $region40: #{bottleneck_forward.7} parent=35 // pred_fallthru
          _
      $region36: #{bottleneck_forward.7} parent=5 // pred_fallthru
        _
      %p475 = scmp.le.s32.totalorder 2, %s13
      // Predicated region
      $region41: #{bottleneck_forward.7} parent=5 // pred_check
        %p476 = pneg %p475
      $region42: #{bottleneck_forward.7} parent=5 // pred_check_branch
        %478 = sbr.rel (%p476) target = $region44
      $region43: #{bottleneck_forward.7} parent=5 // pred_region
        %s479 = ssub.s32 %s13, 2
        // Predicated region
        $region45: #{bottleneck_forward.7} parent=43 // pred_check
          %p480 = pneg %p136
        $region46: #{bottleneck_forward.7} parent=43 // pred_check_branch
          %482 = sbr.rel (%p480) target = $region48
        $region47: #{bottleneck_forward.7} parent=43 // pred_region
          %s483 = sand.u32 %s121, 1
          %s484 = scalar_lea.sflag [#allocation3], %s483
          %s485 = sand.u32 %s121, 1
          %s486 = smul.addr %s485, 256
          %s487 = scalar_lea.vmem [#allocation2], %s486
          %488 = dma.done %s484, 4096
        $region48: #{bottleneck_forward.7} parent=43 // pred_fallthru
          _
      $region44: #{bottleneck_forward.7} parent=5 // pred_fallthru
        _
    $region6: #{bottleneck_forward.7} parent=1 // loop_footer
      %s17 = sadd.s32 1, %s13
    $region7: #{bottleneck_forward.7} parent=1 // loop_footer_branch
      %12 = sbr.rel target = $region3
    $region8: #{bottleneck_forward.7} parent=1 // loop_exit
      _
    %489 = vsyncpa [#allocation3], 1
    %s490 = scalar_lea.sflag [#allocation3], 1
    %491 = vsyncpa %s490, 1

// kernel: bottleneck_forward.6
$region0: #{bottleneck_forward.6}
  #allocation0 [shape = 'u32[]', space=smem, size = 0x4, offset = 0x4, fixed_abs, tag = 'smem constant byte address 0x4 - core index']
  #allocation1 [shape = 'u32[144,128]{1,0:T(1,128)}', space=vmem, size = 0x12000, scoped, tag = 'internal scratch']
  %s0 = inlined_call_operand.vmem [shape: f32[2,16,16,32], index: 0, kind: input, shape index: {}]
  %s1 = inlined_call_operand.vmem [shape: f32[1,32], index: 1, kind: input, shape index: {}]
  %s2 = inlined_call_operand.vmem [shape: f32[1,32], index: 2, kind: input, shape index: {}]
  %s3 = inlined_call_operand.vmem [shape: bf16[32,128], index: 3, kind: input, shape index: {}]
  %s4 = inlined_call_operand.vmem [shape: f32[2,16,16,128], index: 4, kind: output, shape index: {0}]
  %s5 = inlined_call_operand.vmem [shape: f32[2,2,128], index: 5, kind: output, shape index: {1}]
  %6 = xla_tuple %s4, %s5
  %s7 = sld [smem:[#allocation0]]
  $region57: #{bottleneck_forward.6} parent=0
    _
  %s9 = ssub.s32 1, %s7
  %s10 = scalar_select 0, %s9, %s7
  loop: start=0, step=1, limit=4
  $region2: #{bottleneck_forward.6} parent=0 // loop_pre_header
    _
  $region3: #{bottleneck_forward.6} parent=0 // loop_header
    %s12 = sphi 0, %s16
    %p13 = scmp.ge.s32.totalorder %s12, 4
    %s22 = sphi 0, %s24
    %s25 = sphi 0, %s22
    %s26 = sphi 0, %s25
    %s42 = sphi 0, %s26
    %s46 = sphi 0, %s46
    %s48 = sphi 0, %s46
    %s49 = sphi 0, %s48
    %s63 = sphi 0, %s49
    %s67 = sphi 0, %s67
    %s69 = sphi 0, %s67
    %s70 = sphi 0, %s69
    %s84 = sphi 0, %s70
    %s88 = sphi 0, %s88
    %s90 = sphi 0, %s88
    %s91 = sphi 0, %s90
    %s105 = sphi 0, %s91
    %s111 = sphi 0, %s113
    %s114 = sphi 0, %s111
    %s115 = sphi 0, %s114
    %s131 = sphi 0, %s115
    %s137 = sphi 0, %s139
    %s140 = sphi 0, %s137
    %s141 = sphi 0, %s140
    %s157 = sphi 0, %s141
  $region4: #{bottleneck_forward.6} parent=0 // loop_header_branch
    %15 = sbr.rel (%p13) target = $region8
  $region5: #{bottleneck_forward.6} parent=0 // loop_body
    %s17 = ssub.s32 %s12, 1
    %s18 = ssub.s32 %s12, 2
    %s19 = sadd.s32 %s12, 1
    %s20 = ssub.s32 %s12, %s19
    %p21 = scmp.eq.s32.totalorder %s20, 0
    %s23 = sadd.s32 %s22, 1
    %s24 = scalar_select %p21, %s22, %s23
    %p27 = pneg %p21
    %p28 = scmp.eq.s32.totalorder %s12, 1
    %p29 = por %p27, %p28
    %p30 = scmp.ne.s32.totalorder %s22, %s25
    %p31 = scmp.eq.s32.totalorder %s12, 0
    %p32 = por %p30, %p31
    %p33 = scmp.ne.s32.totalorder %s22, %s25
    %p34 = scmp.eq.s32.totalorder %s17, 1
    %p35 = por %p33, %p34
    %p36 = scmp.ne.s32.totalorder %s25, %s26
    %p37 = scmp.eq.s32.totalorder %s17, 0
    %p38 = por %p36, %p37
    %p39 = scmp.ne.s32.totalorder %s25, %s26
    %p40 = scmp.eq.s32.totalorder %s18, 1
    %p41 = por %p39, %p40
    %p43 = scmp.ne.s32.totalorder %s26, %s42
    %p44 = scmp.eq.s32.totalorder %s18, 0
    %p45 = por %p43, %p44
    %s47 = sadd.s32 %s46, 1
    %p50 = scmp.eq.s32.totalorder %s12, 1
    %p51 = scmp.ne.s32.totalorder %s46, %s48
    %p52 = scmp.eq.s32.totalorder %s12, 0
    %p53 = por %p51, %p52
    %p54 = scmp.ne.s32.totalorder %s46, %s48
    %p55 = scmp.eq.s32.totalorder %s17, 1
    %p56 = por %p54, %p55
    %p57 = scmp.ne.s32.totalorder %s48, %s49
    %p58 = scmp.eq.s32.totalorder %s17, 0
    %p59 = por %p57, %p58
    %p60 = scmp.ne.s32.totalorder %s48, %s49
    %p61 = scmp.eq.s32.totalorder %s18, 1
    %p62 = por %p60, %p61
    %p64 = scmp.ne.s32.totalorder %s49, %s63
    %p65 = scmp.eq.s32.totalorder %s18, 0
    %p66 = por %p64, %p65
    %s68 = sadd.s32 %s67, 1
    %p71 = scmp.eq.s32.totalorder %s12, 1
    %p72 = scmp.ne.s32.totalorder %s67, %s69
    %p73 = scmp.eq.s32.totalorder %s12, 0
    %p74 = por %p72, %p73
    %p75 = scmp.ne.s32.totalorder %s67, %s69
    %p76 = scmp.eq.s32.totalorder %s17, 1
    %p77 = por %p75, %p76
    %p78 = scmp.ne.s32.totalorder %s69, %s70
    %p79 = scmp.eq.s32.totalorder %s17, 0
    %p80 = por %p78, %p79
    %p81 = scmp.ne.s32.totalorder %s69, %s70
    %p82 = scmp.eq.s32.totalorder %s18, 1
    %p83 = por %p81, %p82
    %p85 = scmp.ne.s32.totalorder %s70, %s84
    %p86 = scmp.eq.s32.totalorder %s18, 0
    %p87 = por %p85, %p86
    %s89 = sadd.s32 %s88, 1
    %p92 = scmp.eq.s32.totalorder %s12, 1
    %p93 = scmp.ne.s32.totalorder %s88, %s90
    %p94 = scmp.eq.s32.totalorder %s12, 0
    %p95 = por %p93, %p94
    %p96 = scmp.ne.s32.totalorder %s88, %s90
    %p97 = scmp.eq.s32.totalorder %s17, 1
    %p98 = por %p96, %p97
    %p99 = scmp.ne.s32.totalorder %s90, %s91
    %p100 = scmp.eq.s32.totalorder %s17, 0
    %p101 = por %p99, %p100
    %p102 = scmp.ne.s32.totalorder %s90, %s91
    %p103 = scmp.eq.s32.totalorder %s18, 1
    %p104 = por %p102, %p103
    %p106 = scmp.ne.s32.totalorder %s91, %s105
    %p107 = scmp.eq.s32.totalorder %s18, 0
    %p108 = por %p106, %p107
    %s109 = ssub.s32 %s12, %s19
    %p110 = scmp.eq.s32.totalorder %s109, 0
    %s112 = sadd.s32 %s111, 1
    %s113 = scalar_select %p110, %s111, %s112
    %p116 = pneg %p110
    %p117 = scmp.eq.s32.totalorder %s12, 1
    %p118 = por %p116, %p117
    %p119 = scmp.ne.s32.totalorder %s111, %s114
    %p120 = scmp.eq.s32.totalorder %s12, 0
    %p121 = por %p119, %p120
    %p122 = scmp.ne.s32.totalorder %s111, %s114
    %p123 = scmp.eq.s32.totalorder %s17, 1
    %p124 = por %p122, %p123
    %p125 = scmp.ne.s32.totalorder %s114, %s115
    %p126 = scmp.eq.s32.totalorder %s17, 0
    %p127 = por %p125, %p126
    %p128 = scmp.ne.s32.totalorder %s114, %s115
    %p129 = scmp.eq.s32.totalorder %s18, 1
    %p130 = por %p128, %p129
    %p132 = scmp.ne.s32.totalorder %s115, %s131
    %p133 = scmp.eq.s32.totalorder %s18, 0
    %p134 = por %p132, %p133
    %s135 = ssub.s32 %s12, %s19
    %p136 = scmp.eq.s32.totalorder %s135, 0
    %s138 = sadd.s32 %s137, 1
    %s139 = scalar_select %p136, %s137, %s138
    %p142 = pneg %p136
    %p143 = scmp.eq.s32.totalorder %s12, 1
    %p144 = por %p142, %p143
    %p145 = scmp.ne.s32.totalorder %s137, %s140
    %p146 = scmp.eq.s32.totalorder %s12, 0
    %p147 = por %p145, %p146
    %p148 = scmp.ne.s32.totalorder %s137, %s140
    %p149 = scmp.eq.s32.totalorder %s17, 1
    %p150 = por %p148, %p149
    %p151 = scmp.ne.s32.totalorder %s140, %s141
    %p152 = scmp.eq.s32.totalorder %s17, 0
    %p153 = por %p151, %p152
    %p154 = scmp.ne.s32.totalorder %s140, %s141
    %p155 = scmp.eq.s32.totalorder %s18, 1
    %p156 = por %p154, %p155
    %p158 = scmp.ne.s32.totalorder %s141, %s157
    %p159 = scmp.eq.s32.totalorder %s18, 0
    %p160 = por %p158, %p159
    %p161 = scmp.le.s32.totalorder 1, %s12
    %p162 = scmp.lt.s32.totalorder %s12, 3
    %p163 = pnand %p161, %p162
    %p164 = pneg %p163
    // Predicated region
    $region9: #{bottleneck_forward.6} parent=5 // pred_check
      _
    $region10: #{bottleneck_forward.6} parent=5 // pred_check_branch
      %166 = sbr.rel (%p163) target = $region12
    $region11: #{bottleneck_forward.6} parent=5 // pred_region
      %s167 = ssub.s32 %s12, 1
      // Predicated region
      $region13: #{bottleneck_forward.6} parent=11 // pred_check
        %p168 = pneg %p59
      $region14: #{bottleneck_forward.6} parent=11 // pred_check_branch
        %170 = sbr.rel (%p168) target = $region16
      $region15: #{bottleneck_forward.6} parent=11 // pred_region
        _
      $region16: #{bottleneck_forward.6} parent=11 // pred_fallthru
        _
      // Predicated region
      $region17: #{bottleneck_forward.6} parent=11 // pred_check
        %p171 = pneg %p80
      $region18: #{bottleneck_forward.6} parent=11 // pred_check_branch
        %173 = sbr.rel (%p171) target = $region20
      $region19: #{bottleneck_forward.6} parent=11 // pred_region
        _
      $region20: #{bottleneck_forward.6} parent=11 // pred_fallthru
        _
      // Predicated region
      $region21: #{bottleneck_forward.6} parent=11 // pred_check
        %p174 = pneg %p101
      $region22: #{bottleneck_forward.6} parent=11 // pred_check_branch
        %176 = sbr.rel (%p174) target = $region24
      $region23: #{bottleneck_forward.6} parent=11 // pred_region
        _
      $region24: #{bottleneck_forward.6} parent=11 // pred_fallthru
        _
    $region12: #{bottleneck_forward.6} parent=5 // pred_fallthru
      _
    %p177 = scmp.lt.s32.totalorder %s12, 2
    // Predicated region
    $region25: #{bottleneck_forward.6} parent=5 // pred_check
      %p178 = pneg %p177
    $region26: #{bottleneck_forward.6} parent=5 // pred_check_branch
      %180 = sbr.rel (%p178) target = $region28
    $region27: #{bottleneck_forward.6} parent=5 // pred_region
      // Predicated region
      $region29: #{bottleneck_forward.6} parent=27 // pred_check
        %p181 = pneg %p32
      $region30: #{bottleneck_forward.6} parent=27 // pred_check_branch
        %183 = sbr.rel (%p181) target = $region32
      $region31: #{bottleneck_forward.6} parent=27 // pred_region
        %p184 = scmp.lt.s32.totalorder %s12, 1
        %s185 = scalar_select %p184, %s12, 1
        %s186 = smul.addr %s185, 32
        %s187 = smul.addr %s186, 8
        %s188 = scalar_lea.vmem %s0, %s187
      $region32: #{bottleneck_forward.6} parent=27 // pred_fallthru
        _
    $region28: #{bottleneck_forward.6} parent=5 // pred_fallthru
      _
    %p189 = scmp.le.s32.totalorder 1, %s12
    %p190 = scmp.lt.s32.totalorder %s12, 3
    %p191 = pnand %p189, %p190
    %p192 = pneg %p191
    // Predicated region
    $region33: #{bottleneck_forward.6} parent=5 // pred_check
      _
    $region34: #{bottleneck_forward.6} parent=5 // pred_check_branch
      %194 = sbr.rel (%p191) target = $region36
    $region35: #{bottleneck_forward.6} parent=5 // pred_region
      %s195 = ssub.s32 %s12, 1
      %p196 = scmp.lt.s32.totalorder %s17, 1
      %s197 = scalar_select %p196, %s17, 1
      %s198 = smul.addr %s197, 32
      %s199 = smul.addr %s198, 8
      %s200 = scalar_lea.vmem %s0, %s199
      %p201 = pneg %p38
      %p202 = pneg %p35
      %p203 = pneg %p59
      %p204 = pneg %p56
      %p205 = pneg %p80
      %p206 = pneg %p77
      %p207 = pneg %p101
      %p208 = pneg %p98
      %p209 = pneg %p127
      %p210 = pneg %p124
      %p211 = scmp.lt.s32.totalorder %s17, 1
      %s212 = scalar_select %p211, %s17, 1
      %s213 = smul.addr %s212, 32
      %s214 = smul.addr %s213, 8
      %s215 = scalar_lea.vmem %s4, %s214
      %p216 = pneg %p153
      %p217 = pneg %p150
      %p218 = scmp.lt.s32.totalorder %s17, 1
      %s219 = scalar_select %p218, %s17, 1
      %s220 = smul.addr %s219, 2
      %s221 = scalar_lea.vmem %s5, %s220
      %p222 = scmp.lt.s32.totalorder %s17, 1
      %s223 = scalar_select %p222, %s17, 1
      %s224 = smul.addr %s223, 32
      %s225 = smul.addr %s224, 8
      %s226 = scalar_lea.vmem %s0, %s225
      %p227 = scmp.lt.s32.totalorder %s17, 1
      %s228 = scalar_select %p227, %s17, 1
      %s229 = smul.addr %s228, 32
      %s230 = smul.addr %s229, 8
      %s231 = scalar_lea.vmem %s4, %s230
      %p232 = scmp.lt.s32.totalorder %s17, 1
      %s233 = scalar_select %p232, %s17, 1
      %s234 = smul.addr %s233, 2
      %s235 = scalar_lea.vmem %s5, %s234
      %v237 = vld [vmem:[%s226] sm:$0xff]
      %v238 = vld [vmem:[%s226 + $0x8] sm:$0xff]
      %v239 = vld [vmem:[%s226 + $0x10] sm:$0xff]
      %v240 = vld [vmem:[%s226 + $0x18] sm:$0xff]
      %v241 = vld [vmem:[%s226 + $0x20] sm:$0xff]
      %v242 = vld [vmem:[%s226 + $0x28] sm:$0xff]
      %v243 = vld [vmem:[%s226 + $0x30] sm:$0xff]
      %v244 = vld [vmem:[%s226 + $0x38] sm:$0xff]
      %v245 = vld [vmem:[%s226 + $0x40] sm:$0xff]
      %v246 = vld [vmem:[%s226 + $0x48] sm:$0xff]
      %v247 = vld [vmem:[%s226 + $0x50] sm:$0xff]
      %v248 = vld [vmem:[%s226 + $0x58] sm:$0xff]
      %v249 = vld [vmem:[%s226 + $0x60] sm:$0xff]
      %v250 = vld [vmem:[%s226 + $0x68] sm:$0xff]
      %v251 = vld [vmem:[%s226 + $0x70] sm:$0xff]
      %v252 = vld [vmem:[%s226 + $0x78] sm:$0xff]
      %v253 = vld [vmem:[%s226 + $0x80] sm:$0xff]
      %v254 = vld [vmem:[%s226 + $0x88] sm:$0xff]
      %v255 = vld [vmem:[%s226 + $0x90] sm:$0xff]
      %v256 = vld [vmem:[%s226 + $0x98] sm:$0xff]
      %v257 = vld [vmem:[%s226 + $0xa0] sm:$0xff]
      %v258 = vld [vmem:[%s226 + $0xa8] sm:$0xff]
      %v259 = vld [vmem:[%s226 + $0xb0] sm:$0xff]
      %v260 = vld [vmem:[%s226 + $0xb8] sm:$0xff]
      %v261 = vld [vmem:[%s226 + $0xc0] sm:$0xff]
      %v262 = vld [vmem:[%s226 + $0xc8] sm:$0xff]
      %v263 = vld [vmem:[%s226 + $0xd0] sm:$0xff]
      %v264 = vld [vmem:[%s226 + $0xd8] sm:$0xff]
      %v265 = vld [vmem:[%s226 + $0xe0] sm:$0xff]
      %v266 = vld [vmem:[%s226 + $0xe8] sm:$0xff]
      %v267 = vld [vmem:[%s226 + $0xf0] sm:$0xff]
      %v268 = vld [vmem:[%s226 + $0xf8] sm:$0xff]
      %v269 = vld [vmem:[%s1] sm:$0x1]
      %v271 = vlaneseq
      %v272 = vshrl.u32 %v271, 7
      %v273 = vsub.s32 0, %v272
      %v274 = vrot.slane %v269, %v273
      %v276 = vmul.f32 %v237, %v274
      %v277 = vmul.f32 %v238, %v274
      %v278 = vmul.f32 %v239, %v274
      %v279 = vmul.f32 %v240, %v274
      %v280 = vmul.f32 %v241, %v274
      %v281 = vmul.f32 %v242, %v274
      %v282 = vmul.f32 %v243, %v274
      %v283 = vmul.f32 %v244, %v274
      %v284 = vmul.f32 %v245, %v274
      %v285 = vmul.f32 %v246, %v274
      %v286 = vmul.f32 %v247, %v274
      %v287 = vmul.f32 %v248, %v274
      %v288 = vmul.f32 %v249, %v274
      %v289 = vmul.f32 %v250, %v274
      %v290 = vmul.f32 %v251, %v274
      %v291 = vmul.f32 %v252, %v274
      %v292 = vmul.f32 %v253, %v274
      %v293 = vmul.f32 %v254, %v274
      %v294 = vmul.f32 %v255, %v274
      %v295 = vmul.f32 %v256, %v274
      %v296 = vmul.f32 %v257, %v274
      %v297 = vmul.f32 %v258, %v274
      %v298 = vmul.f32 %v259, %v274
      %v299 = vmul.f32 %v260, %v274
      %v300 = vmul.f32 %v261, %v274
      %v301 = vmul.f32 %v262, %v274
      %v302 = vmul.f32 %v263, %v274
      %v303 = vmul.f32 %v264, %v274
      %v304 = vmul.f32 %v265, %v274
      %v305 = vmul.f32 %v266, %v274
      %v306 = vmul.f32 %v267, %v274
      %v307 = vmul.f32 %v268, %v274
      %v308 = vld [vmem:[%s2] sm:$0x1]
      %v310 = vlaneseq
      %v311 = vshrl.u32 %v310, 7
      %v312 = vsub.s32 0, %v311
      %v313 = vrot.slane %v308, %v312
      %v315 = vadd.f32 %v276, %v313
      %v316 = vadd.f32 %v277, %v313
      %v317 = vadd.f32 %v278, %v313
      %v318 = vadd.f32 %v279, %v313
      %v319 = vadd.f32 %v280, %v313
      %v320 = vadd.f32 %v281, %v313
      %v321 = vadd.f32 %v282, %v313
      %v322 = vadd.f32 %v283, %v313
      %v323 = vadd.f32 %v284, %v313
      %v324 = vadd.f32 %v285, %v313
      %v325 = vadd.f32 %v286, %v313
      %v326 = vadd.f32 %v287, %v313
      %v327 = vadd.f32 %v288, %v313
      %v328 = vadd.f32 %v289, %v313
      %v329 = vadd.f32 %v290, %v313
      %v330 = vadd.f32 %v291, %v313
      %v331 = vadd.f32 %v292, %v313
      %v332 = vadd.f32 %v293, %v313
      %v333 = vadd.f32 %v294, %v313
      %v334 = vadd.f32 %v295, %v313
      %v335 = vadd.f32 %v296, %v313
      %v336 = vadd.f32 %v297, %v313
      %v337 = vadd.f32 %v298, %v313
      %v338 = vadd.f32 %v299, %v313
      %v339 = vadd.f32 %v300, %v313
      %v340 = vadd.f32 %v301, %v313
      %v341 = vadd.f32 %v302, %v313
      %v342 = vadd.f32 %v303, %v313
      %v343 = vadd.f32 %v304, %v313
      %v344 = vadd.f32 %v305, %v313
      %v345 = vadd.f32 %v306, %v313
      %v346 = vadd.f32 %v307, %v313
      %v347 = vmax.f32 %v315, 0.0
      %v348 = vmax.f32 %v316, 0.0
      %v349 = vmax.f32 %v317, 0.0
      %v350 = vmax.f32 %v318, 0.0
      %v351 = vmax.f32 %v319, 0.0
      %v352 = vmax.f32 %v320, 0.0
      %v353 = vmax.f32 %v321, 0.0
      %v354 = vmax.f32 %v322, 0.0
      %v355 = vmax.f32 %v323, 0.0
      %v356 = vmax.f32 %v324, 0.0
      %v357 = vmax.f32 %v325, 0.0
      %v358 = vmax.f32 %v326, 0.0
      %v359 = vmax.f32 %v327, 0.0
      %v360 = vmax.f32 %v328, 0.0
      %v361 = vmax.f32 %v329, 0.0
      %v362 = vmax.f32 %v330, 0.0
      %v363 = vmax.f32 %v331, 0.0
      %v364 = vmax.f32 %v332, 0.0
      %v365 = vmax.f32 %v333, 0.0
      %v366 = vmax.f32 %v334, 0.0
      %v367 = vmax.f32 %v335, 0.0
      %v368 = vmax.f32 %v336, 0.0
      %v369 = vmax.f32 %v337, 0.0
      %v370 = vmax.f32 %v338, 0.0
      %v371 = vmax.f32 %v339, 0.0
      %v372 = vmax.f32 %v340, 0.0
      %v373 = vmax.f32 %v341, 0.0
      %v374 = vmax.f32 %v342, 0.0
      %v375 = vmax.f32 %v343, 0.0
      %v376 = vmax.f32 %v344, 0.0
      %v377 = vmax.f32 %v345, 0.0
      %v378 = vmax.f32 %v346, 0.0
      %v379 = vpack.c.bf16 %v348, %v347
      %v380 = vpack.c.bf16 %v350, %v349
      %v381 = vpack.c.bf16 %v352, %v351
      %v382 = vpack.c.bf16 %v354, %v353
      %v383 = vpack.c.bf16 %v356, %v355
      %v384 = vpack.c.bf16 %v358, %v357
      %v385 = vpack.c.bf16 %v360, %v359
      %v386 = vpack.c.bf16 %v362, %v361
      %v387 = vpack.c.bf16 %v364, %v363
      %v388 = vpack.c.bf16 %v366, %v365
      %v389 = vpack.c.bf16 %v368, %v367
      %v390 = vpack.c.bf16 %v370, %v369
      %v391 = vpack.c.bf16 %v372, %v371
      %v392 = vpack.c.bf16 %v374, %v373
      %v393 = vpack.c.bf16 %v376, %v375
      %v394 = vpack.c.bf16 %v378, %v377
      %v395 = vld [vmem:[%s3] sm:$0xf]
      %v396 = vld [vmem:[%s3 + $0x4] sm:$0xf]
      %v397 = vld [vmem:[%s3 + $0x8] sm:$0xf]
      %v398 = vld [vmem:[%s3 + $0xc] sm:$0xf]
      %v403 = vunpack.c.l.b16 %v395
      %v404 = vunpack.c.l.b16 %v396
      %v405 = vunpack.c.l.b16 %v397
      %v406 = vunpack.c.l.b16 %v398
      %v407 = vpack.c.b16 %v404, %v403
      %v408 = vpack.c.b16 %v406, %v405
      %vm411 = vcmask 261120
      %v413 = vsel %vm411, %v379, 0
      %v416 = vsel %vm411, %v380, 0
      %v419 = vsel %vm411, %v381, 0
      %v422 = vsel %vm411, %v382, 0
      %v425 = vsel %vm411, %v383, 0
      %v428 = vsel %vm411, %v384, 0
      %v431 = vsel %vm411, %v385, 0
      %v434 = vsel %vm411, %v386, 0
      %v437 = vsel %vm411, %v387, 0
      %v440 = vsel %vm411, %v388, 0
      %v443 = vsel %vm411, %v389, 0
      %v446 = vsel %vm411, %v390, 0
      %v449 = vsel %vm411, %v391, 0
      %v452 = vsel %vm411, %v392, 0
      %v455 = vsel %vm411, %v393, 0
      %v458 = vsel %vm411, %v394, 0
      %460 = vmatprep.subr.bf16.mxu0 0
      %461 = vmatpush1.bf16.msra.mxu0 %v407
      %462 = vmatprep.subr.bf16.mxu0 0
      %463 = vmatpush1.bf16.msra.mxu0 %v408
      %464 = vmatprep.subr.bf16.mxu0 0
      %465 = vmatpush1.bf16.msra.mxu0 0
      %466 = vmatprep.subr.bf16.mxu0 0
      %467 = vmatpush1.bf16.msra.mxu0 0
      %468 = vmatprep.subr.bf16.mxu0 0
      %469 = vmatpush1.bf16.msra.mxu0 0
      %470 = vmatprep.subr.bf16.mxu0 0
      %471 = vmatpush1.bf16.msra.mxu0 0
      %472 = vmatprep.subr.bf16.mxu0 0
      %473 = vmatpush1.bf16.msra.mxu0 0
      %474 = vmatprep.subr.bf16.mxu0 0
      %475 = vmatpush1.bf16.msra.mxu0 0
      %476 = vmatprep.subr.bf16.mxu0 0
      %477 = vmatpush1.bf16.msra.mxu0 0
      %478 = vmatprep.subr.bf16.mxu0 0
      %479 = vmatpush1.bf16.msra.mxu0 0
      %480 = vmatprep.subr.bf16.mxu0 0
      %481 = vmatpush1.bf16.msra.mxu0 0
      %482 = vmatprep.subr.bf16.mxu0 0
      %483 = vmatpush1.bf16.msra.mxu0 0
      %484 = vmatprep.subr.bf16.mxu0 0
      %485 = vmatpush1.bf16.msra.mxu0 0
      %486 = vmatprep.subr.bf16.mxu0 0
      %487 = vmatpush1.bf16.msra.mxu0 0
      %488 = vmatprep.subr.bf16.mxu0 0
      %489 = vmatpush1.bf16.msra.mxu0 0
      %490 = vmatprep.subr.bf16.mxu0 0
      %491 = vmatpush1.bf16.msra.mxu0 0
      %492 = vmatprep.mubr.bf16.mxu0 0
      %493 = vmatmul.mubr.bf16.gmra.mrb[0].mxu0 %v413
      %v494 = vpop.f32.mrb[0].mxu0
      %v495 = vadd.f32 0.0, %v494
      %v496 = vpop.f32.mrb[0].mxu0
      %v497 = vpop.f32.mrb[0].mxu0
      %v498 = vadd.f32 0.0, %v497
      %v499 = vpop.f32.mrb[0].mxu0
      %500 = vmatprep.mubr.bf16.mxu0 0
      %501 = vmatmul.mubr.bf16.gmra.mrb[0].mxu0 %v416
      %v502 = vpop.f32.mrb[0].mxu0
      %v503 = vadd.f32 0.0, %v502
      %v504 = vpop.f32.mrb[0].mxu0
      %v505 = vpop.f32.mrb[0].mxu0
      %v506 = vadd.f32 0.0, %v505
      %v507 = vpop.f32.mrb[0].mxu0
      %508 = vmatprep.mubr.bf16.mxu0 0
      %509 = vmatmul.mubr.bf16.gmra.mrb[0].mxu0 %v419
      %v510 = vpop.f32.mrb[0].mxu0
      %v511 = vadd.f32 0.0, %v510
      %v512 = vpop.f32.mrb[0].mxu0
      %v513 = vpop.f32.mrb[0].mxu0
      %v514 = vadd.f32 0.0, %v513
      %v515 = vpop.f32.mrb[0].mxu0
      %516 = vmatprep.mubr.bf16.mxu0 0
      %517 = vmatmul.mubr.bf16.gmra.mrb[0].mxu0 %v422
      %v518 = vpop.f32.mrb[0].mxu0
      %v519 = vadd.f32 0.0, %v518
      %v520 = vpop.f32.mrb[0].mxu0
      %v521 = vpop.f32.mrb[0].mxu0
      %v522 = vadd.f32 0.0, %v521
      %v523 = vpop.f32.mrb[0].mxu0
      %524 = vmatprep.mubr.bf16.mxu0 0
      %525 = vmatmul.mubr.bf16.gmra.mrb[0].mxu0 %v425
      %v526 = vpop.f32.mrb[0].mxu0
      %v527 = vadd.f32 0.0, %v526
      %v528 = vpop.f32.mrb[0].mxu0
      %v529 = vpop.f32.mrb[0].mxu0
      %v530 = vadd.f32 0.0, %v529
      %v531 = vpop.f32.mrb[0].mxu0
      %532 = vmatprep.mubr.bf16.mxu0 0
      %533 = vmatmul.mubr.bf16.gmra.mrb[0].mxu0 %v428
      %v534 = vpop.f32.mrb[0].mxu0
      %v535 = vadd.f32 0.0, %v534
      %v536 = vpop.f32.mrb[0].mxu0
      %v537 = vpop.f32.mrb[0].mxu0
      %v538 = vadd.f32 0.0, %v537
      %v539 = vpop.f32.mrb[0].mxu0
      %540 = vmatprep.mubr.bf16.mxu0 0
      %541 = vmatmul.mubr.bf16.gmra.mrb[0].mxu0 %v431
      %v542 = vpop.f32.mrb[0].mxu0
      %v543 = vadd.f32 0.0, %v542
      %v544 = vpop.f32.mrb[0].mxu0
      %v545 = vpop.f32.mrb[0].mxu0
      %v546 = vadd.f32 0.0, %v545
      %v547 = vpop.f32.mrb[0].mxu0
      %548 = vmatprep.mubr.bf16.mxu0 0
      %549 = vmatmul.mubr.bf16.gmra.mrb[0].mxu0 %v434
      %v550 = vpop.f32.mrb[0].mxu0
      %v551 = vadd.f32 0.0, %v550
      %v552 = vpop.f32.mrb[0].mxu0
      %v553 = vpop.f32.mrb[0].mxu0
      %v554 = vadd.f32 0.0, %v553
      %v555 = vpop.f32.mrb[0].mxu0
      %556 = vmatprep.mubr.bf16.mxu0 0
      %557 = vmatmul.mubr.bf16.gmra.mrb[0].mxu0 %v437
      %v558 = vpop.f32.mrb[0].mxu0
      %v559 = vadd.f32 0.0, %v558
      %v560 = vpop.f32.mrb[0].mxu0
      %v561 = vpop.f32.mrb[0].mxu0
      %v562 = vadd.f32 0.0, %v561
      %v563 = vpop.f32.mrb[0].mxu0
      %564 = vmatprep.mubr.bf16.mxu0 0
      %565 = vmatmul.mubr.bf16.gmra.mrb[0].mxu0 %v440
      %v566 = vpop.f32.mrb[0].mxu0
      %v567 = vadd.f32 0.0, %v566
      %v568 = vpop.f32.mrb[0].mxu0
      %v569 = vpop.f32.mrb[0].mxu0
      %v570 = vadd.f32 0.0, %v569
      %v571 = vpop.f32.mrb[0].mxu0
      %572 = vmatprep.mubr.bf16.mxu0 0
      %573 = vmatmul.mubr.bf16.gmra.mrb[0].mxu0 %v443
      %v574 = vpop.f32.mrb[0].mxu0
      %v575 = vadd.f32 0.0, %v574
      %v576 = vpop.f32.mrb[0].mxu0
      %v577 = vpop.f32.mrb[0].mxu0
      %v578 = vadd.f32 0.0, %v577
      %v579 = vpop.f32.mrb[0].mxu0
      %580 = vmatprep.mubr.bf16.mxu0 0
      %581 = vmatmul.mubr.bf16.gmra.mrb[0].mxu0 %v446
      %v582 = vpop.f32.mrb[0].mxu0
      %v583 = vadd.f32 0.0, %v582
      %v584 = vpop.f32.mrb[0].mxu0
      %v585 = vpop.f32.mrb[0].mxu0
      %v586 = vadd.f32 0.0, %v585
      %v587 = vpop.f32.mrb[0].mxu0
      %588 = vmatprep.mubr.bf16.mxu0 0
      %589 = vmatmul.mubr.bf16.gmra.mrb[0].mxu0 %v449
      %v590 = vpop.f32.mrb[0].mxu0
      %v591 = vadd.f32 0.0, %v590
      %v592 = vpop.f32.mrb[0].mxu0
      %v593 = vpop.f32.mrb[0].mxu0
      %v594 = vadd.f32 0.0, %v593
      %v595 = vpop.f32.mrb[0].mxu0
      %596 = vmatprep.mubr.bf16.mxu0 0
      %597 = vmatmul.mubr.bf16.gmra.mrb[0].mxu0 %v452
      %v598 = vpop.f32.mrb[0].mxu0
      %v599 = vadd.f32 0.0, %v598
      %v600 = vpop.f32.mrb[0].mxu0
      %v601 = vpop.f32.mrb[0].mxu0
      %v602 = vadd.f32 0.0, %v601
      %v603 = vpop.f32.mrb[0].mxu0
      %604 = vmatprep.mubr.bf16.mxu0 0
      %605 = vmatmul.mubr.bf16.gmra.mrb[0].mxu0 %v455
      %v606 = vpop.f32.mrb[0].mxu0
      %v607 = vadd.f32 0.0, %v606
      %v608 = vpop.f32.mrb[0].mxu0
      %v609 = vpop.f32.mrb[0].mxu0
      %v610 = vadd.f32 0.0, %v609
      %v611 = vpop.f32.mrb[0].mxu0
      %612 = vmatprep.mubr.bf16.mxu0 0
      %613 = vmatmul.mubr.bf16.gmra.mrb[0].mxu0 %v458
      %v614 = vpop.f32.mrb[0].mxu0
      %v615 = vadd.f32 0.0, %v614
      %v616 = vpop.f32.mrb[0].mxu0
      %v617 = vpop.f32.mrb[0].mxu0
      %v618 = vadd.f32 0.0, %v617
      %v619 = vpop.f32.mrb[0].mxu0
      %620 = vdwg.mxu0
      %621 = vst [vmem:[%s231] sm:$0xff] %v495
      %622 = vst [vmem:[%s231 + $0x8] sm:$0xff] %v498
      %623 = vst [vmem:[%s231 + $0x10] sm:$0xff] %v503
      %624 = vst [vmem:[%s231 + $0x18] sm:$0xff] %v506
      %625 = vst [vmem:[%s231 + $0x20] sm:$0xff] %v511
      %626 = vst [vmem:[%s231 + $0x28] sm:$0xff] %v514
      %627 = vst [vmem:[%s231 + $0x30] sm:$0xff] %v519
      %628 = vst [vmem:[%s231 + $0x38] sm:$0xff] %v522
      %629 = vst [vmem:[%s231 + $0x40] sm:$0xff] %v527
      %630 = vst [vmem:[%s231 + $0x48] sm:$0xff] %v530
      %631 = vst [vmem:[%s231 + $0x50] sm:$0xff] %v535
      %632 = vst [vmem:[%s231 + $0x58] sm:$0xff] %v538
      %633 = vst [vmem:[%s231 + $0x60] sm:$0xff] %v543
      %634 = vst [vmem:[%s231 + $0x68] sm:$0xff] %v546
      %635 = vst [vmem:[%s231 + $0x70] sm:$0xff] %v551
      %636 = vst [vmem:[%s231 + $0x78] sm:$0xff] %v554
      %637 = vst [vmem:[%s231 + $0x80] sm:$0xff] %v559
      %638 = vst [vmem:[%s231 + $0x88] sm:$0xff] %v562
      %639 = vst [vmem:[%s231 + $0x90] sm:$0xff] %v567
      %640 = vst [vmem:[%s231 + $0x98] sm:$0xff] %v570
      %641 = vst [vmem:[%s231 + $0xa0] sm:$0xff] %v575
      %642 = vst [vmem:[%s231 + $0xa8] sm:$0xff] %v578
      %643 = vst [vmem:[%s231 + $0xb0] sm:$0xff] %v583
      %644 = vst [vmem:[%s231 + $0xb8] sm:$0xff] %v586
      %645 = vst [vmem:[%s231 + $0xc0] sm:$0xff] %v591
      %646 = vst [vmem:[%s231 + $0xc8] sm:$0xff] %v594
      %647 = vst [vmem:[%s231 + $0xd0] sm:$0xff] %v599
      %648 = vst [vmem:[%s231 + $0xd8] sm:$0xff] %v602
      %649 = vst [vmem:[%s231 + $0xe0] sm:$0xff] %v607
      %650 = vst [vmem:[%s231 + $0xe8] sm:$0xff] %v610
      %651 = vst [vmem:[%s231 + $0xf0] sm:$0xff] %v615
      %652 = vst [vmem:[%s231 + $0xf8] sm:$0xff] %v618
      %v653 = vadd.f32 %v495, %v498
      %v654 = vadd.f32 %v653, %v503
      %v655 = vadd.f32 %v654, %v506
      %v656 = vadd.f32 %v655, %v511
      %v657 = vadd.f32 %v656, %v514
      %v658 = vadd.f32 %v657, %v519
      %v659 = vadd.f32 %v658, %v522
      %v660 = vadd.f32 %v659, %v527
      %v661 = vadd.f32 %v660, %v530
      %v662 = vadd.f32 %v661, %v535
      %v663 = vadd.f32 %v662, %v538
      %v664 = vadd.f32 %v663, %v543
      %v665 = vadd.f32 %v664, %v546
      %v666 = vadd.f32 %v665, %v551
      %v667 = vadd.f32 %v666, %v554
      %v668 = vadd.f32 %v667, %v559
      %v669 = vadd.f32 %v668, %v562
      %v670 = vadd.f32 %v669, %v567
      %v671 = vadd.f32 %v670, %v570
      %v672 = vadd.f32 %v671, %v575
      %v673 = vadd.f32 %v672, %v578
      %v674 = vadd.f32 %v673, %v583
      %v675 = vadd.f32 %v674, %v586
      %v676 = vadd.f32 %v675, %v591
      %v677 = vadd.f32 %v676, %v594
      %v678 = vadd.f32 %v677, %v599
      %v679 = vadd.f32 %v678, %v602
      %v680 = vadd.f32 %v679, %v607
      %v681 = vadd.f32 %v680, %v610
      %v682 = vadd.f32 %v681, %v615
      %v683 = vadd.f32 %v682, %v618
      %v684 = vrot.slane %v683, 4
      %v685 = vadd.f32 %v683, %v684
      %v686 = vrot.slane %v685, 2
      %v687 = vadd.f32 %v685, %v686
      %v688 = vrot.slane %v687, 1
      %v689 = vadd.f32 %v687, %v688
      %690 = vst [vmem:[%s235] sm:$0x1] %v689
      %v691 = vmul.f32 %v495, %v495
      %v692 = vmul.f32 %v498, %v498
      %v693 = vmul.f32 %v503, %v503
      %v694 = vmul.f32 %v506, %v506
      %v695 = vmul.f32 %v511, %v511
      %v696 = vmul.f32 %v514, %v514
      %v697 = vmul.f32 %v519, %v519
      %v698 = vmul.f32 %v522, %v522
      %v699 = vmul.f32 %v527, %v527
      %v700 = vmul.f32 %v530, %v530
      %v701 = vmul.f32 %v535, %v535
      %v702 = vmul.f32 %v538, %v538
      %v703 = vmul.f32 %v543, %v543
      %v704 = vmul.f32 %v546, %v546
      %v705 = vmul.f32 %v551, %v551
      %v706 = vmul.f32 %v554, %v554
      %v707 = vmul.f32 %v559, %v559
      %v708 = vmul.f32 %v562, %v562
      %v709 = vmul.f32 %v567, %v567
      %v710 = vmul.f32 %v570, %v570
      %v711 = vmul.f32 %v575, %v575
      %v712 = vmul.f32 %v578, %v578
      %v713 = vmul.f32 %v583, %v583
      %v714 = vmul.f32 %v586, %v586
      %v715 = vmul.f32 %v591, %v591
      %v716 = vmul.f32 %v594, %v594
      %v717 = vmul.f32 %v599, %v599
      %v718 = vmul.f32 %v602, %v602
      %v719 = vmul.f32 %v607, %v607
      %v720 = vmul.f32 %v610, %v610
      %v721 = vmul.f32 %v615, %v615
      %v722 = vmul.f32 %v618, %v618
      %v723 = vadd.f32 %v691, %v692
      %v724 = vadd.f32 %v723, %v693
      %v725 = vadd.f32 %v724, %v694
      %v726 = vadd.f32 %v725, %v695
      %v727 = vadd.f32 %v726, %v696
      %v728 = vadd.f32 %v727, %v697
      %v729 = vadd.f32 %v728, %v698
      %v730 = vadd.f32 %v729, %v699
      %v731 = vadd.f32 %v730, %v700
      %v732 = vadd.f32 %v731, %v701
      %v733 = vadd.f32 %v732, %v702
      %v734 = vadd.f32 %v733, %v703
      %v735 = vadd.f32 %v734, %v704
      %v736 = vadd.f32 %v735, %v705
      %v737 = vadd.f32 %v736, %v706
      %v738 = vadd.f32 %v737, %v707
      %v739 = vadd.f32 %v738, %v708
      %v740 = vadd.f32 %v739, %v709
      %v741 = vadd.f32 %v740, %v710
      %v742 = vadd.f32 %v741, %v711
      %v743 = vadd.f32 %v742, %v712
      %v744 = vadd.f32 %v743, %v713
      %v745 = vadd.f32 %v744, %v714
      %v746 = vadd.f32 %v745, %v715
      %v747 = vadd.f32 %v746, %v716
      %v748 = vadd.f32 %v747, %v717
      %v749 = vadd.f32 %v748, %v718
      %v750 = vadd.f32 %v749, %v719
      %v751 = vadd.f32 %v750, %v720
      %v752 = vadd.f32 %v751, %v721
      %v753 = vadd.f32 %v752, %v722
      %v754 = vrot.slane %v753, 4
      %v755 = vadd.f32 %v753, %v754
      %v756 = vrot.slane %v755, 2
      %v757 = vadd.f32 %v755, %v756
      %v758 = vrot.slane %v757, 1
      %v759 = vadd.f32 %v757, %v758
      %760 = vst [vmem:[%s235 + $0x1] sm:$0x1] %v759
      %p761 = scmp.lt.s32.totalorder %s17, 1
      %s762 = scalar_select %p761, %s17, 1
      %s763 = smul.addr %s762, 32
      %s764 = smul.addr %s763, 8
      %s765 = scalar_lea.vmem %s4, %s764
      %p766 = scmp.lt.s32.totalorder %s17, 1
      %s767 = scalar_select %p766, %s17, 1
      %s768 = smul.addr %s767, 2
      %s769 = scalar_lea.vmem %s5, %s768
      // Predicated region
      $region37: #{bottleneck_forward.6} parent=35 // pred_check
        %p770 = pneg %p124
      $region38: #{bottleneck_forward.6} parent=35 // pred_check_branch
        %772 = sbr.rel (%p770) target = $region40
      $region39: #{bottleneck_forward.6} parent=35 // pred_region
        _
      $region40: #{bottleneck_forward.6} parent=35 // pred_fallthru
        _
      // Predicated region
      $region41: #{bottleneck_forward.6} parent=35 // pred_check
        %p773 = pneg %p150
      $region42: #{bottleneck_forward.6} parent=35 // pred_check_branch
        %775 = sbr.rel (%p773) target = $region44
      $region43: #{bottleneck_forward.6} parent=35 // pred_region
        _
      $region44: #{bottleneck_forward.6} parent=35 // pred_fallthru
        _
    $region36: #{bottleneck_forward.6} parent=5 // pred_fallthru
      _
    %p776 = scmp.le.s32.totalorder 2, %s12
    // Predicated region
    $region45: #{bottleneck_forward.6} parent=5 // pred_check
      %p777 = pneg %p776
    $region46: #{bottleneck_forward.6} parent=5 // pred_check_branch
      %779 = sbr.rel (%p777) target = $region48
    $region47: #{bottleneck_forward.6} parent=5 // pred_region
      %s780 = ssub.s32 %s12, 2
      // Predicated region
      $region49: #{bottleneck_forward.6} parent=47 // pred_check
        %p781 = pneg %p130
      $region50: #{bottleneck_forward.6} parent=47 // pred_check_branch
        %783 = sbr.rel (%p781) target = $region52
      $region51: #{bottleneck_forward.6} parent=47 // pred_region
        %p784 = scmp.lt.s32.totalorder %s18, 1
        %s785 = scalar_select %p784, %s18, 1
        %s786 = smul.addr %s785, 32
        %s787 = smul.addr %s786, 8
        %s788 = scalar_lea.vmem %s4, %s787
      $region52: #{bottleneck_forward.6} parent=47 // pred_fallthru
        _
      // Predicated region
      $region53: #{bottleneck_forward.6} parent=47 // pred_check
        %p789 = pneg %p156
      $region54: #{bottleneck_forward.6} parent=47 // pred_check_branch
        %791 = sbr.rel (%p789) target = $region56
      $region55: #{bottleneck_forward.6} parent=47 // pred_region
        %p792 = scmp.lt.s32.totalorder %s18, 1
        %s793 = scalar_select %p792, %s18, 1
        %s794 = smul.addr %s793, 2
        %s795 = scalar_lea.vmem %s5, %s794
      $region56: #{bottleneck_forward.6} parent=47 // pred_fallthru
        _
    $region48: #{bottleneck_forward.6} parent=5 // pred_fallthru
      _
  $region6: #{bottleneck_forward.6} parent=0 // loop_footer
    %s16 = sadd.s32 1, %s12
  $region7: #{bottleneck_forward.6} parent=0 // loop_footer_branch
    %11 = sbr.rel target = $region3
  $region8: #{bottleneck_forward.6} parent=0 // loop_exit
    _

// kernel: bottleneck_forward.4
$region0: #{bottleneck_forward.4}
  #allocation0 [shape = 'u32[]', space=smem, size = 0x4, offset = 0x4, fixed_abs, tag = 'smem constant byte address 0x4 - core index']
  #allocation1 [shape = 'u32[144,128]{1,0:T(1,128)}', space=vmem, size = 0x12000, scoped, tag = 'internal scratch']
  %s0 = inlined_call_operand.hbm [shape: f32[2,16,16,128], index: 0, kind: input, shape index: {}]
  %s1 = inlined_call_operand.vmem [shape: bf16[128,32], index: 1, kind: input, shape index: {}]
  %s2 = inlined_call_operand.vmem [shape: f32[2,16,16,32], index: 2, kind: output, shape index: {0}]
  %s3 = inlined_call_operand.vmem [shape: f32[2,2,32], index: 3, kind: output, shape index: {1}]
  %4 = xla_tuple %s2, %s3
  %s5 = sld [smem:[#allocation0]]
  $region53: #{bottleneck_forward.4} parent=0
    _
  %s7 = ssub.s32 1, %s5
  %s8 = scalar_select 0, %s7, %s5
  $region1: #{bottleneck_forward.4} parent=0
    #allocation2 [shape = 'u8[262144]{0}', space=vmem, size = 0x40000, scoped, tag = 'input window, operand 0']
    #allocation3 [shape = 's32[2]{0}', space=sflag, size = 0x8, scoped, tag = 'scoped memory for bottleneck_forward.4']
    %9 = vsyncpa [#allocation3], 0
    %s10 = scalar_lea.sflag [#allocation3], 1
    %11 = vsyncpa %s10, 0
    loop: start=0, step=1, limit=4
    $region2: #{bottleneck_forward.4} parent=1 // loop_pre_header
      _
    $region3: #{bottleneck_forward.4} parent=1 // loop_header
      %s13 = sphi 0, %s17
      %p14 = scmp.ge.s32.totalorder %s13, 4
      %s23 = sphi 0, %s25
      %s26 = sphi 0, %s23
      %s27 = sphi 0, %s26
      %s43 = sphi 0, %s27
      %s47 = sphi 0, %s47
      %s49 = sphi 0, %s47
      %s50 = sphi 0, %s49
      %s64 = sphi 0, %s50
      %s70 = sphi 0, %s72
      %s73 = sphi 0, %s70
      %s74 = sphi 0, %s73
      %s90 = sphi 0, %s74
      %s96 = sphi 0, %s98
      %s99 = sphi 0, %s96
      %s100 = sphi 0, %s99
      %s116 = sphi 0, %s100
    $region4: #{bottleneck_forward.4} parent=1 // loop_header_branch
      %16 = sbr.rel (%p14) target = $region8
    $region5: #{bottleneck_forward.4} parent=1 // loop_body
      %s18 = ssub.s32 %s13, 1
      %s19 = ssub.s32 %s13, 2
      %s20 = sadd.s32 %s13, 1
      %s21 = ssub.s32 %s13, %s20
      %p22 = scmp.eq.s32.totalorder %s21, 0
      %s24 = sadd.s32 %s23, 1
      %s25 = scalar_select %p22, %s23, %s24
      %p28 = pneg %p22
      %p29 = scmp.eq.s32.totalorder %s13, 1
      %p30 = por %p28, %p29
      %p31 = scmp.ne.s32.totalorder %s23, %s26
      %p32 = scmp.eq.s32.totalorder %s13, 0
      %p33 = por %p31, %p32
      %p34 = scmp.ne.s32.totalorder %s23, %s26
      %p35 = scmp.eq.s32.totalorder %s18, 1
      %p36 = por %p34, %p35
      %p37 = scmp.ne.s32.totalorder %s26, %s27
      %p38 = scmp.eq.s32.totalorder %s18, 0
      %p39 = por %p37, %p38
      %p40 = scmp.ne.s32.totalorder %s26, %s27
      %p41 = scmp.eq.s32.totalorder %s19, 1
      %p42 = por %p40, %p41
      %p44 = scmp.ne.s32.totalorder %s27, %s43
      %p45 = scmp.eq.s32.totalorder %s19, 0
      %p46 = por %p44, %p45
      %s48 = sadd.s32 %s47, 1
      %p51 = scmp.eq.s32.totalorder %s13, 1
      %p52 = scmp.ne.s32.totalorder %s47, %s49
      %p53 = scmp.eq.s32.totalorder %s13, 0
      %p54 = por %p52, %p53
      %p55 = scmp.ne.s32.totalorder %s47, %s49
      %p56 = scmp.eq.s32.totalorder %s18, 1
      %p57 = por %p55, %p56
      %p58 = scmp.ne.s32.totalorder %s49, %s50
      %p59 = scmp.eq.s32.totalorder %s18, 0
      %p60 = por %p58, %p59
      %p61 = scmp.ne.s32.totalorder %s49, %s50
      %p62 = scmp.eq.s32.totalorder %s19, 1
      %p63 = por %p61, %p62
      %p65 = scmp.ne.s32.totalorder %s50, %s64
      %p66 = scmp.eq.s32.totalorder %s19, 0
      %p67 = por %p65, %p66
      %s68 = ssub.s32 %s13, %s20
      %p69 = scmp.eq.s32.totalorder %s68, 0
      %s71 = sadd.s32 %s70, 1
      %s72 = scalar_select %p69, %s70, %s71
      %p75 = pneg %p69
      %p76 = scmp.eq.s32.totalorder %s13, 1
      %p77 = por %p75, %p76
      %p78 = scmp.ne.s32.totalorder %s70, %s73
      %p79 = scmp.eq.s32.totalorder %s13, 0
      %p80 = por %p78, %p79
      %p81 = scmp.ne.s32.totalorder %s70, %s73
      %p82 = scmp.eq.s32.totalorder %s18, 1
      %p83 = por %p81, %p82
      %p84 = scmp.ne.s32.totalorder %s73, %s74
      %p85 = scmp.eq.s32.totalorder %s18, 0
      %p86 = por %p84, %p85
      %p87 = scmp.ne.s32.totalorder %s73, %s74
      %p88 = scmp.eq.s32.totalorder %s19, 1
      %p89 = por %p87, %p88
      %p91 = scmp.ne.s32.totalorder %s74, %s90
      %p92 = scmp.eq.s32.totalorder %s19, 0
      %p93 = por %p91, %p92
      %s94 = ssub.s32 %s13, %s20
      %p95 = scmp.eq.s32.totalorder %s94, 0
      %s97 = sadd.s32 %s96, 1
      %s98 = scalar_select %p95, %s96, %s97
      %p101 = pneg %p95
      %p102 = scmp.eq.s32.totalorder %s13, 1
      %p103 = por %p101, %p102
      %p104 = scmp.ne.s32.totalorder %s96, %s99
      %p105 = scmp.eq.s32.totalorder %s13, 0
      %p106 = por %p104, %p105
      %p107 = scmp.ne.s32.totalorder %s96, %s99
      %p108 = scmp.eq.s32.totalorder %s18, 1
      %p109 = por %p107, %p108
      %p110 = scmp.ne.s32.totalorder %s99, %s100
      %p111 = scmp.eq.s32.totalorder %s18, 0
      %p112 = por %p110, %p111
      %p113 = scmp.ne.s32.totalorder %s99, %s100
      %p114 = scmp.eq.s32.totalorder %s19, 1
      %p115 = por %p113, %p114
      %p117 = scmp.ne.s32.totalorder %s100, %s116
      %p118 = scmp.eq.s32.totalorder %s19, 0
      %p119 = por %p117, %p118
      %p120 = scmp.le.s32.totalorder 1, %s13
      %p121 = scmp.lt.s32.totalorder %s13, 3
      %p122 = pnand %p120, %p121
      %p123 = pneg %p122
      // Predicated region
      $region9: #{bottleneck_forward.4} parent=5 // pred_check
        _
      $region10: #{bottleneck_forward.4} parent=5 // pred_check_branch
        %125 = sbr.rel (%p122) target = $region12
      $region11: #{bottleneck_forward.4} parent=5 // pred_region
        %s126 = ssub.s32 %s13, 1
        // Predicated region
        $region13: #{bottleneck_forward.4} parent=11 // pred_check
          %p127 = pneg %p60
        $region14: #{bottleneck_forward.4} parent=11 // pred_check_branch
          %129 = sbr.rel (%p127) target = $region16
        $region15: #{bottleneck_forward.4} parent=11 // pred_region
          _
        $region16: #{bottleneck_forward.4} parent=11 // pred_fallthru
          _
      $region12: #{bottleneck_forward.4} parent=5 // pred_fallthru
        _
      %p130 = scmp.lt.s32.totalorder %s13, 2
      // Predicated region
      $region17: #{bottleneck_forward.4} parent=5 // pred_check
        %p131 = pneg %p130
      $region18: #{bottleneck_forward.4} parent=5 // pred_check_branch
        %133 = sbr.rel (%p131) target = $region20
      $region19: #{bottleneck_forward.4} parent=5 // pred_region
        // Predicated region
        $region21: #{bottleneck_forward.4} parent=19 // pred_check
          %p134 = pneg %p33
        $region22: #{bottleneck_forward.4} parent=19 // pred_check_branch
          %136 = sbr.rel (%p134) target = $region24
        $region23: #{bottleneck_forward.4} parent=19 // pred_region
          %s137 = sand.u32 %s23, 1
          %s138 = scalar_lea.sflag [#allocation3], %s137
          %s139 = sand.u32 %s23, 1
          %s140 = smul.addr %s139, 256
          %s141 = scalar_lea.vmem [#allocation2], %s140
          %s143 = ssub.s32 4096, 4096
          %144 = vsyncadd %s138, %s143
          %s145 = smul.addr %s13, 32
          %s146 = smul.addr %s145, 128
          %s147 = scalar_lea.hbm %s0, %s146
          %s148 = sshll.u32 %s141, 4
          %s149 = int_to_ptr.vmem [resolvable:$true] %s148
          %154 = dma.hbm_to_vmem [thread:$0]  %s147, 4096, %s149, %s138, 128, 128, 8
        $region24: #{bottleneck_forward.4} parent=19 // pred_fallthru
          _
      $region20: #{bottleneck_forward.4} parent=5 // pred_fallthru
        _
      %p155 = scmp.le.s32.totalorder 1, %s13
      %p156 = scmp.lt.s32.totalorder %s13, 3
      %p157 = pnand %p155, %p156
      %p158 = pneg %p157
      // Predicated region
      $region25: #{bottleneck_forward.4} parent=5 // pred_check
        _
      $region26: #{bottleneck_forward.4} parent=5 // pred_check_branch
        %160 = sbr.rel (%p157) target = $region28
      $region27: #{bottleneck_forward.4} parent=5 // pred_region
        %s161 = ssub.s32 %s13, 1
        %s162 = sand.u32 %s26, 1
        %s163 = scalar_lea.sflag [#allocation3], %s162
        %s164 = sand.u32 %s26, 1
        %s165 = smul.addr %s164, 256
        %s166 = scalar_lea.vmem [#allocation2], %s165
        // Predicated region
        $region29: #{bottleneck_forward.4} parent=27 // pred_check
          %p167 = pneg %p39
        $region30: #{bottleneck_forward.4} parent=27 // pred_check_branch
          %169 = sbr.rel (%p167) target = $region32
        $region31: #{bottleneck_forward.4} parent=27 // pred_region
          %170 = dma.done %s163, 4096
        $region32: #{bottleneck_forward.4} parent=27 // pred_fallthru
          _
        %s171 = sand.u32 %s26, 1
        %s172 = scalar_lea.sflag [#allocation3], %s171
        %s173 = sand.u32 %s26, 1
        %s174 = smul.addr %s173, 256
        %s175 = scalar_lea.vmem [#allocation2], %s174
        %p176 = pneg %p39
        %p177 = pneg %p36
        %p178 = pneg %p60
        %p179 = pneg %p57
        %p180 = pneg %p86
        %p181 = pneg %p83
        %p182 = scmp.lt.s32.totalorder %s18, 1
        %s183 = scalar_select %p182, %s18, 1
        %s184 = smul.addr %s183, 32
        %s185 = smul.addr %s184, 8
        %s186 = scalar_lea.vmem %s2, %s185
        %p187 = pneg %p112
        %p188 = pneg %p109
        %p189 = scmp.lt.s32.totalorder %s18, 1
        %s190 = scalar_select %p189, %s18, 1
        %s191 = smul.addr %s190, 2
        %s192 = scalar_lea.vmem %s3, %s191
        %p193 = scmp.lt.s32.totalorder %s18, 1
        %s194 = scalar_select %p193, %s18, 1
        %s195 = smul.addr %s194, 32
        %s196 = smul.addr %s195, 8
        %s197 = scalar_lea.vmem %s2, %s196
        %p198 = scmp.lt.s32.totalorder %s18, 1
        %s199 = scalar_select %p198, %s18, 1
        %s200 = smul.addr %s199, 2
        %s201 = scalar_lea.vmem %s3, %s200
        %v203 = vld [vmem:[%s166] sm:$0xff]
        %v204 = vld [vmem:[%s166 + $0x8] sm:$0xff]
        %v205 = vld [vmem:[%s166 + $0x10] sm:$0xff]
        %v206 = vld [vmem:[%s166 + $0x18] sm:$0xff]
        %v207 = vld [vmem:[%s166 + $0x20] sm:$0xff]
        %v208 = vld [vmem:[%s166 + $0x28] sm:$0xff]
        %v209 = vld [vmem:[%s166 + $0x30] sm:$0xff]
        %v210 = vld [vmem:[%s166 + $0x38] sm:$0xff]
        %v211 = vld [vmem:[%s166 + $0x40] sm:$0xff]
        %v212 = vld [vmem:[%s166 + $0x48] sm:$0xff]
        %v213 = vld [vmem:[%s166 + $0x50] sm:$0xff]
        %v214 = vld [vmem:[%s166 + $0x58] sm:$0xff]
        %v215 = vld [vmem:[%s166 + $0x60] sm:$0xff]
        %v216 = vld [vmem:[%s166 + $0x68] sm:$0xff]
        %v217 = vld [vmem:[%s166 + $0x70] sm:$0xff]
        %v218 = vld [vmem:[%s166 + $0x78] sm:$0xff]
        %v219 = vld [vmem:[%s166 + $0x80] sm:$0xff]
        %v220 = vld [vmem:[%s166 + $0x88] sm:$0xff]
        %v221 = vld [vmem:[%s166 + $0x90] sm:$0xff]
        %v222 = vld [vmem:[%s166 + $0x98] sm:$0xff]
        %v223 = vld [vmem:[%s166 + $0xa0] sm:$0xff]
        %v224 = vld [vmem:[%s166 + $0xa8] sm:$0xff]
        %v225 = vld [vmem:[%s166 + $0xb0] sm:$0xff]
        %v226 = vld [vmem:[%s166 + $0xb8] sm:$0xff]
        %v227 = vld [vmem:[%s166 + $0xc0] sm:$0xff]
        %v228 = vld [vmem:[%s166 + $0xc8] sm:$0xff]
        %v229 = vld [vmem:[%s166 + $0xd0] sm:$0xff]
        %v230 = vld [vmem:[%s166 + $0xd8] sm:$0xff]
        %v231 = vld [vmem:[%s166 + $0xe0] sm:$0xff]
        %v232 = vld [vmem:[%s166 + $0xe8] sm:$0xff]
        %v233 = vld [vmem:[%s166 + $0xf0] sm:$0xff]
        %v234 = vld [vmem:[%s166 + $0xf8] sm:$0xff]
        %v235 = vpack.c.bf16 %v204, %v203
        %v236 = vpack.c.bf16 %v206, %v205
        %v237 = vpack.c.bf16 %v208, %v207
        %v238 = vpack.c.bf16 %v210, %v209
        %v239 = vpack.c.bf16 %v212, %v211
        %v240 = vpack.c.bf16 %v214, %v213
        %v241 = vpack.c.bf16 %v216, %v215
        %v242 = vpack.c.bf16 %v218, %v217
        %v243 = vpack.c.bf16 %v220, %v219
        %v244 = vpack.c.bf16 %v222, %v221
        %v245 = vpack.c.bf16 %v224, %v223
        %v246 = vpack.c.bf16 %v226, %v225
        %v247 = vpack.c.bf16 %v228, %v227
        %v248 = vpack.c.bf16 %v230, %v229
        %v249 = vpack.c.bf16 %v232, %v231
        %v250 = vpack.c.bf16 %v234, %v233
        %v251 = vld [vmem:[%s1] sm:$0xf]
        %v252 = vld [vmem:[%s1 + $0x4] sm:$0xf]
        %v253 = vld [vmem:[%s1 + $0x8] sm:$0xf]
        %v254 = vld [vmem:[%s1 + $0xc] sm:$0xf]
        %v255 = vld [vmem:[%s1 + $0x10] sm:$0xf]
        %v256 = vld [vmem:[%s1 + $0x14] sm:$0xf]
        %v257 = vld [vmem:[%s1 + $0x18] sm:$0xf]
        %v258 = vld [vmem:[%s1 + $0x1c] sm:$0xf]
        %v259 = vld [vmem:[%s1 + $0x20] sm:$0xf]
        %v260 = vld [vmem:[%s1 + $0x24] sm:$0xf]
        %v261 = vld [vmem:[%s1 + $0x28] sm:$0xf]
        %v262 = vld [vmem:[%s1 + $0x2c] sm:$0xf]
        %v263 = vld [vmem:[%s1 + $0x30] sm:$0xf]
        %v264 = vld [vmem:[%s1 + $0x34] sm:$0xf]
        %v265 = vld [vmem:[%s1 + $0x38] sm:$0xf]
        %v266 = vld [vmem:[%s1 + $0x3c] sm:$0xf]
        %v283 = vunpack.c.l.b16 %v251
        %v284 = vunpack.c.l.b16 %v252
        %v285 = vunpack.c.l.b16 %v253
        %v286 = vunpack.c.l.b16 %v254
        %v287 = vunpack.c.l.b16 %v255
        %v288 = vunpack.c.l.b16 %v256
        %v289 = vunpack.c.l.b16 %v257
        %v290 = vunpack.c.l.b16 %v258
        %v291 = vunpack.c.l.b16 %v259
        %v292 = vunpack.c.l.b16 %v260
        %v293 = vunpack.c.l.b16 %v261
        %v294 = vunpack.c.l.b16 %v262
        %v295 = vunpack.c.l.b16 %v263
        %v296 = vunpack.c.l.b16 %v264
        %v297 = vunpack.c.l.b16 %v265
        %v298 = vunpack.c.l.b16 %v266
        %v299 = vpack.c.b16 %v284, %v283
        %v300 = vpack.c.b16 %v286, %v285
        %v301 = vpack.c.b16 %v288, %v287
        %v302 = vpack.c.b16 %v290, %v289
        %v303 = vpack.c.b16 %v292, %v291
        %v304 = vpack.c.b16 %v294, %v293
        %v305 = vpack.c.b16 %v296, %v295
        %v306 = vpack.c.b16 %v298, %v297
        %315 = vmatprep.subr.bf16.mxu0 0
        %316 = vmatpush1.bf16.msra.mxu0 %v299
        %317 = vmatprep.subr.bf16.mxu0 0
        %318 = vmatpush1.bf16.msra.mxu0 %v300
        %319 = vmatprep.subr.bf16.mxu0 0
        %320 = vmatpush1.bf16.msra.mxu0 %v301
        %321 = vmatprep.subr.bf16.mxu0 0
        %322 = vmatpush1.bf16.msra.mxu0 %v302
        %323 = vmatprep.subr.bf16.mxu0 0
        %324 = vmatpush1.bf16.msra.mxu0 %v303
        %325 = vmatprep.subr.bf16.mxu0 0
        %326 = vmatpush1.bf16.msra.mxu0 %v304
        %327 = vmatprep.subr.bf16.mxu0 0
        %328 = vmatpush1.bf16.msra.mxu0 %v305
        %329 = vmatprep.subr.bf16.mxu0 0
        %330 = vmatpush1.bf16.msra.mxu0 %v306
        %331 = vmatprep.subr.bf16.mxu0 0
        %332 = vmatpush1.bf16.msra.mxu0 0
        %333 = vmatprep.subr.bf16.mxu0 0
        %334 = vmatpush1.bf16.msra.mxu0 0
        %335 = vmatprep.subr.bf16.mxu0 0
        %336 = vmatpush1.bf16.msra.mxu0 0
        %337 = vmatprep.subr.bf16.mxu0 0
        %338 = vmatpush1.bf16.msra.mxu0 0
        %339 = vmatprep.subr.bf16.mxu0 0
        %340 = vmatpush1.bf16.msra.mxu0 0
        %341 = vmatprep.subr.bf16.mxu0 0
        %342 = vmatpush1.bf16.msra.mxu0 0
        %343 = vmatprep.subr.bf16.mxu0 0
        %344 = vmatpush1.bf16.msra.mxu0 0
        %345 = vmatprep.subr.bf16.mxu0 0
        %346 = vmatpush1.bf16.msra.mxu0 0
        %347 = vmatprep.mubr.bf16.mxu0 0
        %348 = vmatmul.mubr.bf16.gmra.mrb[0].mxu0 %v235
        %v349 = vpop.f32.mrb[0].mxu0
        %v350 = vadd.f32 0.0, %v349
        %v351 = vpop.f32.mrb[0].mxu0
        %v352 = vpop.f32.mrb[0].mxu0
        %v353 = vadd.f32 0.0, %v352
        %v354 = vpop.f32.mrb[0].mxu0
        %355 = vmatprep.mubr.bf16.mxu0 0
        %356 = vmatmul.mubr.bf16.gmra.mrb[0].mxu0 %v236
        %v357 = vpop.f32.mrb[0].mxu0
        %v358 = vadd.f32 0.0, %v357
        %v359 = vpop.f32.mrb[0].mxu0
        %v360 = vpop.f32.mrb[0].mxu0
        %v361 = vadd.f32 0.0, %v360
        %v362 = vpop.f32.mrb[0].mxu0
        %363 = vmatprep.mubr.bf16.mxu0 0
        %364 = vmatmul.mubr.bf16.gmra.mrb[0].mxu0 %v237
        %v365 = vpop.f32.mrb[0].mxu0
        %v366 = vadd.f32 0.0, %v365
        %v367 = vpop.f32.mrb[0].mxu0
        %v368 = vpop.f32.mrb[0].mxu0
        %v369 = vadd.f32 0.0, %v368
        %v370 = vpop.f32.mrb[0].mxu0
        %371 = vmatprep.mubr.bf16.mxu0 0
        %372 = vmatmul.mubr.bf16.gmra.mrb[0].mxu0 %v238
        %v373 = vpop.f32.mrb[0].mxu0
        %v374 = vadd.f32 0.0, %v373
        %v375 = vpop.f32.mrb[0].mxu0
        %v376 = vpop.f32.mrb[0].mxu0
        %v377 = vadd.f32 0.0, %v376
        %v378 = vpop.f32.mrb[0].mxu0
        %379 = vmatprep.mubr.bf16.mxu0 0
        %380 = vmatmul.mubr.bf16.gmra.mrb[0].mxu0 %v239
        %v381 = vpop.f32.mrb[0].mxu0
        %v382 = vadd.f32 0.0, %v381
        %v383 = vpop.f32.mrb[0].mxu0
        %v384 = vpop.f32.mrb[0].mxu0
        %v385 = vadd.f32 0.0, %v384
        %v386 = vpop.f32.mrb[0].mxu0
        %387 = vmatprep.mubr.bf16.mxu0 0
        %388 = vmatmul.mubr.bf16.gmra.mrb[0].mxu0 %v240
        %v389 = vpop.f32.mrb[0].mxu0
        %v390 = vadd.f32 0.0, %v389
        %v391 = vpop.f32.mrb[0].mxu0
        %v392 = vpop.f32.mrb[0].mxu0
        %v393 = vadd.f32 0.0, %v392
        %v394 = vpop.f32.mrb[0].mxu0
        %395 = vmatprep.mubr.bf16.mxu0 0
        %396 = vmatmul.mubr.bf16.gmra.mrb[0].mxu0 %v241
        %v397 = vpop.f32.mrb[0].mxu0
        %v398 = vadd.f32 0.0, %v397
        %v399 = vpop.f32.mrb[0].mxu0
        %v400 = vpop.f32.mrb[0].mxu0
        %v401 = vadd.f32 0.0, %v400
        %v402 = vpop.f32.mrb[0].mxu0
        %403 = vmatprep.mubr.bf16.mxu0 0
        %404 = vmatmul.mubr.bf16.gmra.mrb[0].mxu0 %v242
        %v405 = vpop.f32.mrb[0].mxu0
        %v406 = vadd.f32 0.0, %v405
        %v407 = vpop.f32.mrb[0].mxu0
        %v408 = vpop.f32.mrb[0].mxu0
        %v409 = vadd.f32 0.0, %v408
        %v410 = vpop.f32.mrb[0].mxu0
        %411 = vmatprep.mubr.bf16.mxu0 0
        %412 = vmatmul.mubr.bf16.gmra.mrb[0].mxu0 %v243
        %v413 = vpop.f32.mrb[0].mxu0
        %v414 = vadd.f32 0.0, %v413
        %v415 = vpop.f32.mrb[0].mxu0
        %v416 = vpop.f32.mrb[0].mxu0
        %v417 = vadd.f32 0.0, %v416
        %v418 = vpop.f32.mrb[0].mxu0
        %419 = vmatprep.mubr.bf16.mxu0 0
        %420 = vmatmul.mubr.bf16.gmra.mrb[0].mxu0 %v244
        %v421 = vpop.f32.mrb[0].mxu0
        %v422 = vadd.f32 0.0, %v421
        %v423 = vpop.f32.mrb[0].mxu0
        %v424 = vpop.f32.mrb[0].mxu0
        %v425 = vadd.f32 0.0, %v424
        %v426 = vpop.f32.mrb[0].mxu0
        %427 = vmatprep.mubr.bf16.mxu0 0
        %428 = vmatmul.mubr.bf16.gmra.mrb[0].mxu0 %v245
        %v429 = vpop.f32.mrb[0].mxu0
        %v430 = vadd.f32 0.0, %v429
        %v431 = vpop.f32.mrb[0].mxu0
        %v432 = vpop.f32.mrb[0].mxu0
        %v433 = vadd.f32 0.0, %v432
        %v434 = vpop.f32.mrb[0].mxu0
        %435 = vmatprep.mubr.bf16.mxu0 0
        %436 = vmatmul.mubr.bf16.gmra.mrb[0].mxu0 %v246
        %v437 = vpop.f32.mrb[0].mxu0
        %v438 = vadd.f32 0.0, %v437
        %v439 = vpop.f32.mrb[0].mxu0
        %v440 = vpop.f32.mrb[0].mxu0
        %v441 = vadd.f32 0.0, %v440
        %v442 = vpop.f32.mrb[0].mxu0
        %443 = vmatprep.mubr.bf16.mxu0 0
        %444 = vmatmul.mubr.bf16.gmra.mrb[0].mxu0 %v247
        %v445 = vpop.f32.mrb[0].mxu0
        %v446 = vadd.f32 0.0, %v445
        %v447 = vpop.f32.mrb[0].mxu0
        %v448 = vpop.f32.mrb[0].mxu0
        %v449 = vadd.f32 0.0, %v448
        %v450 = vpop.f32.mrb[0].mxu0
        %451 = vmatprep.mubr.bf16.mxu0 0
        %452 = vmatmul.mubr.bf16.gmra.mrb[0].mxu0 %v248
        %v453 = vpop.f32.mrb[0].mxu0
        %v454 = vadd.f32 0.0, %v453
        %v455 = vpop.f32.mrb[0].mxu0
        %v456 = vpop.f32.mrb[0].mxu0
        %v457 = vadd.f32 0.0, %v456
        %v458 = vpop.f32.mrb[0].mxu0
        %459 = vmatprep.mubr.bf16.mxu0 0
        %460 = vmatmul.mubr.bf16.gmra.mrb[0].mxu0 %v249
        %v461 = vpop.f32.mrb[0].mxu0
        %v462 = vadd.f32 0.0, %v461
        %v463 = vpop.f32.mrb[0].mxu0
        %v464 = vpop.f32.mrb[0].mxu0
        %v465 = vadd.f32 0.0, %v464
        %v466 = vpop.f32.mrb[0].mxu0
        %467 = vmatprep.mubr.bf16.mxu0 0
        %468 = vmatmul.mubr.bf16.gmra.mrb[0].mxu0 %v250
        %v469 = vpop.f32.mrb[0].mxu0
        %v470 = vadd.f32 0.0, %v469
        %v471 = vpop.f32.mrb[0].mxu0
        %v472 = vpop.f32.mrb[0].mxu0
        %v473 = vadd.f32 0.0, %v472
        %v474 = vpop.f32.mrb[0].mxu0
        %475 = vdwg.mxu0
        %vm476 = vcmask 261120
        %477 = vst.msk [vmem:[%s197] sm:$0xff] %vm476, %v350
        %478 = vst.msk [vmem:[%s197 + $0x8] sm:$0xff] %vm476, %v353
        %479 = vst.msk [vmem:[%s197 + $0x10] sm:$0xff] %vm476, %v358
        %480 = vst.msk [vmem:[%s197 + $0x18] sm:$0xff] %vm476, %v361
        %481 = vst.msk [vmem:[%s197 + $0x20] sm:$0xff] %vm476, %v366
        %482 = vst.msk [vmem:[%s197 + $0x28] sm:$0xff] %vm476, %v369
        %483 = vst.msk [vmem:[%s197 + $0x30] sm:$0xff] %vm476, %v374
        %484 = vst.msk [vmem:[%s197 + $0x38] sm:$0xff] %vm476, %v377
        %485 = vst.msk [vmem:[%s197 + $0x40] sm:$0xff] %vm476, %v382
        %486 = vst.msk [vmem:[%s197 + $0x48] sm:$0xff] %vm476, %v385
        %487 = vst.msk [vmem:[%s197 + $0x50] sm:$0xff] %vm476, %v390
        %488 = vst.msk [vmem:[%s197 + $0x58] sm:$0xff] %vm476, %v393
        %489 = vst.msk [vmem:[%s197 + $0x60] sm:$0xff] %vm476, %v398
        %490 = vst.msk [vmem:[%s197 + $0x68] sm:$0xff] %vm476, %v401
        %491 = vst.msk [vmem:[%s197 + $0x70] sm:$0xff] %vm476, %v406
        %492 = vst.msk [vmem:[%s197 + $0x78] sm:$0xff] %vm476, %v409
        %493 = vst.msk [vmem:[%s197 + $0x80] sm:$0xff] %vm476, %v414
        %494 = vst.msk [vmem:[%s197 + $0x88] sm:$0xff] %vm476, %v417
        %495 = vst.msk [vmem:[%s197 + $0x90] sm:$0xff] %vm476, %v422
        %496 = vst.msk [vmem:[%s197 + $0x98] sm:$0xff] %vm476, %v425
        %497 = vst.msk [vmem:[%s197 + $0xa0] sm:$0xff] %vm476, %v430
        %498 = vst.msk [vmem:[%s197 + $0xa8] sm:$0xff] %vm476, %v433
        %499 = vst.msk [vmem:[%s197 + $0xb0] sm:$0xff] %vm476, %v438
        %500 = vst.msk [vmem:[%s197 + $0xb8] sm:$0xff] %vm476, %v441
        %501 = vst.msk [vmem:[%s197 + $0xc0] sm:$0xff] %vm476, %v446
        %502 = vst.msk [vmem:[%s197 + $0xc8] sm:$0xff] %vm476, %v449
        %503 = vst.msk [vmem:[%s197 + $0xd0] sm:$0xff] %vm476, %v454
        %504 = vst.msk [vmem:[%s197 + $0xd8] sm:$0xff] %vm476, %v457
        %505 = vst.msk [vmem:[%s197 + $0xe0] sm:$0xff] %vm476, %v462
        %506 = vst.msk [vmem:[%s197 + $0xe8] sm:$0xff] %vm476, %v465
        %507 = vst.msk [vmem:[%s197 + $0xf0] sm:$0xff] %vm476, %v470
        %508 = vst.msk [vmem:[%s197 + $0xf8] sm:$0xff] %vm476, %v473
        %v509 = vsel %vm476, %v350, 0.0
        %v510 = vsel %vm476, %v353, 0.0
        %v511 = vadd.f32 %v509, %v510
        %v512 = vsel %vm476, %v358, 0.0
        %v513 = vadd.f32 %v511, %v512
        %v514 = vsel %vm476, %v361, 0.0
        %v515 = vadd.f32 %v513, %v514
        %v516 = vsel %vm476, %v366, 0.0
        %v517 = vadd.f32 %v515, %v516
        %v518 = vsel %vm476, %v369, 0.0
        %v519 = vadd.f32 %v517, %v518
        %v520 = vsel %vm476, %v374, 0.0
        %v521 = vadd.f32 %v519, %v520
        %v522 = vsel %vm476, %v377, 0.0
        %v523 = vadd.f32 %v521, %v522
        %v524 = vsel %vm476, %v382, 0.0
        %v525 = vadd.f32 %v523, %v524
        %v526 = vsel %vm476, %v385, 0.0
        %v527 = vadd.f32 %v525, %v526
        %v528 = vsel %vm476, %v390, 0.0
        %v529 = vadd.f32 %v527, %v528
        %v530 = vsel %vm476, %v393, 0.0
        %v531 = vadd.f32 %v529, %v530
        %v532 = vsel %vm476, %v398, 0.0
        %v533 = vadd.f32 %v531, %v532
        %v534 = vsel %vm476, %v401, 0.0
        %v535 = vadd.f32 %v533, %v534
        %v536 = vsel %vm476, %v406, 0.0
        %v537 = vadd.f32 %v535, %v536
        %v538 = vsel %vm476, %v409, 0.0
        %v539 = vadd.f32 %v537, %v538
        %v540 = vsel %vm476, %v414, 0.0
        %v541 = vadd.f32 %v539, %v540
        %v542 = vsel %vm476, %v417, 0.0
        %v543 = vadd.f32 %v541, %v542
        %v544 = vsel %vm476, %v422, 0.0
        %v545 = vadd.f32 %v543, %v544
        %v546 = vsel %vm476, %v425, 0.0
        %v547 = vadd.f32 %v545, %v546
        %v548 = vsel %vm476, %v430, 0.0
        %v549 = vadd.f32 %v547, %v548
        %v550 = vsel %vm476, %v433, 0.0
        %v551 = vadd.f32 %v549, %v550
        %v552 = vsel %vm476, %v438, 0.0
        %v553 = vadd.f32 %v551, %v552
        %v554 = vsel %vm476, %v441, 0.0
        %v555 = vadd.f32 %v553, %v554
        %v556 = vsel %vm476, %v446, 0.0
        %v557 = vadd.f32 %v555, %v556
        %v558 = vsel %vm476, %v449, 0.0
        %v559 = vadd.f32 %v557, %v558
        %v560 = vsel %vm476, %v454, 0.0
        %v561 = vadd.f32 %v559, %v560
        %v562 = vsel %vm476, %v457, 0.0
        %v563 = vadd.f32 %v561, %v562
        %v564 = vsel %vm476, %v462, 0.0
        %v565 = vadd.f32 %v563, %v564
        %v566 = vsel %vm476, %v465, 0.0
        %v567 = vadd.f32 %v565, %v566
        %v568 = vsel %vm476, %v470, 0.0
        %v569 = vadd.f32 %v567, %v568
        %v570 = vsel %vm476, %v473, 0.0
        %v571 = vadd.f32 %v569, %v570
        %v572 = vrot.slane %v571, 4
        %v573 = vadd.f32 %v571, %v572
        %v574 = vrot.slane %v573, 2
        %v575 = vadd.f32 %v573, %v574
        %v576 = vrot.slane %v575, 1
        %v577 = vadd.f32 %v575, %v576
        %vm578 = vcmask 253952
        %579 = vst.msk [vmem:[%s201] sm:$0x1] %vm578, %v577
        %v580 = vmul.f32 %v350, %v350
        %v581 = vmul.f32 %v353, %v353
        %v582 = vmul.f32 %v358, %v358
        %v583 = vmul.f32 %v361, %v361
        %v584 = vmul.f32 %v366, %v366
        %v585 = vmul.f32 %v369, %v369
        %v586 = vmul.f32 %v374, %v374
        %v587 = vmul.f32 %v377, %v377
        %v588 = vmul.f32 %v382, %v382
        %v589 = vmul.f32 %v385, %v385
        %v590 = vmul.f32 %v390, %v390
        %v591 = vmul.f32 %v393, %v393
        %v592 = vmul.f32 %v398, %v398
        %v593 = vmul.f32 %v401, %v401
        %v594 = vmul.f32 %v406, %v406
        %v595 = vmul.f32 %v409, %v409
        %v596 = vmul.f32 %v414, %v414
        %v597 = vmul.f32 %v417, %v417
        %v598 = vmul.f32 %v422, %v422
        %v599 = vmul.f32 %v425, %v425
        %v600 = vmul.f32 %v430, %v430
        %v601 = vmul.f32 %v433, %v433
        %v602 = vmul.f32 %v438, %v438
        %v603 = vmul.f32 %v441, %v441
        %v604 = vmul.f32 %v446, %v446
        %v605 = vmul.f32 %v449, %v449
        %v606 = vmul.f32 %v454, %v454
        %v607 = vmul.f32 %v457, %v457
        %v608 = vmul.f32 %v462, %v462
        %v609 = vmul.f32 %v465, %v465
        %v610 = vmul.f32 %v470, %v470
        %v611 = vmul.f32 %v473, %v473
        %v612 = vsel %vm476, %v580, 0.0
        %v613 = vsel %vm476, %v581, 0.0
        %v614 = vadd.f32 %v612, %v613
        %v615 = vsel %vm476, %v582, 0.0
        %v616 = vadd.f32 %v614, %v615
        %v617 = vsel %vm476, %v583, 0.0
        %v618 = vadd.f32 %v616, %v617
        %v619 = vsel %vm476, %v584, 0.0
        %v620 = vadd.f32 %v618, %v619
        %v621 = vsel %vm476, %v585, 0.0
        %v622 = vadd.f32 %v620, %v621
        %v623 = vsel %vm476, %v586, 0.0
        %v624 = vadd.f32 %v622, %v623
        %v625 = vsel %vm476, %v587, 0.0
        %v626 = vadd.f32 %v624, %v625
        %v627 = vsel %vm476, %v588, 0.0
        %v628 = vadd.f32 %v626, %v627
        %v629 = vsel %vm476, %v589, 0.0
        %v630 = vadd.f32 %v628, %v629
        %v631 = vsel %vm476, %v590, 0.0
        %v632 = vadd.f32 %v630, %v631
        %v633 = vsel %vm476, %v591, 0.0
        %v634 = vadd.f32 %v632, %v633
        %v635 = vsel %vm476, %v592, 0.0
        %v636 = vadd.f32 %v634, %v635
        %v637 = vsel %vm476, %v593, 0.0
        %v638 = vadd.f32 %v636, %v637
        %v639 = vsel %vm476, %v594, 0.0
        %v640 = vadd.f32 %v638, %v639
        %v641 = vsel %vm476, %v595, 0.0
        %v642 = vadd.f32 %v640, %v641
        %v643 = vsel %vm476, %v596, 0.0
        %v644 = vadd.f32 %v642, %v643
        %v645 = vsel %vm476, %v597, 0.0
        %v646 = vadd.f32 %v644, %v645
        %v647 = vsel %vm476, %v598, 0.0
        %v648 = vadd.f32 %v646, %v647
        %v649 = vsel %vm476, %v599, 0.0
        %v650 = vadd.f32 %v648, %v649
        %v651 = vsel %vm476, %v600, 0.0
        %v652 = vadd.f32 %v650, %v651
        %v653 = vsel %vm476, %v601, 0.0
        %v654 = vadd.f32 %v652, %v653
        %v655 = vsel %vm476, %v602, 0.0
        %v656 = vadd.f32 %v654, %v655
        %v657 = vsel %vm476, %v603, 0.0
        %v658 = vadd.f32 %v656, %v657
        %v659 = vsel %vm476, %v604, 0.0
        %v660 = vadd.f32 %v658, %v659
        %v661 = vsel %vm476, %v605, 0.0
        %v662 = vadd.f32 %v660, %v661
        %v663 = vsel %vm476, %v606, 0.0
        %v664 = vadd.f32 %v662, %v663
        %v665 = vsel %vm476, %v607, 0.0
        %v666 = vadd.f32 %v664, %v665
        %v667 = vsel %vm476, %v608, 0.0
        %v668 = vadd.f32 %v666, %v667
        %v669 = vsel %vm476, %v609, 0.0
        %v670 = vadd.f32 %v668, %v669
        %v671 = vsel %vm476, %v610, 0.0
        %v672 = vadd.f32 %v670, %v671
        %v673 = vsel %vm476, %v611, 0.0
        %v674 = vadd.f32 %v672, %v673
        %v675 = vrot.slane %v674, 4
        %v676 = vadd.f32 %v674, %v675
        %v677 = vrot.slane %v676, 2
        %v678 = vadd.f32 %v676, %v677
        %v679 = vrot.slane %v678, 1
        %v680 = vadd.f32 %v678, %v679
        %681 = vst.msk [vmem:[%s201 + $0x1] sm:$0x1] %vm578, %v680
        %p682 = scmp.lt.s32.totalorder %s18, 1
        %s683 = scalar_select %p682, %s18, 1
        %s684 = smul.addr %s683, 32
        %s685 = smul.addr %s684, 8
        %s686 = scalar_lea.vmem %s2, %s685
        %p687 = scmp.lt.s32.totalorder %s18, 1
        %s688 = scalar_select %p687, %s18, 1
        %s689 = smul.addr %s688, 2
        %s690 = scalar_lea.vmem %s3, %s689
        // Predicated region
        $region33: #{bottleneck_forward.4} parent=27 // pred_check
          %p691 = pneg %p83
        $region34: #{bottleneck_forward.4} parent=27 // pred_check_branch
          %693 = sbr.rel (%p691) target = $region36
        $region35: #{bottleneck_forward.4} parent=27 // pred_region
          _
        $region36: #{bottleneck_forward.4} parent=27 // pred_fallthru
          _
        // Predicated region
        $region37: #{bottleneck_forward.4} parent=27 // pred_check
          %p694 = pneg %p109
        $region38: #{bottleneck_forward.4} parent=27 // pred_check_branch
          %696 = sbr.rel (%p694) target = $region40
        $region39: #{bottleneck_forward.4} parent=27 // pred_region
          _
        $region40: #{bottleneck_forward.4} parent=27 // pred_fallthru
          _
      $region28: #{bottleneck_forward.4} parent=5 // pred_fallthru
        _
      %p697 = scmp.le.s32.totalorder 2, %s13
      // Predicated region
      $region41: #{bottleneck_forward.4} parent=5 // pred_check
        %p698 = pneg %p697
      $region42: #{bottleneck_forward.4} parent=5 // pred_check_branch
        %700 = sbr.rel (%p698) target = $region44
      $region43: #{bottleneck_forward.4} parent=5 // pred_region
        %s701 = ssub.s32 %s13, 2
        // Predicated region
        $region45: #{bottleneck_forward.4} parent=43 // pred_check
          %p702 = pneg %p89
        $region46: #{bottleneck_forward.4} parent=43 // pred_check_branch
          %704 = sbr.rel (%p702) target = $region48
        $region47: #{bottleneck_forward.4} parent=43 // pred_region
          %p705 = scmp.lt.s32.totalorder %s19, 1
          %s706 = scalar_select %p705, %s19, 1
          %s707 = smul.addr %s706, 32
          %s708 = smul.addr %s707, 8
          %s709 = scalar_lea.vmem %s2, %s708
        $region48: #{bottleneck_forward.4} parent=43 // pred_fallthru
          _
        // Predicated region
        $region49: #{bottleneck_forward.4} parent=43 // pred_check
          %p710 = pneg %p115
        $region50: #{bottleneck_forward.4} parent=43 // pred_check_branch
          %712 = sbr.rel (%p710) target = $region52
        $region51: #{bottleneck_forward.4} parent=43 // pred_region
          %p713 = scmp.lt.s32.totalorder %s19, 1
          %s714 = scalar_select %p713, %s19, 1
          %s715 = smul.addr %s714, 2
          %s716 = scalar_lea.vmem %s3, %s715
        $region52: #{bottleneck_forward.4} parent=43 // pred_fallthru
          _
      $region44: #{bottleneck_forward.4} parent=5 // pred_fallthru
        _
    $region6: #{bottleneck_forward.4} parent=1 // loop_footer
      %s17 = sadd.s32 1, %s13
    $region7: #{bottleneck_forward.4} parent=1 // loop_footer_branch
      %12 = sbr.rel target = $region3
    $region8: #{bottleneck_forward.4} parent=1 // loop_exit
      _
    %717 = vsyncpa [#allocation3], 1
    %s718 = scalar_lea.sflag [#allocation3], 1
    %719 = vsyncpa %s718, 1

// kernel: bottleneck_forward.5
$region0: #{bottleneck_forward.5}
  #allocation0 [shape = 'u32[]', space=smem, size = 0x4, offset = 0x4, fixed_abs, tag = 'smem constant byte address 0x4 - core index']
  #allocation1 [shape = 'u32[144,128]{1,0:T(1,128)}', space=vmem, size = 0x12000, scoped, tag = 'internal scratch']
  #allocation2 [shape = 'f32[18,18,32]{2,1,0:T(8,128)}', space=vmem, size = 0x36000, scoped, tag = 'scratch operand']
  #allocation3 [shape = 'f32[256,288]{1,0:T(8,128)}', space=vmem, size = 0x60000, scoped, tag = 'scratch operand']
  %s0 = inlined_call_operand.vmem [shape: f32[2,16,16,32], index: 0, kind: input, shape index: {}]
  %s1 = inlined_call_operand.vmem [shape: f32[1,32], index: 1, kind: input, shape index: {}]
  %s2 = inlined_call_operand.vmem [shape: f32[1,32], index: 2, kind: input, shape index: {}]
  %s3 = inlined_call_operand.vmem [shape: bf16[288,32], index: 3, kind: input, shape index: {}]
  %s4 = inlined_call_operand.vmem [shape: f32[2,16,16,32], index: 4, kind: output, shape index: {0}]
  %s5 = inlined_call_operand.vmem [shape: f32[2,2,32], index: 5, kind: output, shape index: {1}]
  %6 = xla_tuple %s4, %s5
  %s7 = sld [smem:[#allocation0]]
  $region57: #{bottleneck_forward.5} parent=0
    _
  %s9 = ssub.s32 1, %s7
  %s10 = scalar_select 0, %s9, %s7
  loop: start=0, step=1, limit=4
  $region2: #{bottleneck_forward.5} parent=0 // loop_pre_header
    _
  $region3: #{bottleneck_forward.5} parent=0 // loop_header
    %s12 = sphi 0, %s16
    %p13 = scmp.ge.s32.totalorder %s12, 4
    %s22 = sphi 0, %s24
    %s25 = sphi 0, %s22
    %s26 = sphi 0, %s25
    %s42 = sphi 0, %s26
    %s46 = sphi 0, %s46
    %s48 = sphi 0, %s46
    %s49 = sphi 0, %s48
    %s63 = sphi 0, %s49
    %s67 = sphi 0, %s67
    %s69 = sphi 0, %s67
    %s70 = sphi 0, %s69
    %s84 = sphi 0, %s70
    %s88 = sphi 0, %s88
    %s90 = sphi 0, %s88
    %s91 = sphi 0, %s90
    %s105 = sphi 0, %s91
    %s111 = sphi 0, %s113
    %s114 = sphi 0, %s111
    %s115 = sphi 0, %s114
    %s131 = sphi 0, %s115
    %s137 = sphi 0, %s139
    %s140 = sphi 0, %s137
    %s141 = sphi 0, %s140
    %s157 = sphi 0, %s141
  $region4: #{bottleneck_forward.5} parent=0 // loop_header_branch
    %15 = sbr.rel (%p13) target = $region8
  $region5: #{bottleneck_forward.5} parent=0 // loop_body
    %s17 = ssub.s32 %s12, 1
    %s18 = ssub.s32 %s12, 2
    %s19 = sadd.s32 %s12, 1
    %s20 = ssub.s32 %s12, %s19
    %p21 = scmp.eq.s32.totalorder %s20, 0
    %s23 = sadd.s32 %s22, 1
    %s24 = scalar_select %p21, %s22, %s23
    %p27 = pneg %p21
    %p28 = scmp.eq.s32.totalorder %s12, 1
    %p29 = por %p27, %p28
    %p30 = scmp.ne.s32.totalorder %s22, %s25
    %p31 = scmp.eq.s32.totalorder %s12, 0
    %p32 = por %p30, %p31
    %p33 = scmp.ne.s32.totalorder %s22, %s25
    %p34 = scmp.eq.s32.totalorder %s17, 1
    %p35 = por %p33, %p34
    %p36 = scmp.ne.s32.totalorder %s25, %s26
    %p37 = scmp.eq.s32.totalorder %s17, 0
    %p38 = por %p36, %p37
    %p39 = scmp.ne.s32.totalorder %s25, %s26
    %p40 = scmp.eq.s32.totalorder %s18, 1
    %p41 = por %p39, %p40
    %p43 = scmp.ne.s32.totalorder %s26, %s42
    %p44 = scmp.eq.s32.totalorder %s18, 0
    %p45 = por %p43, %p44
    %s47 = sadd.s32 %s46, 1
    %p50 = scmp.eq.s32.totalorder %s12, 1
    %p51 = scmp.ne.s32.totalorder %s46, %s48
    %p52 = scmp.eq.s32.totalorder %s12, 0
    %p53 = por %p51, %p52
    %p54 = scmp.ne.s32.totalorder %s46, %s48
    %p55 = scmp.eq.s32.totalorder %s17, 1
    %p56 = por %p54, %p55
    %p57 = scmp.ne.s32.totalorder %s48, %s49
    %p58 = scmp.eq.s32.totalorder %s17, 0
    %p59 = por %p57, %p58
    %p60 = scmp.ne.s32.totalorder %s48, %s49
    %p61 = scmp.eq.s32.totalorder %s18, 1
    %p62 = por %p60, %p61
    %p64 = scmp.ne.s32.totalorder %s49, %s63
    %p65 = scmp.eq.s32.totalorder %s18, 0
    %p66 = por %p64, %p65
    %s68 = sadd.s32 %s67, 1
    %p71 = scmp.eq.s32.totalorder %s12, 1
    %p72 = scmp.ne.s32.totalorder %s67, %s69
    %p73 = scmp.eq.s32.totalorder %s12, 0
    %p74 = por %p72, %p73
    %p75 = scmp.ne.s32.totalorder %s67, %s69
    %p76 = scmp.eq.s32.totalorder %s17, 1
    %p77 = por %p75, %p76
    %p78 = scmp.ne.s32.totalorder %s69, %s70
    %p79 = scmp.eq.s32.totalorder %s17, 0
    %p80 = por %p78, %p79
    %p81 = scmp.ne.s32.totalorder %s69, %s70
    %p82 = scmp.eq.s32.totalorder %s18, 1
    %p83 = por %p81, %p82
    %p85 = scmp.ne.s32.totalorder %s70, %s84
    %p86 = scmp.eq.s32.totalorder %s18, 0
    %p87 = por %p85, %p86
    %s89 = sadd.s32 %s88, 1
    %p92 = scmp.eq.s32.totalorder %s12, 1
    %p93 = scmp.ne.s32.totalorder %s88, %s90
    %p94 = scmp.eq.s32.totalorder %s12, 0
    %p95 = por %p93, %p94
    %p96 = scmp.ne.s32.totalorder %s88, %s90
    %p97 = scmp.eq.s32.totalorder %s17, 1
    %p98 = por %p96, %p97
    %p99 = scmp.ne.s32.totalorder %s90, %s91
    %p100 = scmp.eq.s32.totalorder %s17, 0
    %p101 = por %p99, %p100
    %p102 = scmp.ne.s32.totalorder %s90, %s91
    %p103 = scmp.eq.s32.totalorder %s18, 1
    %p104 = por %p102, %p103
    %p106 = scmp.ne.s32.totalorder %s91, %s105
    %p107 = scmp.eq.s32.totalorder %s18, 0
    %p108 = por %p106, %p107
    %s109 = ssub.s32 %s12, %s19
    %p110 = scmp.eq.s32.totalorder %s109, 0
    %s112 = sadd.s32 %s111, 1
    %s113 = scalar_select %p110, %s111, %s112
    %p116 = pneg %p110
    %p117 = scmp.eq.s32.totalorder %s12, 1
    %p118 = por %p116, %p117
    %p119 = scmp.ne.s32.totalorder %s111, %s114
    %p120 = scmp.eq.s32.totalorder %s12, 0
    %p121 = por %p119, %p120
    %p122 = scmp.ne.s32.totalorder %s111, %s114
    %p123 = scmp.eq.s32.totalorder %s17, 1
    %p124 = por %p122, %p123
    %p125 = scmp.ne.s32.totalorder %s114, %s115
    %p126 = scmp.eq.s32.totalorder %s17, 0
    %p127 = por %p125, %p126
    %p128 = scmp.ne.s32.totalorder %s114, %s115
    %p129 = scmp.eq.s32.totalorder %s18, 1
    %p130 = por %p128, %p129
    %p132 = scmp.ne.s32.totalorder %s115, %s131
    %p133 = scmp.eq.s32.totalorder %s18, 0
    %p134 = por %p132, %p133
    %s135 = ssub.s32 %s12, %s19
    %p136 = scmp.eq.s32.totalorder %s135, 0
    %s138 = sadd.s32 %s137, 1
    %s139 = scalar_select %p136, %s137, %s138
    %p142 = pneg %p136
    %p143 = scmp.eq.s32.totalorder %s12, 1
    %p144 = por %p142, %p143
    %p145 = scmp.ne.s32.totalorder %s137, %s140
    %p146 = scmp.eq.s32.totalorder %s12, 0
    %p147 = por %p145, %p146
    %p148 = scmp.ne.s32.totalorder %s137, %s140
    %p149 = scmp.eq.s32.totalorder %s17, 1
    %p150 = por %p148, %p149
    %p151 = scmp.ne.s32.totalorder %s140, %s141
    %p152 = scmp.eq.s32.totalorder %s17, 0
    %p153 = por %p151, %p152
    %p154 = scmp.ne.s32.totalorder %s140, %s141
    %p155 = scmp.eq.s32.totalorder %s18, 1
    %p156 = por %p154, %p155
    %p158 = scmp.ne.s32.totalorder %s141, %s157
    %p159 = scmp.eq.s32.totalorder %s18, 0
    %p160 = por %p158, %p159
    %p161 = scmp.le.s32.totalorder 1, %s12
    %p162 = scmp.lt.s32.totalorder %s12, 3
    %p163 = pnand %p161, %p162
    %p164 = pneg %p163
    // Predicated region
    $region9: #{bottleneck_forward.5} parent=5 // pred_check
      _
    $region10: #{bottleneck_forward.5} parent=5 // pred_check_branch
      %166 = sbr.rel (%p163) target = $region12
    $region11: #{bottleneck_forward.5} parent=5 // pred_region
      %s167 = ssub.s32 %s12, 1
      // Predicated region
      $region13: #{bottleneck_forward.5} parent=11 // pred_check
        %p168 = pneg %p59
      $region14: #{bottleneck_forward.5} parent=11 // pred_check_branch
        %170 = sbr.rel (%p168) target = $region16
      $region15: #{bottleneck_forward.5} parent=11 // pred_region
        _
      $region16: #{bottleneck_forward.5} parent=11 // pred_fallthru
        _
      // Predicated region
      $region17: #{bottleneck_forward.5} parent=11 // pred_check
        %p171 = pneg %p80
      $region18: #{bottleneck_forward.5} parent=11 // pred_check_branch
        %173 = sbr.rel (%p171) target = $region20
      $region19: #{bottleneck_forward.5} parent=11 // pred_region
        _
      $region20: #{bottleneck_forward.5} parent=11 // pred_fallthru
        _
      // Predicated region
      $region21: #{bottleneck_forward.5} parent=11 // pred_check
        %p174 = pneg %p101
      $region22: #{bottleneck_forward.5} parent=11 // pred_check_branch
        %176 = sbr.rel (%p174) target = $region24
      $region23: #{bottleneck_forward.5} parent=11 // pred_region
        _
      $region24: #{bottleneck_forward.5} parent=11 // pred_fallthru
        _
    $region12: #{bottleneck_forward.5} parent=5 // pred_fallthru
      _
    %p177 = scmp.lt.s32.totalorder %s12, 2
    // Predicated region
    $region25: #{bottleneck_forward.5} parent=5 // pred_check
      %p178 = pneg %p177
    $region26: #{bottleneck_forward.5} parent=5 // pred_check_branch
      %180 = sbr.rel (%p178) target = $region28
    $region27: #{bottleneck_forward.5} parent=5 // pred_region
      // Predicated region
      $region29: #{bottleneck_forward.5} parent=27 // pred_check
        %p181 = pneg %p32
      $region30: #{bottleneck_forward.5} parent=27 // pred_check_branch
        %183 = sbr.rel (%p181) target = $region32
      $region31: #{bottleneck_forward.5} parent=27 // pred_region
        %p184 = scmp.lt.s32.totalorder %s12, 1
        %s185 = scalar_select %p184, %s12, 1
        %s186 = smul.addr %s185, 32
        %s187 = smul.addr %s186, 8
        %s188 = scalar_lea.vmem %s0, %s187
      $region32: #{bottleneck_forward.5} parent=27 // pred_fallthru
        _
    $region28: #{bottleneck_forward.5} parent=5 // pred_fallthru
      _
    %p189 = scmp.le.s32.totalorder 1, %s12
    %p190 = scmp.lt.s32.totalorder %s12, 3
    %p191 = pnand %p189, %p190
    %p192 = pneg %p191
    // Predicated region
    $region33: #{bottleneck_forward.5} parent=5 // pred_check
      _
    $region34: #{bottleneck_forward.5} parent=5 // pred_check_branch
      %194 = sbr.rel (%p191) target = $region36
    $region35: #{bottleneck_forward.5} parent=5 // pred_region
      %s195 = ssub.s32 %s12, 1
      %p196 = scmp.lt.s32.totalorder %s17, 1
      %s197 = scalar_select %p196, %s17, 1
      %s198 = smul.addr %s197, 32
      %s199 = smul.addr %s198, 8
      %s200 = scalar_lea.vmem %s0, %s199
      %p201 = pneg %p38
      %p202 = pneg %p35
      %p203 = pneg %p59
      %p204 = pneg %p56
      %p205 = pneg %p80
      %p206 = pneg %p77
      %p207 = pneg %p101
      %p208 = pneg %p98
      %p209 = pneg %p127
      %p210 = pneg %p124
      %p211 = scmp.lt.s32.totalorder %s17, 1
      %s212 = scalar_select %p211, %s17, 1
      %s213 = smul.addr %s212, 32
      %s214 = smul.addr %s213, 8
      %s215 = scalar_lea.vmem %s4, %s214
      %p216 = pneg %p153
      %p217 = pneg %p150
      %p218 = scmp.lt.s32.totalorder %s17, 1
      %s219 = scalar_select %p218, %s17, 1
      %s220 = smul.addr %s219, 2
      %s221 = scalar_lea.vmem %s5, %s220
      %p222 = scmp.lt.s32.totalorder %s17, 1
      %s223 = scalar_select %p222, %s17, 1
      %s224 = smul.addr %s223, 32
      %s225 = smul.addr %s224, 8
      %s226 = scalar_lea.vmem %s0, %s225
      %p227 = scmp.lt.s32.totalorder %s17, 1
      %s228 = scalar_select %p227, %s17, 1
      %s229 = smul.addr %s228, 32
      %s230 = smul.addr %s229, 8
      %s231 = scalar_lea.vmem %s4, %s230
      %p232 = scmp.lt.s32.totalorder %s17, 1
      %s233 = scalar_select %p232, %s17, 1
      %s234 = smul.addr %s233, 2
      %s235 = scalar_lea.vmem %s5, %s234
      %v237 = vld [vmem:[%s226] sm:$0xff]
      %v238 = vld [vmem:[%s226 + $0x8] sm:$0xff]
      %v239 = vld [vmem:[%s226 + $0x10] sm:$0xff]
      %v240 = vld [vmem:[%s226 + $0x18] sm:$0xff]
      %v241 = vld [vmem:[%s226 + $0x20] sm:$0xff]
      %v242 = vld [vmem:[%s226 + $0x28] sm:$0xff]
      %v243 = vld [vmem:[%s226 + $0x30] sm:$0xff]
      %v244 = vld [vmem:[%s226 + $0x38] sm:$0xff]
      %v245 = vld [vmem:[%s226 + $0x40] sm:$0xff]
      %v246 = vld [vmem:[%s226 + $0x48] sm:$0xff]
      %v247 = vld [vmem:[%s226 + $0x50] sm:$0xff]
      %v248 = vld [vmem:[%s226 + $0x58] sm:$0xff]
      %v249 = vld [vmem:[%s226 + $0x60] sm:$0xff]
      %v250 = vld [vmem:[%s226 + $0x68] sm:$0xff]
      %v251 = vld [vmem:[%s226 + $0x70] sm:$0xff]
      %v252 = vld [vmem:[%s226 + $0x78] sm:$0xff]
      %v253 = vld [vmem:[%s226 + $0x80] sm:$0xff]
      %v254 = vld [vmem:[%s226 + $0x88] sm:$0xff]
      %v255 = vld [vmem:[%s226 + $0x90] sm:$0xff]
      %v256 = vld [vmem:[%s226 + $0x98] sm:$0xff]
      %v257 = vld [vmem:[%s226 + $0xa0] sm:$0xff]
      %v258 = vld [vmem:[%s226 + $0xa8] sm:$0xff]
      %v259 = vld [vmem:[%s226 + $0xb0] sm:$0xff]
      %v260 = vld [vmem:[%s226 + $0xb8] sm:$0xff]
      %v261 = vld [vmem:[%s226 + $0xc0] sm:$0xff]
      %v262 = vld [vmem:[%s226 + $0xc8] sm:$0xff]
      %v263 = vld [vmem:[%s226 + $0xd0] sm:$0xff]
      %v264 = vld [vmem:[%s226 + $0xd8] sm:$0xff]
      %v265 = vld [vmem:[%s226 + $0xe0] sm:$0xff]
      %v266 = vld [vmem:[%s226 + $0xe8] sm:$0xff]
      %v267 = vld [vmem:[%s226 + $0xf0] sm:$0xff]
      %v268 = vld [vmem:[%s226 + $0xf8] sm:$0xff]
      %v269 = vld [vmem:[%s1] sm:$0x1]
      %v271 = vlaneseq
      %v272 = vshrl.u32 %v271, 7
      %v273 = vsub.s32 0, %v272
      %v274 = vrot.slane %v269, %v273
      %v276 = vmul.f32 %v237, %v274
      %v277 = vmul.f32 %v238, %v274
      %v278 = vmul.f32 %v239, %v274
      %v279 = vmul.f32 %v240, %v274
      %v280 = vmul.f32 %v241, %v274
      %v281 = vmul.f32 %v242, %v274
      %v282 = vmul.f32 %v243, %v274
      %v283 = vmul.f32 %v244, %v274
      %v284 = vmul.f32 %v245, %v274
      %v285 = vmul.f32 %v246, %v274
      %v286 = vmul.f32 %v247, %v274
      %v287 = vmul.f32 %v248, %v274
      %v288 = vmul.f32 %v249, %v274
      %v289 = vmul.f32 %v250, %v274
      %v290 = vmul.f32 %v251, %v274
      %v291 = vmul.f32 %v252, %v274
      %v292 = vmul.f32 %v253, %v274
      %v293 = vmul.f32 %v254, %v274
      %v294 = vmul.f32 %v255, %v274
      %v295 = vmul.f32 %v256, %v274
      %v296 = vmul.f32 %v257, %v274
      %v297 = vmul.f32 %v258, %v274
      %v298 = vmul.f32 %v259, %v274
      %v299 = vmul.f32 %v260, %v274
      %v300 = vmul.f32 %v261, %v274
      %v301 = vmul.f32 %v262, %v274
      %v302 = vmul.f32 %v263, %v274
      %v303 = vmul.f32 %v264, %v274
      %v304 = vmul.f32 %v265, %v274
      %v305 = vmul.f32 %v266, %v274
      %v306 = vmul.f32 %v267, %v274
      %v307 = vmul.f32 %v268, %v274
      %v308 = vld [vmem:[%s2] sm:$0x1]
      %v310 = vlaneseq
      %v311 = vshrl.u32 %v310, 7
      %v312 = vsub.s32 0, %v311
      %v313 = vrot.slane %v308, %v312
      %v315 = vadd.f32 %v276, %v313
      %v316 = vadd.f32 %v277, %v313
      %v317 = vadd.f32 %v278, %v313
      %v318 = vadd.f32 %v279, %v313
      %v319 = vadd.f32 %v280, %v313
      %v320 = vadd.f32 %v281, %v313
      %v321 = vadd.f32 %v282, %v313
      %v322 = vadd.f32 %v283, %v313
      %v323 = vadd.f32 %v284, %v313
      %v324 = vadd.f32 %v285, %v313
      %v325 = vadd.f32 %v286, %v313
      %v326 = vadd.f32 %v287, %v313
      %v327 = vadd.f32 %v288, %v313
      %v328 = vadd.f32 %v289, %v313
      %v329 = vadd.f32 %v290, %v313
      %v330 = vadd.f32 %v291, %v313
      %v331 = vadd.f32 %v292, %v313
      %v332 = vadd.f32 %v293, %v313
      %v333 = vadd.f32 %v294, %v313
      %v334 = vadd.f32 %v295, %v313
      %v335 = vadd.f32 %v296, %v313
      %v336 = vadd.f32 %v297, %v313
      %v337 = vadd.f32 %v298, %v313
      %v338 = vadd.f32 %v299, %v313
      %v339 = vadd.f32 %v300, %v313
      %v340 = vadd.f32 %v301, %v313
      %v341 = vadd.f32 %v302, %v313
      %v342 = vadd.f32 %v303, %v313
      %v343 = vadd.f32 %v304, %v313
      %v344 = vadd.f32 %v305, %v313
      %v345 = vadd.f32 %v306, %v313
      %v346 = vadd.f32 %v307, %v313
      %v347 = vmax.f32 %v315, 0.0
      %v348 = vmax.f32 %v316, 0.0
      %v349 = vmax.f32 %v317, 0.0
      %v350 = vmax.f32 %v318, 0.0
      %v351 = vmax.f32 %v319, 0.0
      %v352 = vmax.f32 %v320, 0.0
      %v353 = vmax.f32 %v321, 0.0
      %v354 = vmax.f32 %v322, 0.0
      %v355 = vmax.f32 %v323, 0.0
      %v356 = vmax.f32 %v324, 0.0
      %v357 = vmax.f32 %v325, 0.0
      %v358 = vmax.f32 %v326, 0.0
      %v359 = vmax.f32 %v327, 0.0
      %v360 = vmax.f32 %v328, 0.0
      %v361 = vmax.f32 %v329, 0.0
      %v362 = vmax.f32 %v330, 0.0
      %v363 = vmax.f32 %v331, 0.0
      %v364 = vmax.f32 %v332, 0.0
      %v365 = vmax.f32 %v333, 0.0
      %v366 = vmax.f32 %v334, 0.0
      %v367 = vmax.f32 %v335, 0.0
      %v368 = vmax.f32 %v336, 0.0
      %v369 = vmax.f32 %v337, 0.0
      %v370 = vmax.f32 %v338, 0.0
      %v371 = vmax.f32 %v339, 0.0
      %v372 = vmax.f32 %v340, 0.0
      %v373 = vmax.f32 %v341, 0.0
      %v374 = vmax.f32 %v342, 0.0
      %v375 = vmax.f32 %v343, 0.0
      %v376 = vmax.f32 %v344, 0.0
      %v377 = vmax.f32 %v345, 0.0
      %v378 = vmax.f32 %v346, 0.0
      %vm379 = vcmask 261120
      %380 = vst.msk [vmem:[#allocation2] sm:$0xff] %vm379, 0.0
      %381 = vst.msk [vmem:[#allocation2 + $0x8] sm:$0xff] %vm379, 0.0
      %vm382 = vcmask 254976
      %383 = vst.msk [vmem:[#allocation2 + $0x10] sm:$0x3] %vm382, 0.0
      %s384 = scalar_lea.vmem [#allocation2], 408
      %385 = vst.msk [vmem:[%s384] sm:$0xff] %vm379, 0.0
      %386 = vst.msk [vmem:[%s384 + $0x8] sm:$0xff] %vm379, 0.0
      %387 = vst.msk [vmem:[%s384 + $0x10] sm:$0x3] %vm382, 0.0
      %s388 = scalar_lea.vmem [#allocation2], 24
      %vm389 = vcmask 253952
      %390 = vst.msk [vmem:[%s388] sm:$0x1] %vm389, 0.0
      %391 = vst.msk [vmem:[%s388 + $0x18] sm:$0x1] %vm389, 0.0
      %392 = vst.msk [vmem:[%s388 + $0x30] sm:$0x1] %vm389, 0.0
      %393 = vst.msk [vmem:[%s388 + $0x48] sm:$0x1] %vm389, 0.0
      %394 = vst.msk [vmem:[%s388 + $0x60] sm:$0x1] %vm389, 0.0
      %395 = vst.msk [vmem:[%s388 + $0x78] sm:$0x1] %vm389, 0.0
      %396 = vst.msk [vmem:[%s388 + $0x90] sm:$0x1] %vm389, 0.0
      %397 = vst.msk [vmem:[%s388 + $0xa8] sm:$0x1] %vm389, 0.0
      %398 = vst.msk [vmem:[%s388 + $0xc0] sm:$0x1] %vm389, 0.0
      %399 = vst.msk [vmem:[%s388 + $0xd8] sm:$0x1] %vm389, 0.0
      %400 = vst.msk [vmem:[%s388 + $0xf0] sm:$0x1] %vm389, 0.0
      %401 = vst.msk [vmem:[%s388 + $0x108] sm:$0x1] %vm389, 0.0
      %402 = vst.msk [vmem:[%s388 + $0x120] sm:$0x1] %vm389, 0.0
      %403 = vst.msk [vmem:[%s388 + $0x138] sm:$0x1] %vm389, 0.0
      %404 = vst.msk [vmem:[%s388 + $0x150] sm:$0x1] %vm389, 0.0
      %405 = vst.msk [vmem:[%s388 + $0x168] sm:$0x1] %vm389, 0.0
      %406 = vst.msk [vmem:[%s388 + $0x11] sm:$0x1] %vm389, 0.0
      %407 = vst.msk [vmem:[%s388 + $0x29] sm:$0x1] %vm389, 0.0
      %408 = vst.msk [vmem:[%s388 + $0x41] sm:$0x1] %vm389, 0.0
      %409 = vst.msk [vmem:[%s388 + $0x59] sm:$0x1] %vm389, 0.0
      %410 = vst.msk [vmem:[%s388 + $0x71] sm:$0x1] %vm389, 0.0
      %411 = vst.msk [vmem:[%s388 + $0x89] sm:$0x1] %vm389, 0.0
      %412 = vst.msk [vmem:[%s388 + $0xa1] sm:$0x1] %vm389, 0.0
      %413 = vst.msk [vmem:[%s388 + $0xb9] sm:$0x1] %vm389, 0.0
      %414 = vst.msk [vmem:[%s388 + $0xd1] sm:$0x1] %vm389, 0.0
      %415 = vst.msk [vmem:[%s388 + $0xe9] sm:$0x1] %vm389, 0.0
      %416 = vst.msk [vmem:[%s388 + $0x101] sm:$0x1] %vm389, 0.0
      %417 = vst.msk [vmem:[%s388 + $0x119] sm:$0x1] %vm389, 0.0
      %418 = vst.msk [vmem:[%s388 + $0x131] sm:$0x1] %vm389, 0.0
      %419 = vst.msk [vmem:[%s388 + $0x149] sm:$0x1] %vm389, 0.0
      %420 = vst.msk [vmem:[%s388 + $0x161] sm:$0x1] %vm389, 0.0
      %421 = vst.msk [vmem:[%s388 + $0x179] sm:$0x1] %vm389, 0.0
      %422 = vst.msk [vmem:[%s388 + $0x1] sm:$0xff] %vm379, %v347
      %423 = vst.msk [vmem:[%s388 + $0x9] sm:$0xff] %vm379, %v348
      %424 = vst.msk [vmem:[%s388 + $0x19] sm:$0xff] %vm379, %v349
      %425 = vst.msk [vmem:[%s388 + $0x21] sm:$0xff] %vm379, %v350
      %426 = vst.msk [vmem:[%s388 + $0x31] sm:$0xff] %vm379, %v351
      %427 = vst.msk [vmem:[%s388 + $0x39] sm:$0xff] %vm379, %v352
      %428 = vst.msk [vmem:[%s388 + $0x49] sm:$0xff] %vm379, %v353
      %429 = vst.msk [vmem:[%s388 + $0x51] sm:$0xff] %vm379, %v354
      %430 = vst.msk [vmem:[%s388 + $0x61] sm:$0xff] %vm379, %v355
      %431 = vst.msk [vmem:[%s388 + $0x69] sm:$0xff] %vm379, %v356
      %432 = vst.msk [vmem:[%s388 + $0x79] sm:$0xff] %vm379, %v357
      %433 = vst.msk [vmem:[%s388 + $0x81] sm:$0xff] %vm379, %v358
      %434 = vst.msk [vmem:[%s388 + $0x91] sm:$0xff] %vm379, %v359
      %435 = vst.msk [vmem:[%s388 + $0x99] sm:$0xff] %vm379, %v360
      %436 = vst.msk [vmem:[%s388 + $0xa9] sm:$0xff] %vm379, %v361
      %437 = vst.msk [vmem:[%s388 + $0xb1] sm:$0xff] %vm379, %v362
      %438 = vst.msk [vmem:[%s388 + $0xc1] sm:$0xff] %vm379, %v363
      %439 = vst.msk [vmem:[%s388 + $0xc9] sm:$0xff] %vm379, %v364
      %440 = vst.msk [vmem:[%s388 + $0xd9] sm:$0xff] %vm379, %v365
      %441 = vst.msk [vmem:[%s388 + $0xe1] sm:$0xff] %vm379, %v366
      %442 = vst.msk [vmem:[%s388 + $0xf1] sm:$0xff] %vm379, %v367
      %443 = vst.msk [vmem:[%s388 + $0xf9] sm:$0xff] %vm379, %v368
      %444 = vst.msk [vmem:[%s388 + $0x109] sm:$0xff] %vm379, %v369
      %445 = vst.msk [vmem:[%s388 + $0x111] sm:$0xff] %vm379, %v370
      %446 = vst.msk [vmem:[%s388 + $0x121] sm:$0xff] %vm379, %v371
      %447 = vst.msk [vmem:[%s388 + $0x129] sm:$0xff] %vm379, %v372
      %448 = vst.msk [vmem:[%s388 + $0x139] sm:$0xff] %vm379, %v373
      %449 = vst.msk [vmem:[%s388 + $0x141] sm:$0xff] %vm379, %v374
      %450 = vst.msk [vmem:[%s388 + $0x151] sm:$0xff] %vm379, %v375
      %451 = vst.msk [vmem:[%s388 + $0x159] sm:$0xff] %vm379, %v376
      %452 = vst.msk [vmem:[%s388 + $0x169] sm:$0xff] %vm379, %v377
      %453 = vst.msk [vmem:[%s388 + $0x171] sm:$0xff] %vm379, %v378
      %v454 = vld [vmem:[#allocation2] sm:$0xff]
      %v455 = vld [vmem:[#allocation2 + $0x8] sm:$0xff]
      %v456 = vld [vmem:[#allocation2 + $0x18] sm:$0xff]
      %v457 = vld [vmem:[#allocation2 + $0x20] sm:$0xff]
      %v458 = vld [vmem:[#allocation2 + $0x30] sm:$0xff]
      %v459 = vld [vmem:[#allocation2 + $0x38] sm:$0xff]
      %v460 = vld [vmem:[#allocation2 + $0x48] sm:$0xff]
      %v461 = vld [vmem:[#allocation2 + $0x50] sm:$0xff]
      %v462 = vld [vmem:[#allocation2 + $0x60] sm:$0xff]
      %v463 = vld [vmem:[#allocation2 + $0x68] sm:$0xff]
      %v464 = vld [vmem:[#allocation2 + $0x78] sm:$0xff]
      %v465 = vld [vmem:[#allocation2 + $0x80] sm:$0xff]
      %v466 = vld [vmem:[#allocation2 + $0x90] sm:$0xff]
      %v467 = vld [vmem:[#allocation2 + $0x98] sm:$0xff]
      %v468 = vld [vmem:[#allocation2 + $0xa8] sm:$0xff]
      %v469 = vld [vmem:[#allocation2 + $0xb0] sm:$0xff]
      %v470 = vld [vmem:[#allocation2 + $0xc0] sm:$0xff]
      %v471 = vld [vmem:[#allocation2 + $0xc8] sm:$0xff]
      %v472 = vld [vmem:[#allocation2 + $0xd8] sm:$0xff]
      %v473 = vld [vmem:[#allocation2 + $0xe0] sm:$0xff]
      %v474 = vld [vmem:[#allocation2 + $0xf0] sm:$0xff]
      %v475 = vld [vmem:[#allocation2 + $0xf8] sm:$0xff]
      %v476 = vld [vmem:[#allocation2 + $0x108] sm:$0xff]
      %v477 = vld [vmem:[#allocation2 + $0x110] sm:$0xff]
      %v478 = vld [vmem:[#allocation2 + $0x120] sm:$0xff]
      %v479 = vld [vmem:[#allocation2 + $0x128] sm:$0xff]
      %v480 = vld [vmem:[#allocation2 + $0x138] sm:$0xff]
      %v481 = vld [vmem:[#allocation2 + $0x140] sm:$0xff]
      %v482 = vld [vmem:[#allocation2 + $0x150] sm:$0xff]
      %v483 = vld [vmem:[#allocation2 + $0x158] sm:$0xff]
      %v484 = vld [vmem:[#allocation2 + $0x168] sm:$0xff]
      %v485 = vld [vmem:[#allocation2 + $0x170] sm:$0xff]
      %486 = vst.msk [vmem:[#allocation3] sm:$0xff] %vm379, %v454
      %487 = vst.msk [vmem:[#allocation3 + $0x18] sm:$0xff] %vm379, %v455
      %488 = vst.msk [vmem:[#allocation3 + $0x30] sm:$0xff] %vm379, %v456
      %489 = vst.msk [vmem:[#allocation3 + $0x48] sm:$0xff] %vm379, %v457
      %490 = vst.msk [vmem:[#allocation3 + $0x60] sm:$0xff] %vm379, %v458
      %491 = vst.msk [vmem:[#allocation3 + $0x78] sm:$0xff] %vm379, %v459
      %492 = vst.msk [vmem:[#allocation3 + $0x90] sm:$0xff] %vm379, %v460
      %493 = vst.msk [vmem:[#allocation3 + $0xa8] sm:$0xff] %vm379, %v461
      %494 = vst.msk [vmem:[#allocation3 + $0xc0] sm:$0xff] %vm379, %v462
      %495 = vst.msk [vmem:[#allocation3 + $0xd8] sm:$0xff] %vm379, %v463
      %496 = vst.msk [vmem:[#allocation3 + $0xf0] sm:$0xff] %vm379, %v464
      %497 = vst.msk [vmem:[#allocation3 + $0x108] sm:$0xff] %vm379, %v465
      %498 = vst.msk [vmem:[#allocation3 + $0x120] sm:$0xff] %vm379, %v466
      %499 = vst.msk [vmem:[#allocation3 + $0x138] sm:$0xff] %vm379, %v467
      %500 = vst.msk [vmem:[#allocation3 + $0x150] sm:$0xff] %vm379, %v468
      %501 = vst.msk [vmem:[#allocation3 + $0x168] sm:$0xff] %vm379, %v469
      %502 = vst.msk [vmem:[#allocation3 + $0x180] sm:$0xff] %vm379, %v470
      %503 = vst.msk [vmem:[#allocation3 + $0x198] sm:$0xff] %vm379, %v471
      %504 = vst.msk [vmem:[#allocation3 + $0x1b0] sm:$0xff] %vm379, %v472
      %505 = vst.msk [vmem:[#allocation3 + $0x1c8] sm:$0xff] %vm379, %v473
      %506 = vst.msk [vmem:[#allocation3 + $0x1e0] sm:$0xff] %vm379, %v474
      %507 = vst.msk [vmem:[#allocation3 + $0x1f8] sm:$0xff] %vm379, %v475
      %508 = vst.msk [vmem:[#allocation3 + $0x210] sm:$0xff] %vm379, %v476
      %509 = vst.msk [vmem:[#allocation3 + $0x228] sm:$0xff] %vm379, %v477
      %510 = vst.msk [vmem:[#allocation3 + $0x240] sm:$0xff] %vm379, %v478
      %511 = vst.msk [vmem:[#allocation3 + $0x258] sm:$0xff] %vm379, %v479
      %512 = vst.msk [vmem:[#allocation3 + $0x270] sm:$0xff] %vm379, %v480
      %513 = vst.msk [vmem:[#allocation3 + $0x288] sm:$0xff] %vm379, %v481
      %514 = vst.msk [vmem:[#allocation3 + $0x2a0] sm:$0xff] %vm379, %v482
      %515 = vst.msk [vmem:[#allocation3 + $0x2b8] sm:$0xff] %vm379, %v483
      %516 = vst.msk [vmem:[#allocation3 + $0x2d0] sm:$0xff] %vm379, %v484
      %517 = vst.msk [vmem:[#allocation3 + $0x2e8] sm:$0xff] %vm379, %v485
      %v518 = vld [vmem:[#allocation2 + $0x1] sm:$0xff]
      %v519 = vld [vmem:[#allocation2 + $0x9] sm:$0xff]
      %v520 = vld [vmem:[#allocation2 + $0x19] sm:$0xff]
      %v521 = vld [vmem:[#allocation2 + $0x21] sm:$0xff]
      %v522 = vld [vmem:[#allocation2 + $0x31] sm:$0xff]
      %v523 = vld [vmem:[#allocation2 + $0x39] sm:$0xff]
      %v524 = vld [vmem:[#allocation2 + $0x49] sm:$0xff]
      %v525 = vld [vmem:[#allocation2 + $0x51] sm:$0xff]
      %v526 = vld [vmem:[#allocation2 + $0x61] sm:$0xff]
      %v527 = vld [vmem:[#allocation2 + $0x69] sm:$0xff]
      %v528 = vld [vmem:[#allocation2 + $0x79] sm:$0xff]
      %v529 = vld [vmem:[#allocation2 + $0x81] sm:$0xff]
      %v530 = vld [vmem:[#allocation2 + $0x91] sm:$0xff]
      %v531 = vld [vmem:[#allocation2 + $0x99] sm:$0xff]
      %v532 = vld [vmem:[#allocation2 + $0xa9] sm:$0xff]
      %v533 = vld [vmem:[#allocation2 + $0xb1] sm:$0xff]
      %v534 = vld [vmem:[#allocation2 + $0xc1] sm:$0xff]
      %v535 = vld [vmem:[#allocation2 + $0xc9] sm:$0xff]
      %v536 = vld [vmem:[#allocation2 + $0xd9] sm:$0xff]
      %v537 = vld [vmem:[#allocation2 + $0xe1] sm:$0xff]
      %v538 = vld [vmem:[#allocation2 + $0xf1] sm:$0xff]
      %v539 = vld [vmem:[#allocation2 + $0xf9] sm:$0xff]
      %v540 = vld [vmem:[#allocation2 + $0x109] sm:$0xff]
      %v541 = vld [vmem:[#allocation2 + $0x111] sm:$0xff]
      %v542 = vld [vmem:[#allocation2 + $0x121] sm:$0xff]
      %v543 = vld [vmem:[#allocation2 + $0x129] sm:$0xff]
      %v544 = vld [vmem:[#allocation2 + $0x139] sm:$0xff]
      %v545 = vld [vmem:[#allocation2 + $0x141] sm:$0xff]
      %v546 = vld [vmem:[#allocation2 + $0x151] sm:$0xff]
      %v547 = vld [vmem:[#allocation2 + $0x159] sm:$0xff]
      %v548 = vld [vmem:[#allocation2 + $0x169] sm:$0xff]
      %v549 = vld [vmem:[#allocation2 + $0x171] sm:$0xff]
      %582 = vrot.lane.b32.xlu0 %v518, 32
      %v583 = vpop.permute.xlu0 %582
      %584 = vrot.lane.b32.xlu0 %v519, 32
      %v585 = vpop.permute.xlu0 %584
      %586 = vrot.lane.b32.xlu0 %v520, 32
      %v587 = vpop.permute.xlu0 %586
      %588 = vrot.lane.b32.xlu0 %v521, 32
      %v589 = vpop.permute.xlu0 %588
      %590 = vrot.lane.b32.xlu0 %v522, 32
      %v591 = vpop.permute.xlu0 %590
      %592 = vrot.lane.b32.xlu0 %v523, 32
      %v593 = vpop.permute.xlu0 %592
      %594 = vrot.lane.b32.xlu0 %v524, 32
      %v595 = vpop.permute.xlu0 %594
      %596 = vrot.lane.b32.xlu0 %v525, 32
      %v597 = vpop.permute.xlu0 %596
      %598 = vrot.lane.b32.xlu0 %v526, 32
      %v599 = vpop.permute.xlu0 %598
      %600 = vrot.lane.b32.xlu0 %v527, 32
      %v601 = vpop.permute.xlu0 %600
      %602 = vrot.lane.b32.xlu0 %v528, 32
      %v603 = vpop.permute.xlu0 %602
      %604 = vrot.lane.b32.xlu0 %v529, 32
      %v605 = vpop.permute.xlu0 %604
      %606 = vrot.lane.b32.xlu0 %v530, 32
      %v607 = vpop.permute.xlu0 %606
      %608 = vrot.lane.b32.xlu0 %v531, 32
      %v609 = vpop.permute.xlu0 %608
      %610 = vrot.lane.b32.xlu0 %v532, 32
      %v611 = vpop.permute.xlu0 %610
      %612 = vrot.lane.b32.xlu0 %v533, 32
      %v613 = vpop.permute.xlu0 %612
      %614 = vrot.lane.b32.xlu0 %v534, 32
      %v615 = vpop.permute.xlu0 %614
      %616 = vrot.lane.b32.xlu0 %v535, 32
      %v617 = vpop.permute.xlu0 %616
      %618 = vrot.lane.b32.xlu0 %v536, 32
      %v619 = vpop.permute.xlu0 %618
      %620 = vrot.lane.b32.xlu0 %v537, 32
      %v621 = vpop.permute.xlu0 %620
      %622 = vrot.lane.b32.xlu0 %v538, 32
      %v623 = vpop.permute.xlu0 %622
      %624 = vrot.lane.b32.xlu0 %v539, 32
      %v625 = vpop.permute.xlu0 %624
      %626 = vrot.lane.b32.xlu0 %v540, 32
      %v627 = vpop.permute.xlu0 %626
      %628 = vrot.lane.b32.xlu0 %v541, 32
      %v629 = vpop.permute.xlu0 %628
      %630 = vrot.lane.b32.xlu0 %v542, 32
      %v631 = vpop.permute.xlu0 %630
      %632 = vrot.lane.b32.xlu0 %v543, 32
      %v633 = vpop.permute.xlu0 %632
      %634 = vrot.lane.b32.xlu0 %v544, 32
      %v635 = vpop.permute.xlu0 %634
      %636 = vrot.lane.b32.xlu0 %v545, 32
      %v637 = vpop.permute.xlu0 %636
      %638 = vrot.lane.b32.xlu0 %v546, 32
      %v639 = vpop.permute.xlu0 %638
      %640 = vrot.lane.b32.xlu0 %v547, 32
      %v641 = vpop.permute.xlu0 %640
      %642 = vrot.lane.b32.xlu0 %v548, 32
      %v643 = vpop.permute.xlu0 %642
      %644 = vrot.lane.b32.xlu0 %v549, 32
      %v645 = vpop.permute.xlu0 %644
      %vm678 = vcmask 523520
      %679 = vst.msk [vmem:[#allocation3] sm:$0xff] %vm678, %v583
      %680 = vst.msk [vmem:[#allocation3 + $0x18] sm:$0xff] %vm678, %v585
      %681 = vst.msk [vmem:[#allocation3 + $0x30] sm:$0xff] %vm678, %v587
      %682 = vst.msk [vmem:[#allocation3 + $0x48] sm:$0xff] %vm678, %v589
      %683 = vst.msk [vmem:[#allocation3 + $0x60] sm:$0xff] %vm678, %v591
      %684 = vst.msk [vmem:[#allocation3 + $0x78] sm:$0xff] %vm678, %v593
      %685 = vst.msk [vmem:[#allocation3 + $0x90] sm:$0xff] %vm678, %v595
      %686 = vst.msk [vmem:[#allocation3 + $0xa8] sm:$0xff] %vm678, %v597
      %687 = vst.msk [vmem:[#allocation3 + $0xc0] sm:$0xff] %vm678, %v599
      %688 = vst.msk [vmem:[#allocation3 + $0xd8] sm:$0xff] %vm678, %v601
      %689 = vst.msk [vmem:[#allocation3 + $0xf0] sm:$0xff] %vm678, %v603
      %690 = vst.msk [vmem:[#allocation3 + $0x108] sm:$0xff] %vm678, %v605
      %691 = vst.msk [vmem:[#allocation3 + $0x120] sm:$0xff] %vm678, %v607
      %692 = vst.msk [vmem:[#allocation3 + $0x138] sm:$0xff] %vm678, %v609
      %693 = vst.msk [vmem:[#allocation3 + $0x150] sm:$0xff] %vm678, %v611
      %694 = vst.msk [vmem:[#allocation3 + $0x168] sm:$0xff] %vm678, %v613
      %695 = vst.msk [vmem:[#allocation3 + $0x180] sm:$0xff] %vm678, %v615
      %696 = vst.msk [vmem:[#allocation3 + $0x198] sm:$0xff] %vm678, %v617
      %697 = vst.msk [vmem:[#allocation3 + $0x1b0] sm:$0xff] %vm678, %v619
      %698 = vst.msk [vmem:[#allocation3 + $0x1c8] sm:$0xff] %vm678, %v621
      %699 = vst.msk [vmem:[#allocation3 + $0x1e0] sm:$0xff] %vm678, %v623
      %700 = vst.msk [vmem:[#allocation3 + $0x1f8] sm:$0xff] %vm678, %v625
      %701 = vst.msk [vmem:[#allocation3 + $0x210] sm:$0xff] %vm678, %v627
      %702 = vst.msk [vmem:[#allocation3 + $0x228] sm:$0xff] %vm678, %v629
      %703 = vst.msk [vmem:[#allocation3 + $0x240] sm:$0xff] %vm678, %v631
      %704 = vst.msk [vmem:[#allocation3 + $0x258] sm:$0xff] %vm678, %v633
      %705 = vst.msk [vmem:[#allocation3 + $0x270] sm:$0xff] %vm678, %v635
      %706 = vst.msk [vmem:[#allocation3 + $0x288] sm:$0xff] %vm678, %v637
      %707 = vst.msk [vmem:[#allocation3 + $0x2a0] sm:$0xff] %vm678, %v639
      %708 = vst.msk [vmem:[#allocation3 + $0x2b8] sm:$0xff] %vm678, %v641
      %709 = vst.msk [vmem:[#allocation3 + $0x2d0] sm:$0xff] %vm678, %v643
      %710 = vst.msk [vmem:[#allocation3 + $0x2e8] sm:$0xff] %vm678, %v645
      %v711 = vld [vmem:[#allocation2 + $0x2] sm:$0xff]
      %v712 = vld [vmem:[#allocation2 + $0xa] sm:$0xff]
      %v713 = vld [vmem:[#allocation2 + $0x1a] sm:$0xff]
      %v714 = vld [vmem:[#allocation2 + $0x22] sm:$0xff]
      %v715 = vld [vmem:[#allocation2 + $0x32] sm:$0xff]
      %v716 = vld [vmem:[#allocation2 + $0x3a] sm:$0xff]
      %v717 = vld [vmem:[#allocation2 + $0x4a] sm:$0xff]
      %v718 = vld [vmem:[#allocation2 + $0x52] sm:$0xff]
      %v719 = vld [vmem:[#allocation2 + $0x62] sm:$0xff]
      %v720 = vld [vmem:[#allocation2 + $0x6a] sm:$0xff]
      %v721 = vld [vmem:[#allocation2 + $0x7a] sm:$0xff]
      %v722 = vld [vmem:[#allocation2 + $0x82] sm:$0xff]
      %v723 = vld [vmem:[#allocation2 + $0x92] sm:$0xff]
      %v724 = vld [vmem:[#allocation2 + $0x9a] sm:$0xff]
      %v725 = vld [vmem:[#allocation2 + $0xaa] sm:$0xff]
      %v726 = vld [vmem:[#allocation2 + $0xb2] sm:$0xff]
      %v727 = vld [vmem:[#allocation2 + $0xc2] sm:$0xff]
      %v728 = vld [vmem:[#allocation2 + $0xca] sm:$0xff]
      %v729 = vld [vmem:[#allocation2 + $0xda] sm:$0xff]
      %v730 = vld [vmem:[#allocation2 + $0xe2] sm:$0xff]
      %v731 = vld [vmem:[#allocation2 + $0xf2] sm:$0xff]
      %v732 = vld [vmem:[#allocation2 + $0xfa] sm:$0xff]
      %v733 = vld [vmem:[#allocation2 + $0x10a] sm:$0xff]
      %v734 = vld [vmem:[#allocation2 + $0x112] sm:$0xff]
      %v735 = vld [vmem:[#allocation2 + $0x122] sm:$0xff]
      %v736 = vld [vmem:[#allocation2 + $0x12a] sm:$0xff]
      %v737 = vld [vmem:[#allocation2 + $0x13a] sm:$0xff]
      %v738 = vld [vmem:[#allocation2 + $0x142] sm:$0xff]
      %v739 = vld [vmem:[#allocation2 + $0x152] sm:$0xff]
      %v740 = vld [vmem:[#allocation2 + $0x15a] sm:$0xff]
      %v741 = vld [vmem:[#allocation2 + $0x16a] sm:$0xff]
      %v742 = vld [vmem:[#allocation2 + $0x172] sm:$0xff]
      %775 = vrot.lane.b32.xlu0 %v711, 64
      %v776 = vpop.permute.xlu0 %775
      %777 = vrot.lane.b32.xlu0 %v712, 64
      %v778 = vpop.permute.xlu0 %777
      %779 = vrot.lane.b32.xlu0 %v713, 64
      %v780 = vpop.permute.xlu0 %779
      %781 = vrot.lane.b32.xlu0 %v714, 64
      %v782 = vpop.permute.xlu0 %781
      %783 = vrot.lane.b32.xlu0 %v715, 64
      %v784 = vpop.permute.xlu0 %783
      %785 = vrot.lane.b32.xlu0 %v716, 64
      %v786 = vpop.permute.xlu0 %785
      %787 = vrot.lane.b32.xlu0 %v717, 64
      %v788 = vpop.permute.xlu0 %787
      %789 = vrot.lane.b32.xlu0 %v718, 64
      %v790 = vpop.permute.xlu0 %789
      %791 = vrot.lane.b32.xlu0 %v719, 64
      %v792 = vpop.permute.xlu0 %791
      %793 = vrot.lane.b32.xlu0 %v720, 64
      %v794 = vpop.permute.xlu0 %793
      %795 = vrot.lane.b32.xlu0 %v721, 64
      %v796 = vpop.permute.xlu0 %795
      %797 = vrot.lane.b32.xlu0 %v722, 64
      %v798 = vpop.permute.xlu0 %797
      %799 = vrot.lane.b32.xlu0 %v723, 64
      %v800 = vpop.permute.xlu0 %799
      %801 = vrot.lane.b32.xlu0 %v724, 64
      %v802 = vpop.permute.xlu0 %801
      %803 = vrot.lane.b32.xlu0 %v725, 64
      %v804 = vpop.permute.xlu0 %803
      %805 = vrot.lane.b32.xlu0 %v726, 64
      %v806 = vpop.permute.xlu0 %805
      %807 = vrot.lane.b32.xlu0 %v727, 64
      %v808 = vpop.permute.xlu0 %807
      %809 = vrot.lane.b32.xlu0 %v728, 64
      %v810 = vpop.permute.xlu0 %809
      %811 = vrot.lane.b32.xlu0 %v729, 64
      %v812 = vpop.permute.xlu0 %811
      %813 = vrot.lane.b32.xlu0 %v730, 64
      %v814 = vpop.permute.xlu0 %813
      %815 = vrot.lane.b32.xlu0 %v731, 64
      %v816 = vpop.permute.xlu0 %815
      %817 = vrot.lane.b32.xlu0 %v732, 64
      %v818 = vpop.permute.xlu0 %817
      %819 = vrot.lane.b32.xlu0 %v733, 64
      %v820 = vpop.permute.xlu0 %819
      %821 = vrot.lane.b32.xlu0 %v734, 64
      %v822 = vpop.permute.xlu0 %821
      %823 = vrot.lane.b32.xlu0 %v735, 64
      %v824 = vpop.permute.xlu0 %823
      %825 = vrot.lane.b32.xlu0 %v736, 64
      %v826 = vpop.permute.xlu0 %825
      %827 = vrot.lane.b32.xlu0 %v737, 64
      %v828 = vpop.permute.xlu0 %827
      %829 = vrot.lane.b32.xlu0 %v738, 64
      %v830 = vpop.permute.xlu0 %829
      %831 = vrot.lane.b32.xlu0 %v739, 64
      %v832 = vpop.permute.xlu0 %831
      %833 = vrot.lane.b32.xlu0 %v740, 64
      %v834 = vpop.permute.xlu0 %833
      %835 = vrot.lane.b32.xlu0 %v741, 64
      %v836 = vpop.permute.xlu0 %835
      %837 = vrot.lane.b32.xlu0 %v742, 64
      %v838 = vpop.permute.xlu0 %837
      %vm871 = vcmask 785920
      %872 = vst.msk [vmem:[#allocation3] sm:$0xff] %vm871, %v776
      %873 = vst.msk [vmem:[#allocation3 + $0x18] sm:$0xff] %vm871, %v778
      %874 = vst.msk [vmem:[#allocation3 + $0x30] sm:$0xff] %vm871, %v780
      %875 = vst.msk [vmem:[#allocation3 + $0x48] sm:$0xff] %vm871, %v782
      %876 = vst.msk [vmem:[#allocation3 + $0x60] sm:$0xff] %vm871, %v784
      %877 = vst.msk [vmem:[#allocation3 + $0x78] sm:$0xff] %vm871, %v786
      %878 = vst.msk [vmem:[#allocation3 + $0x90] sm:$0xff] %vm871, %v788
      %879 = vst.msk [vmem:[#allocation3 + $0xa8] sm:$0xff] %vm871, %v790
      %880 = vst.msk [vmem:[#allocation3 + $0xc0] sm:$0xff] %vm871, %v792
      %881 = vst.msk [vmem:[#allocation3 + $0xd8] sm:$0xff] %vm871, %v794
      %882 = vst.msk [vmem:[#allocation3 + $0xf0] sm:$0xff] %vm871, %v796
      %883 = vst.msk [vmem:[#allocation3 + $0x108] sm:$0xff] %vm871, %v798
      %884 = vst.msk [vmem:[#allocation3 + $0x120] sm:$0xff] %vm871, %v800
      %885 = vst.msk [vmem:[#allocation3 + $0x138] sm:$0xff] %vm871, %v802
      %886 = vst.msk [vmem:[#allocation3 + $0x150] sm:$0xff] %vm871, %v804
      %887 = vst.msk [vmem:[#allocation3 + $0x168] sm:$0xff] %vm871, %v806
      %888 = vst.msk [vmem:[#allocation3 + $0x180] sm:$0xff] %vm871, %v808
      %889 = vst.msk [vmem:[#allocation3 + $0x198] sm:$0xff] %vm871, %v810
      %890 = vst.msk [vmem:[#allocation3 + $0x1b0] sm:$0xff] %vm871, %v812
      %891 = vst.msk [vmem:[#allocation3 + $0x1c8] sm:$0xff] %vm871, %v814
      %892 = vst.msk [vmem:[#allocation3 + $0x1e0] sm:$0xff] %vm871, %v816
      %893 = vst.msk [vmem:[#allocation3 + $0x1f8] sm:$0xff] %vm871, %v818
      %894 = vst.msk [vmem:[#allocation3 + $0x210] sm:$0xff] %vm871, %v820
      %895 = vst.msk [vmem:[#allocation3 + $0x228] sm:$0xff] %vm871, %v822
      %896 = vst.msk [vmem:[#allocation3 + $0x240] sm:$0xff] %vm871, %v824
      %897 = vst.msk [vmem:[#allocation3 + $0x258] sm:$0xff] %vm871, %v826
      %898 = vst.msk [vmem:[#allocation3 + $0x270] sm:$0xff] %vm871, %v828
      %899 = vst.msk [vmem:[#allocation3 + $0x288] sm:$0xff] %vm871, %v830
      %900 = vst.msk [vmem:[#allocation3 + $0x2a0] sm:$0xff] %vm871, %v832
      %901 = vst.msk [vmem:[#allocation3 + $0x2b8] sm:$0xff] %vm871, %v834
      %902 = vst.msk [vmem:[#allocation3 + $0x2d0] sm:$0xff] %vm871, %v836
      %903 = vst.msk [vmem:[#allocation3 + $0x2e8] sm:$0xff] %vm871, %v838
      %v904 = vld [vmem:[%s388] sm:$0xff]
      %v905 = vld [vmem:[%s388 + $0x8] sm:$0xff]
      %v906 = vld [vmem:[%s388 + $0x18] sm:$0xff]
      %v907 = vld [vmem:[%s388 + $0x20] sm:$0xff]
      %v908 = vld [vmem:[%s388 + $0x30] sm:$0xff]
      %v909 = vld [vmem:[%s388 + $0x38] sm:$0xff]
      %v910 = vld [vmem:[%s388 + $0x48] sm:$0xff]
      %v911 = vld [vmem:[%s388 + $0x50] sm:$0xff]
      %v912 = vld [vmem:[%s388 + $0x60] sm:$0xff]
      %v913 = vld [vmem:[%s388 + $0x68] sm:$0xff]
      %v914 = vld [vmem:[%s388 + $0x78] sm:$0xff]
      %v915 = vld [vmem:[%s388 + $0x80] sm:$0xff]
      %v916 = vld [vmem:[%s388 + $0x90] sm:$0xff]
      %v917 = vld [vmem:[%s388 + $0x98] sm:$0xff]
      %v918 = vld [vmem:[%s388 + $0xa8] sm:$0xff]
      %v919 = vld [vmem:[%s388 + $0xb0] sm:$0xff]
      %v920 = vld [vmem:[%s388 + $0xc0] sm:$0xff]
      %v921 = vld [vmem:[%s388 + $0xc8] sm:$0xff]
      %v922 = vld [vmem:[%s388 + $0xd8] sm:$0xff]
      %v923 = vld [vmem:[%s388 + $0xe0] sm:$0xff]
      %v924 = vld [vmem:[%s388 + $0xf0] sm:$0xff]
      %v925 = vld [vmem:[%s388 + $0xf8] sm:$0xff]
      %v926 = vld [vmem:[%s388 + $0x108] sm:$0xff]
      %v927 = vld [vmem:[%s388 + $0x110] sm:$0xff]
      %v928 = vld [vmem:[%s388 + $0x120] sm:$0xff]
      %v929 = vld [vmem:[%s388 + $0x128] sm:$0xff]
      %v930 = vld [vmem:[%s388 + $0x138] sm:$0xff]
      %v931 = vld [vmem:[%s388 + $0x140] sm:$0xff]
      %v932 = vld [vmem:[%s388 + $0x150] sm:$0xff]
      %v933 = vld [vmem:[%s388 + $0x158] sm:$0xff]
      %v934 = vld [vmem:[%s388 + $0x168] sm:$0xff]
      %v935 = vld [vmem:[%s388 + $0x170] sm:$0xff]
      %968 = vrot.lane.b32.xlu0 %v904, 96
      %v969 = vpop.permute.xlu0 %968
      %970 = vrot.lane.b32.xlu0 %v905, 96
      %v971 = vpop.permute.xlu0 %970
      %972 = vrot.lane.b32.xlu0 %v906, 96
      %v973 = vpop.permute.xlu0 %972
      %974 = vrot.lane.b32.xlu0 %v907, 96
      %v975 = vpop.permute.xlu0 %974
      %976 = vrot.lane.b32.xlu0 %v908, 96
      %v977 = vpop.permute.xlu0 %976
      %978 = vrot.lane.b32.xlu0 %v909, 96
      %v979 = vpop.permute.xlu0 %978
      %980 = vrot.lane.b32.xlu0 %v910, 96
      %v981 = vpop.permute.xlu0 %980
      %982 = vrot.lane.b32.xlu0 %v911, 96
      %v983 = vpop.permute.xlu0 %982
      %984 = vrot.lane.b32.xlu0 %v912, 96
      %v985 = vpop.permute.xlu0 %984
      %986 = vrot.lane.b32.xlu0 %v913, 96
      %v987 = vpop.permute.xlu0 %986
      %988 = vrot.lane.b32.xlu0 %v914, 96
      %v989 = vpop.permute.xlu0 %988
      %990 = vrot.lane.b32.xlu0 %v915, 96
      %v991 = vpop.permute.xlu0 %990
      %992 = vrot.lane.b32.xlu0 %v916, 96
      %v993 = vpop.permute.xlu0 %992
      %994 = vrot.lane.b32.xlu0 %v917, 96
      %v995 = vpop.permute.xlu0 %994
      %996 = vrot.lane.b32.xlu0 %v918, 96
      %v997 = vpop.permute.xlu0 %996
      %998 = vrot.lane.b32.xlu0 %v919, 96
      %v999 = vpop.permute.xlu0 %998
      %1000 = vrot.lane.b32.xlu0 %v920, 96
      %v1001 = vpop.permute.xlu0 %1000
      %1002 = vrot.lane.b32.xlu0 %v921, 96
      %v1003 = vpop.permute.xlu0 %1002
      %1004 = vrot.lane.b32.xlu0 %v922, 96
      %v1005 = vpop.permute.xlu0 %1004
      %1006 = vrot.lane.b32.xlu0 %v923, 96
      %v1007 = vpop.permute.xlu0 %1006
      %1008 = vrot.lane.b32.xlu0 %v924, 96
      %v1009 = vpop.permute.xlu0 %1008
      %1010 = vrot.lane.b32.xlu0 %v925, 96
      %v1011 = vpop.permute.xlu0 %1010
      %1012 = vrot.lane.b32.xlu0 %v926, 96
      %v1013 = vpop.permute.xlu0 %1012
      %1014 = vrot.lane.b32.xlu0 %v927, 96
      %v1015 = vpop.permute.xlu0 %1014
      %1016 = vrot.lane.b32.xlu0 %v928, 96
      %v1017 = vpop.permute.xlu0 %1016
      %1018 = vrot.lane.b32.xlu0 %v929, 96
      %v1019 = vpop.permute.xlu0 %1018
      %1020 = vrot.lane.b32.xlu0 %v930, 96
      %v1021 = vpop.permute.xlu0 %1020
      %1022 = vrot.lane.b32.xlu0 %v931, 96
      %v1023 = vpop.permute.xlu0 %1022
      %1024 = vrot.lane.b32.xlu0 %v932, 96
      %v1025 = vpop.permute.xlu0 %1024
      %1026 = vrot.lane.b32.xlu0 %v933, 96
      %v1027 = vpop.permute.xlu0 %1026
      %1028 = vrot.lane.b32.xlu0 %v934, 96
      %v1029 = vpop.permute.xlu0 %1028
      %1030 = vrot.lane.b32.xlu0 %v935, 96
      %v1031 = vpop.permute.xlu0 %1030
      %vm1064 = vcmask 1048320
      %1065 = vst.msk [vmem:[#allocation3] sm:$0xff] %vm1064, %v969
      %1066 = vst.msk [vmem:[#allocation3 + $0x18] sm:$0xff] %vm1064, %v971
      %1067 = vst.msk [vmem:[#allocation3 + $0x30] sm:$0xff] %vm1064, %v973
      %1068 = vst.msk [vmem:[#allocation3 + $0x48] sm:$0xff] %vm1064, %v975
      %1069 = vst.msk [vmem:[#allocation3 + $0x60] sm:$0xff] %vm1064, %v977
      %1070 = vst.msk [vmem:[#allocation3 + $0x78] sm:$0xff] %vm1064, %v979
      %1071 = vst.msk [vmem:[#allocation3 + $0x90] sm:$0xff] %vm1064, %v981
      %1072 = vst.msk [vmem:[#allocation3 + $0xa8] sm:$0xff] %vm1064, %v983
      %1073 = vst.msk [vmem:[#allocation3 + $0xc0] sm:$0xff] %vm1064, %v985
      %1074 = vst.msk [vmem:[#allocation3 + $0xd8] sm:$0xff] %vm1064, %v987
      %1075 = vst.msk [vmem:[#allocation3 + $0xf0] sm:$0xff] %vm1064, %v989
      %1076 = vst.msk [vmem:[#allocation3 + $0x108] sm:$0xff] %vm1064, %v991
      %1077 = vst.msk [vmem:[#allocation3 + $0x120] sm:$0xff] %vm1064, %v993
      %1078 = vst.msk [vmem:[#allocation3 + $0x138] sm:$0xff] %vm1064, %v995
      %1079 = vst.msk [vmem:[#allocation3 + $0x150] sm:$0xff] %vm1064, %v997
      %1080 = vst.msk [vmem:[#allocation3 + $0x168] sm:$0xff] %vm1064, %v999
      %1081 = vst.msk [vmem:[#allocation3 + $0x180] sm:$0xff] %vm1064, %v1001
      %1082 = vst.msk [vmem:[#allocation3 + $0x198] sm:$0xff] %vm1064, %v1003
      %1083 = vst.msk [vmem:[#allocation3 + $0x1b0] sm:$0xff] %vm1064, %v1005
      %1084 = vst.msk [vmem:[#allocation3 + $0x1c8] sm:$0xff] %vm1064, %v1007
      %1085 = vst.msk [vmem:[#allocation3 + $0x1e0] sm:$0xff] %vm1064, %v1009
      %1086 = vst.msk [vmem:[#allocation3 + $0x1f8] sm:$0xff] %vm1064, %v1011
      %1087 = vst.msk [vmem:[#allocation3 + $0x210] sm:$0xff] %vm1064, %v1013
      %1088 = vst.msk [vmem:[#allocation3 + $0x228] sm:$0xff] %vm1064, %v1015
      %1089 = vst.msk [vmem:[#allocation3 + $0x240] sm:$0xff] %vm1064, %v1017
      %1090 = vst.msk [vmem:[#allocation3 + $0x258] sm:$0xff] %vm1064, %v1019
      %1091 = vst.msk [vmem:[#allocation3 + $0x270] sm:$0xff] %vm1064, %v1021
      %1092 = vst.msk [vmem:[#allocation3 + $0x288] sm:$0xff] %vm1064, %v1023
      %1093 = vst.msk [vmem:[#allocation3 + $0x2a0] sm:$0xff] %vm1064, %v1025
      %1094 = vst.msk [vmem:[#allocation3 + $0x2b8] sm:$0xff] %vm1064, %v1027
      %1095 = vst.msk [vmem:[#allocation3 + $0x2d0] sm:$0xff] %vm1064, %v1029
      %1096 = vst.msk [vmem:[#allocation3 + $0x2e8] sm:$0xff] %vm1064, %v1031
      %v1097 = vld [vmem:[%s388 + $0x1] sm:$0xff]
      %v1098 = vld [vmem:[%s388 + $0x9] sm:$0xff]
      %v1099 = vld [vmem:[%s388 + $0x19] sm:$0xff]
      %v1100 = vld [vmem:[%s388 + $0x21] sm:$0xff]
      %v1101 = vld [vmem:[%s388 + $0x31] sm:$0xff]
      %v1102 = vld [vmem:[%s388 + $0x39] sm:$0xff]
      %v1103 = vld [vmem:[%s388 + $0x49] sm:$0xff]
      %v1104 = vld [vmem:[%s388 + $0x51] sm:$0xff]
      %v1105 = vld [vmem:[%s388 + $0x61] sm:$0xff]
      %v1106 = vld [vmem:[%s388 + $0x69] sm:$0xff]
      %v1107 = vld [vmem:[%s388 + $0x79] sm:$0xff]
      %v1108 = vld [vmem:[%s388 + $0x81] sm:$0xff]
      %v1109 = vld [vmem:[%s388 + $0x91] sm:$0xff]
      %v1110 = vld [vmem:[%s388 + $0x99] sm:$0xff]
      %v1111 = vld [vmem:[%s388 + $0xa9] sm:$0xff]
      %v1112 = vld [vmem:[%s388 + $0xb1] sm:$0xff]
      %v1113 = vld [vmem:[%s388 + $0xc1] sm:$0xff]
      %v1114 = vld [vmem:[%s388 + $0xc9] sm:$0xff]
      %v1115 = vld [vmem:[%s388 + $0xd9] sm:$0xff]
      %v1116 = vld [vmem:[%s388 + $0xe1] sm:$0xff]
      %v1117 = vld [vmem:[%s388 + $0xf1] sm:$0xff]
      %v1118 = vld [vmem:[%s388 + $0xf9] sm:$0xff]
      %v1119 = vld [vmem:[%s388 + $0x109] sm:$0xff]
      %v1120 = vld [vmem:[%s388 + $0x111] sm:$0xff]
      %v1121 = vld [vmem:[%s388 + $0x121] sm:$0xff]
      %v1122 = vld [vmem:[%s388 + $0x129] sm:$0xff]
      %v1123 = vld [vmem:[%s388 + $0x139] sm:$0xff]
      %v1124 = vld [vmem:[%s388 + $0x141] sm:$0xff]
      %v1125 = vld [vmem:[%s388 + $0x151] sm:$0xff]
      %v1126 = vld [vmem:[%s388 + $0x159] sm:$0xff]
      %v1127 = vld [vmem:[%s388 + $0x169] sm:$0xff]
      %v1128 = vld [vmem:[%s388 + $0x171] sm:$0xff]
      %1129 = vst.msk [vmem:[#allocation3 + $0x8] sm:$0xff] %vm379, %v1097
      %1130 = vst.msk [vmem:[#allocation3 + $0x20] sm:$0xff] %vm379, %v1098
      %1131 = vst.msk [vmem:[#allocation3 + $0x38] sm:$0xff] %vm379, %v1099
      %1132 = vst.msk [vmem:[#allocation3 + $0x50] sm:$0xff] %vm379, %v1100
      %1133 = vst.msk [vmem:[#allocation3 + $0x68] sm:$0xff] %vm379, %v1101
      %1134 = vst.msk [vmem:[#allocation3 + $0x80] sm:$0xff] %vm379, %v1102
      %1135 = vst.msk [vmem:[#allocation3 + $0x98] sm:$0xff] %vm379, %v1103
      %1136 = vst.msk [vmem:[#allocation3 + $0xb0] sm:$0xff] %vm379, %v1104
      %1137 = vst.msk [vmem:[#allocation3 + $0xc8] sm:$0xff] %vm379, %v1105
      %1138 = vst.msk [vmem:[#allocation3 + $0xe0] sm:$0xff] %vm379, %v1106
      %1139 = vst.msk [vmem:[#allocation3 + $0xf8] sm:$0xff] %vm379, %v1107
      %1140 = vst.msk [vmem:[#allocation3 + $0x110] sm:$0xff] %vm379, %v1108
      %1141 = vst.msk [vmem:[#allocation3 + $0x128] sm:$0xff] %vm379, %v1109
      %1142 = vst.msk [vmem:[#allocation3 + $0x140] sm:$0xff] %vm379, %v1110
      %1143 = vst.msk [vmem:[#allocation3 + $0x158] sm:$0xff] %vm379, %v1111
      %1144 = vst.msk [vmem:[#allocation3 + $0x170] sm:$0xff] %vm379, %v1112
      %1145 = vst.msk [vmem:[#allocation3 + $0x188] sm:$0xff] %vm379, %v1113
      %1146 = vst.msk [vmem:[#allocation3 + $0x1a0] sm:$0xff] %vm379, %v1114
      %1147 = vst.msk [vmem:[#allocation3 + $0x1b8] sm:$0xff] %vm379, %v1115
      %1148 = vst.msk [vmem:[#allocation3 + $0x1d0] sm:$0xff] %vm379, %v1116
      %1149 = vst.msk [vmem:[#allocation3 + $0x1e8] sm:$0xff] %vm379, %v1117
      %1150 = vst.msk [vmem:[#allocation3 + $0x200] sm:$0xff] %vm379, %v1118
      %1151 = vst.msk [vmem:[#allocation3 + $0x218] sm:$0xff] %vm379, %v1119
      %1152 = vst.msk [vmem:[#allocation3 + $0x230] sm:$0xff] %vm379, %v1120
      %1153 = vst.msk [vmem:[#allocation3 + $0x248] sm:$0xff] %vm379, %v1121
      %1154 = vst.msk [vmem:[#allocation3 + $0x260] sm:$0xff] %vm379, %v1122
      %1155 = vst.msk [vmem:[#allocation3 + $0x278] sm:$0xff] %vm379, %v1123
      %1156 = vst.msk [vmem:[#allocation3 + $0x290] sm:$0xff] %vm379, %v1124
      %1157 = vst.msk [vmem:[#allocation3 + $0x2a8] sm:$0xff] %vm379, %v1125
      %1158 = vst.msk [vmem:[#allocation3 + $0x2c0] sm:$0xff] %vm379, %v1126
      %1159 = vst.msk [vmem:[#allocation3 + $0x2d8] sm:$0xff] %vm379, %v1127
      %1160 = vst.msk [vmem:[#allocation3 + $0x2f0] sm:$0xff] %vm379, %v1128
      %v1161 = vld [vmem:[%s388 + $0x2] sm:$0xff]
      %v1162 = vld [vmem:[%s388 + $0xa] sm:$0xff]
      %v1163 = vld [vmem:[%s388 + $0x1a] sm:$0xff]
      %v1164 = vld [vmem:[%s388 + $0x22] sm:$0xff]
      %v1165 = vld [vmem:[%s388 + $0x32] sm:$0xff]
      %v1166 = vld [vmem:[%s388 + $0x3a] sm:$0xff]
      %v1167 = vld [vmem:[%s388 + $0x4a] sm:$0xff]
      %v1168 = vld [vmem:[%s388 + $0x52] sm:$0xff]
      %v1169 = vld [vmem:[%s388 + $0x62] sm:$0xff]
      %v1170 = vld [vmem:[%s388 + $0x6a] sm:$0xff]
      %v1171 = vld [vmem:[%s388 + $0x7a] sm:$0xff]
      %v1172 = vld [vmem:[%s388 + $0x82] sm:$0xff]
      %v1173 = vld [vmem:[%s388 + $0x92] sm:$0xff]
      %v1174 = vld [vmem:[%s388 + $0x9a] sm:$0xff]
      %v1175 = vld [vmem:[%s388 + $0xaa] sm:$0xff]
      %v1176 = vld [vmem:[%s388 + $0xb2] sm:$0xff]
      %v1177 = vld [vmem:[%s388 + $0xc2] sm:$0xff]
      %v1178 = vld [vmem:[%s388 + $0xca] sm:$0xff]
      %v1179 = vld [vmem:[%s388 + $0xda] sm:$0xff]
      %v1180 = vld [vmem:[%s388 + $0xe2] sm:$0xff]
      %v1181 = vld [vmem:[%s388 + $0xf2] sm:$0xff]
      %v1182 = vld [vmem:[%s388 + $0xfa] sm:$0xff]
      %v1183 = vld [vmem:[%s388 + $0x10a] sm:$0xff]
      %v1184 = vld [vmem:[%s388 + $0x112] sm:$0xff]
      %v1185 = vld [vmem:[%s388 + $0x122] sm:$0xff]
      %v1186 = vld [vmem:[%s388 + $0x12a] sm:$0xff]
      %v1187 = vld [vmem:[%s388 + $0x13a] sm:$0xff]
      %v1188 = vld [vmem:[%s388 + $0x142] sm:$0xff]
      %v1189 = vld [vmem:[%s388 + $0x152] sm:$0xff]
      %v1190 = vld [vmem:[%s388 + $0x15a] sm:$0xff]
      %v1191 = vld [vmem:[%s388 + $0x16a] sm:$0xff]
      %v1192 = vld [vmem:[%s388 + $0x172] sm:$0xff]
      %1225 = vrot.lane.b32.xlu0 %v1161, 32
      %v1226 = vpop.permute.xlu0 %1225
      %1227 = vrot.lane.b32.xlu0 %v1162, 32
      %v1228 = vpop.permute.xlu0 %1227
      %1229 = vrot.lane.b32.xlu0 %v1163, 32
      %v1230 = vpop.permute.xlu0 %1229
      %1231 = vrot.lane.b32.xlu0 %v1164, 32
      %v1232 = vpop.permute.xlu0 %1231
      %1233 = vrot.lane.b32.xlu0 %v1165, 32
      %v1234 = vpop.permute.xlu0 %1233
      %1235 = vrot.lane.b32.xlu0 %v1166, 32
      %v1236 = vpop.permute.xlu0 %1235
      %1237 = vrot.lane.b32.xlu0 %v1167, 32
      %v1238 = vpop.permute.xlu0 %1237
      %1239 = vrot.lane.b32.xlu0 %v1168, 32
      %v1240 = vpop.permute.xlu0 %1239
      %1241 = vrot.lane.b32.xlu0 %v1169, 32
      %v1242 = vpop.permute.xlu0 %1241
      %1243 = vrot.lane.b32.xlu0 %v1170, 32
      %v1244 = vpop.permute.xlu0 %1243
      %1245 = vrot.lane.b32.xlu0 %v1171, 32
      %v1246 = vpop.permute.xlu0 %1245
      %1247 = vrot.lane.b32.xlu0 %v1172, 32
      %v1248 = vpop.permute.xlu0 %1247
      %1249 = vrot.lane.b32.xlu0 %v1173, 32
      %v1250 = vpop.permute.xlu0 %1249
      %1251 = vrot.lane.b32.xlu0 %v1174, 32
      %v1252 = vpop.permute.xlu0 %1251
      %1253 = vrot.lane.b32.xlu0 %v1175, 32
      %v1254 = vpop.permute.xlu0 %1253
      %1255 = vrot.lane.b32.xlu0 %v1176, 32
      %v1256 = vpop.permute.xlu0 %1255
      %1257 = vrot.lane.b32.xlu0 %v1177, 32
      %v1258 = vpop.permute.xlu0 %1257
      %1259 = vrot.lane.b32.xlu0 %v1178, 32
      %v1260 = vpop.permute.xlu0 %1259
      %1261 = vrot.lane.b32.xlu0 %v1179, 32
      %v1262 = vpop.permute.xlu0 %1261
      %1263 = vrot.lane.b32.xlu0 %v1180, 32
      %v1264 = vpop.permute.xlu0 %1263
      %1265 = vrot.lane.b32.xlu0 %v1181, 32
      %v1266 = vpop.permute.xlu0 %1265
      %1267 = vrot.lane.b32.xlu0 %v1182, 32
      %v1268 = vpop.permute.xlu0 %1267
      %1269 = vrot.lane.b32.xlu0 %v1183, 32
      %v1270 = vpop.permute.xlu0 %1269
      %1271 = vrot.lane.b32.xlu0 %v1184, 32
      %v1272 = vpop.permute.xlu0 %1271
      %1273 = vrot.lane.b32.xlu0 %v1185, 32
      %v1274 = vpop.permute.xlu0 %1273
      %1275 = vrot.lane.b32.xlu0 %v1186, 32
      %v1276 = vpop.permute.xlu0 %1275
      %1277 = vrot.lane.b32.xlu0 %v1187, 32
      %v1278 = vpop.permute.xlu0 %1277
      %1279 = vrot.lane.b32.xlu0 %v1188, 32
      %v1280 = vpop.permute.xlu0 %1279
      %1281 = vrot.lane.b32.xlu0 %v1189, 32
      %v1282 = vpop.permute.xlu0 %1281
      %1283 = vrot.lane.b32.xlu0 %v1190, 32
      %v1284 = vpop.permute.xlu0 %1283
      %1285 = vrot.lane.b32.xlu0 %v1191, 32
      %v1286 = vpop.permute.xlu0 %1285
      %1287 = vrot.lane.b32.xlu0 %v1192, 32
      %v1288 = vpop.permute.xlu0 %1287
      %1321 = vst.msk [vmem:[#allocation3 + $0x8] sm:$0xff] %vm678, %v1226
      %1322 = vst.msk [vmem:[#allocation3 + $0x20] sm:$0xff] %vm678, %v1228
      %1323 = vst.msk [vmem:[#allocation3 + $0x38] sm:$0xff] %vm678, %v1230
      %1324 = vst.msk [vmem:[#allocation3 + $0x50] sm:$0xff] %vm678, %v1232
      %1325 = vst.msk [vmem:[#allocation3 + $0x68] sm:$0xff] %vm678, %v1234
      %1326 = vst.msk [vmem:[#allocation3 + $0x80] sm:$0xff] %vm678, %v1236
      %1327 = vst.msk [vmem:[#allocation3 + $0x98] sm:$0xff] %vm678, %v1238
      %1328 = vst.msk [vmem:[#allocation3 + $0xb0] sm:$0xff] %vm678, %v1240
      %1329 = vst.msk [vmem:[#allocation3 + $0xc8] sm:$0xff] %vm678, %v1242
      %1330 = vst.msk [vmem:[#allocation3 + $0xe0] sm:$0xff] %vm678, %v1244
      %1331 = vst.msk [vmem:[#allocation3 + $0xf8] sm:$0xff] %vm678, %v1246
      %1332 = vst.msk [vmem:[#allocation3 + $0x110] sm:$0xff] %vm678, %v1248
      %1333 = vst.msk [vmem:[#allocation3 + $0x128] sm:$0xff] %vm678, %v1250
      %1334 = vst.msk [vmem:[#allocation3 + $0x140] sm:$0xff] %vm678, %v1252
      %1335 = vst.msk [vmem:[#allocation3 + $0x158] sm:$0xff] %vm678, %v1254
      %1336 = vst.msk [vmem:[#allocation3 + $0x170] sm:$0xff] %vm678, %v1256
      %1337 = vst.msk [vmem:[#allocation3 + $0x188] sm:$0xff] %vm678, %v1258
      %1338 = vst.msk [vmem:[#allocation3 + $0x1a0] sm:$0xff] %vm678, %v1260
      %1339 = vst.msk [vmem:[#allocation3 + $0x1b8] sm:$0xff] %vm678, %v1262
      %1340 = vst.msk [vmem:[#allocation3 + $0x1d0] sm:$0xff] %vm678, %v1264
      %1341 = vst.msk [vmem:[#allocation3 + $0x1e8] sm:$0xff] %vm678, %v1266
      %1342 = vst.msk [vmem:[#allocation3 + $0x200] sm:$0xff] %vm678, %v1268
      %1343 = vst.msk [vmem:[#allocation3 + $0x218] sm:$0xff] %vm678, %v1270
      %1344 = vst.msk [vmem:[#allocation3 + $0x230] sm:$0xff] %vm678, %v1272
      %1345 = vst.msk [vmem:[#allocation3 + $0x248] sm:$0xff] %vm678, %v1274
      %1346 = vst.msk [vmem:[#allocation3 + $0x260] sm:$0xff] %vm678, %v1276
      %1347 = vst.msk [vmem:[#allocation3 + $0x278] sm:$0xff] %vm678, %v1278
      %1348 = vst.msk [vmem:[#allocation3 + $0x290] sm:$0xff] %vm678, %v1280
      %1349 = vst.msk [vmem:[#allocation3 + $0x2a8] sm:$0xff] %vm678, %v1282
      %1350 = vst.msk [vmem:[#allocation3 + $0x2c0] sm:$0xff] %vm678, %v1284
      %1351 = vst.msk [vmem:[#allocation3 + $0x2d8] sm:$0xff] %vm678, %v1286
      %1352 = vst.msk [vmem:[#allocation3 + $0x2f0] sm:$0xff] %vm678, %v1288
      %s1353 = scalar_lea.vmem [#allocation2], 48
      %v1354 = vld [vmem:[%s1353] sm:$0xff]
      %v1355 = vld [vmem:[%s1353 + $0x8] sm:$0xff]
      %v1356 = vld [vmem:[%s1353 + $0x18] sm:$0xff]
      %v1357 = vld [vmem:[%s1353 + $0x20] sm:$0xff]
      %v1358 = vld [vmem:[%s1353 + $0x30] sm:$0xff]
      %v1359 = vld [vmem:[%s1353 + $0x38] sm:$0xff]
      %v1360 = vld [vmem:[%s1353 + $0x48] sm:$0xff]
      %v1361 = vld [vmem:[%s1353 + $0x50] sm:$0xff]
      %v1362 = vld [vmem:[%s1353 + $0x60] sm:$0xff]
      %v1363 = vld [vmem:[%s1353 + $0x68] sm:$0xff]
      %v1364 = vld [vmem:[%s1353 + $0x78] sm:$0xff]
      %v1365 = vld [vmem:[%s1353 + $0x80] sm:$0xff]
      %v1366 = vld [vmem:[%s1353 + $0x90] sm:$0xff]
      %v1367 = vld [vmem:[%s1353 + $0x98] sm:$0xff]
      %v1368 = vld [vmem:[%s1353 + $0xa8] sm:$0xff]
      %v1369 = vld [vmem:[%s1353 + $0xb0] sm:$0xff]
      %v1370 = vld [vmem:[%s1353 + $0xc0] sm:$0xff]
      %v1371 = vld [vmem:[%s1353 + $0xc8] sm:$0xff]
      %v1372 = vld [vmem:[%s1353 + $0xd8] sm:$0xff]
      %v1373 = vld [vmem:[%s1353 + $0xe0] sm:$0xff]
      %v1374 = vld [vmem:[%s1353 + $0xf0] sm:$0xff]
      %v1375 = vld [vmem:[%s1353 + $0xf8] sm:$0xff]
      %v1376 = vld [vmem:[%s1353 + $0x108] sm:$0xff]
      %v1377 = vld [vmem:[%s1353 + $0x110] sm:$0xff]
      %v1378 = vld [vmem:[%s1353 + $0x120] sm:$0xff]
      %v1379 = vld [vmem:[%s1353 + $0x128] sm:$0xff]
      %v1380 = vld [vmem:[%s1353 + $0x138] sm:$0xff]
      %v1381 = vld [vmem:[%s1353 + $0x140] sm:$0xff]
      %v1382 = vld [vmem:[%s1353 + $0x150] sm:$0xff]
      %v1383 = vld [vmem:[%s1353 + $0x158] sm:$0xff]
      %v1384 = vld [vmem:[%s1353 + $0x168] sm:$0xff]
      %v1385 = vld [vmem:[%s1353 + $0x170] sm:$0xff]
      %1418 = vrot.lane.b32.xlu0 %v1354, 64
      %v1419 = vpop.permute.xlu0 %1418
      %1420 = vrot.lane.b32.xlu0 %v1355, 64
      %v1421 = vpop.permute.xlu0 %1420
      %1422 = vrot.lane.b32.xlu0 %v1356, 64
      %v1423 = vpop.permute.xlu0 %1422
      %1424 = vrot.lane.b32.xlu0 %v1357, 64
      %v1425 = vpop.permute.xlu0 %1424
      %1426 = vrot.lane.b32.xlu0 %v1358, 64
      %v1427 = vpop.permute.xlu0 %1426
      %1428 = vrot.lane.b32.xlu0 %v1359, 64
      %v1429 = vpop.permute.xlu0 %1428
      %1430 = vrot.lane.b32.xlu0 %v1360, 64
      %v1431 = vpop.permute.xlu0 %1430
      %1432 = vrot.lane.b32.xlu0 %v1361, 64
      %v1433 = vpop.permute.xlu0 %1432
      %1434 = vrot.lane.b32.xlu0 %v1362, 64
      %v1435 = vpop.permute.xlu0 %1434
      %1436 = vrot.lane.b32.xlu0 %v1363, 64
      %v1437 = vpop.permute.xlu0 %1436
      %1438 = vrot.lane.b32.xlu0 %v1364, 64
      %v1439 = vpop.permute.xlu0 %1438
      %1440 = vrot.lane.b32.xlu0 %v1365, 64
      %v1441 = vpop.permute.xlu0 %1440
      %1442 = vrot.lane.b32.xlu0 %v1366, 64
      %v1443 = vpop.permute.xlu0 %1442
      %1444 = vrot.lane.b32.xlu0 %v1367, 64
      %v1445 = vpop.permute.xlu0 %1444
      %1446 = vrot.lane.b32.xlu0 %v1368, 64
      %v1447 = vpop.permute.xlu0 %1446
      %1448 = vrot.lane.b32.xlu0 %v1369, 64
      %v1449 = vpop.permute.xlu0 %1448
      %1450 = vrot.lane.b32.xlu0 %v1370, 64
      %v1451 = vpop.permute.xlu0 %1450
      %1452 = vrot.lane.b32.xlu0 %v1371, 64
      %v1453 = vpop.permute.xlu0 %1452
      %1454 = vrot.lane.b32.xlu0 %v1372, 64
      %v1455 = vpop.permute.xlu0 %1454
      %1456 = vrot.lane.b32.xlu0 %v1373, 64
      %v1457 = vpop.permute.xlu0 %1456
      %1458 = vrot.lane.b32.xlu0 %v1374, 64
      %v1459 = vpop.permute.xlu0 %1458
      %1460 = vrot.lane.b32.xlu0 %v1375, 64
      %v1461 = vpop.permute.xlu0 %1460
      %1462 = vrot.lane.b32.xlu0 %v1376, 64
      %v1463 = vpop.permute.xlu0 %1462
      %1464 = vrot.lane.b32.xlu0 %v1377, 64
      %v1465 = vpop.permute.xlu0 %1464
      %1466 = vrot.lane.b32.xlu0 %v1378, 64
      %v1467 = vpop.permute.xlu0 %1466
      %1468 = vrot.lane.b32.xlu0 %v1379, 64
      %v1469 = vpop.permute.xlu0 %1468
      %1470 = vrot.lane.b32.xlu0 %v1380, 64
      %v1471 = vpop.permute.xlu0 %1470
      %1472 = vrot.lane.b32.xlu0 %v1381, 64
      %v1473 = vpop.permute.xlu0 %1472
      %1474 = vrot.lane.b32.xlu0 %v1382, 64
      %v1475 = vpop.permute.xlu0 %1474
      %1476 = vrot.lane.b32.xlu0 %v1383, 64
      %v1477 = vpop.permute.xlu0 %1476
      %1478 = vrot.lane.b32.xlu0 %v1384, 64
      %v1479 = vpop.permute.xlu0 %1478
      %1480 = vrot.lane.b32.xlu0 %v1385, 64
      %v1481 = vpop.permute.xlu0 %1480
      %1514 = vst.msk [vmem:[#allocation3 + $0x8] sm:$0xff] %vm871, %v1419
      %1515 = vst.msk [vmem:[#allocation3 + $0x20] sm:$0xff] %vm871, %v1421
      %1516 = vst.msk [vmem:[#allocation3 + $0x38] sm:$0xff] %vm871, %v1423
      %1517 = vst.msk [vmem:[#allocation3 + $0x50] sm:$0xff] %vm871, %v1425
      %1518 = vst.msk [vmem:[#allocation3 + $0x68] sm:$0xff] %vm871, %v1427
      %1519 = vst.msk [vmem:[#allocation3 + $0x80] sm:$0xff] %vm871, %v1429
      %1520 = vst.msk [vmem:[#allocation3 + $0x98] sm:$0xff] %vm871, %v1431
      %1521 = vst.msk [vmem:[#allocation3 + $0xb0] sm:$0xff] %vm871, %v1433
      %1522 = vst.msk [vmem:[#allocation3 + $0xc8] sm:$0xff] %vm871, %v1435
      %1523 = vst.msk [vmem:[#allocation3 + $0xe0] sm:$0xff] %vm871, %v1437
      %1524 = vst.msk [vmem:[#allocation3 + $0xf8] sm:$0xff] %vm871, %v1439
      %1525 = vst.msk [vmem:[#allocation3 + $0x110] sm:$0xff] %vm871, %v1441
      %1526 = vst.msk [vmem:[#allocation3 + $0x128] sm:$0xff] %vm871, %v1443
      %1527 = vst.msk [vmem:[#allocation3 + $0x140] sm:$0xff] %vm871, %v1445
      %1528 = vst.msk [vmem:[#allocation3 + $0x158] sm:$0xff] %vm871, %v1447
      %1529 = vst.msk [vmem:[#allocation3 + $0x170] sm:$0xff] %vm871, %v1449
      %1530 = vst.msk [vmem:[#allocation3 + $0x188] sm:$0xff] %vm871, %v1451
      %1531 = vst.msk [vmem:[#allocation3 + $0x1a0] sm:$0xff] %vm871, %v1453
      %1532 = vst.msk [vmem:[#allocation3 + $0x1b8] sm:$0xff] %vm871, %v1455
      %1533 = vst.msk [vmem:[#allocation3 + $0x1d0] sm:$0xff] %vm871, %v1457
      %1534 = vst.msk [vmem:[#allocation3 + $0x1e8] sm:$0xff] %vm871, %v1459
      %1535 = vst.msk [vmem:[#allocation3 + $0x200] sm:$0xff] %vm871, %v1461
      %1536 = vst.msk [vmem:[#allocation3 + $0x218] sm:$0xff] %vm871, %v1463
      %1537 = vst.msk [vmem:[#allocation3 + $0x230] sm:$0xff] %vm871, %v1465
      %1538 = vst.msk [vmem:[#allocation3 + $0x248] sm:$0xff] %vm871, %v1467
      %1539 = vst.msk [vmem:[#allocation3 + $0x260] sm:$0xff] %vm871, %v1469
      %1540 = vst.msk [vmem:[#allocation3 + $0x278] sm:$0xff] %vm871, %v1471
      %1541 = vst.msk [vmem:[#allocation3 + $0x290] sm:$0xff] %vm871, %v1473
      %1542 = vst.msk [vmem:[#allocation3 + $0x2a8] sm:$0xff] %vm871, %v1475
      %1543 = vst.msk [vmem:[#allocation3 + $0x2c0] sm:$0xff] %vm871, %v1477
      %1544 = vst.msk [vmem:[#allocation3 + $0x2d8] sm:$0xff] %vm871, %v1479
      %1545 = vst.msk [vmem:[#allocation3 + $0x2f0] sm:$0xff] %vm871, %v1481
      %v1546 = vld [vmem:[%s1353 + $0x1] sm:$0xff]
      %v1547 = vld [vmem:[%s1353 + $0x9] sm:$0xff]
      %v1548 = vld [vmem:[%s1353 + $0x19] sm:$0xff]
      %v1549 = vld [vmem:[%s1353 + $0x21] sm:$0xff]
      %v1550 = vld [vmem:[%s1353 + $0x31] sm:$0xff]
      %v1551 = vld [vmem:[%s1353 + $0x39] sm:$0xff]
      %v1552 = vld [vmem:[%s1353 + $0x49] sm:$0xff]
      %v1553 = vld [vmem:[%s1353 + $0x51] sm:$0xff]
      %v1554 = vld [vmem:[%s1353 + $0x61] sm:$0xff]
      %v1555 = vld [vmem:[%s1353 + $0x69] sm:$0xff]
      %v1556 = vld [vmem:[%s1353 + $0x79] sm:$0xff]
      %v1557 = vld [vmem:[%s1353 + $0x81] sm:$0xff]
      %v1558 = vld [vmem:[%s1353 + $0x91] sm:$0xff]
      %v1559 = vld [vmem:[%s1353 + $0x99] sm:$0xff]
      %v1560 = vld [vmem:[%s1353 + $0xa9] sm:$0xff]
      %v1561 = vld [vmem:[%s1353 + $0xb1] sm:$0xff]
      %v1562 = vld [vmem:[%s1353 + $0xc1] sm:$0xff]
      %v1563 = vld [vmem:[%s1353 + $0xc9] sm:$0xff]
      %v1564 = vld [vmem:[%s1353 + $0xd9] sm:$0xff]
      %v1565 = vld [vmem:[%s1353 + $0xe1] sm:$0xff]
      %v1566 = vld [vmem:[%s1353 + $0xf1] sm:$0xff]
      %v1567 = vld [vmem:[%s1353 + $0xf9] sm:$0xff]
      %v1568 = vld [vmem:[%s1353 + $0x109] sm:$0xff]
      %v1569 = vld [vmem:[%s1353 + $0x111] sm:$0xff]
      %v1570 = vld [vmem:[%s1353 + $0x121] sm:$0xff]
      %v1571 = vld [vmem:[%s1353 + $0x129] sm:$0xff]
      %v1572 = vld [vmem:[%s1353 + $0x139] sm:$0xff]
      %v1573 = vld [vmem:[%s1353 + $0x141] sm:$0xff]
      %v1574 = vld [vmem:[%s1353 + $0x151] sm:$0xff]
      %v1575 = vld [vmem:[%s1353 + $0x159] sm:$0xff]
      %v1576 = vld [vmem:[%s1353 + $0x169] sm:$0xff]
      %v1577 = vld [vmem:[%s1353 + $0x171] sm:$0xff]
      %1610 = vrot.lane.b32.xlu0 %v1546, 96
      %v1611 = vpop.permute.xlu0 %1610
      %1612 = vrot.lane.b32.xlu0 %v1547, 96
      %v1613 = vpop.permute.xlu0 %1612
      %1614 = vrot.lane.b32.xlu0 %v1548, 96
      %v1615 = vpop.permute.xlu0 %1614
      %1616 = vrot.lane.b32.xlu0 %v1549, 96
      %v1617 = vpop.permute.xlu0 %1616
      %1618 = vrot.lane.b32.xlu0 %v1550, 96
      %v1619 = vpop.permute.xlu0 %1618
      %1620 = vrot.lane.b32.xlu0 %v1551, 96
      %v1621 = vpop.permute.xlu0 %1620
      %1622 = vrot.lane.b32.xlu0 %v1552, 96
      %v1623 = vpop.permute.xlu0 %1622
      %1624 = vrot.lane.b32.xlu0 %v1553, 96
      %v1625 = vpop.permute.xlu0 %1624
      %1626 = vrot.lane.b32.xlu0 %v1554, 96
      %v1627 = vpop.permute.xlu0 %1626
      %1628 = vrot.lane.b32.xlu0 %v1555, 96
      %v1629 = vpop.permute.xlu0 %1628
      %1630 = vrot.lane.b32.xlu0 %v1556, 96
      %v1631 = vpop.permute.xlu0 %1630
      %1632 = vrot.lane.b32.xlu0 %v1557, 96
      %v1633 = vpop.permute.xlu0 %1632
      %1634 = vrot.lane.b32.xlu0 %v1558, 96
      %v1635 = vpop.permute.xlu0 %1634
      %1636 = vrot.lane.b32.xlu0 %v1559, 96
      %v1637 = vpop.permute.xlu0 %1636
      %1638 = vrot.lane.b32.xlu0 %v1560, 96
      %v1639 = vpop.permute.xlu0 %1638
      %1640 = vrot.lane.b32.xlu0 %v1561, 96
      %v1641 = vpop.permute.xlu0 %1640
      %1642 = vrot.lane.b32.xlu0 %v1562, 96
      %v1643 = vpop.permute.xlu0 %1642
      %1644 = vrot.lane.b32.xlu0 %v1563, 96
      %v1645 = vpop.permute.xlu0 %1644
      %1646 = vrot.lane.b32.xlu0 %v1564, 96
      %v1647 = vpop.permute.xlu0 %1646
      %1648 = vrot.lane.b32.xlu0 %v1565, 96
      %v1649 = vpop.permute.xlu0 %1648
      %1650 = vrot.lane.b32.xlu0 %v1566, 96
      %v1651 = vpop.permute.xlu0 %1650
      %1652 = vrot.lane.b32.xlu0 %v1567, 96
      %v1653 = vpop.permute.xlu0 %1652
      %1654 = vrot.lane.b32.xlu0 %v1568, 96
      %v1655 = vpop.permute.xlu0 %1654
      %1656 = vrot.lane.b32.xlu0 %v1569, 96
      %v1657 = vpop.permute.xlu0 %1656
      %1658 = vrot.lane.b32.xlu0 %v1570, 96
      %v1659 = vpop.permute.xlu0 %1658
      %1660 = vrot.lane.b32.xlu0 %v1571, 96
      %v1661 = vpop.permute.xlu0 %1660
      %1662 = vrot.lane.b32.xlu0 %v1572, 96
      %v1663 = vpop.permute.xlu0 %1662
      %1664 = vrot.lane.b32.xlu0 %v1573, 96
      %v1665 = vpop.permute.xlu0 %1664
      %1666 = vrot.lane.b32.xlu0 %v1574, 96
      %v1667 = vpop.permute.xlu0 %1666
      %1668 = vrot.lane.b32.xlu0 %v1575, 96
      %v1669 = vpop.permute.xlu0 %1668
      %1670 = vrot.lane.b32.xlu0 %v1576, 96
      %v1671 = vpop.permute.xlu0 %1670
      %1672 = vrot.lane.b32.xlu0 %v1577, 96
      %v1673 = vpop.permute.xlu0 %1672
      %1706 = vst.msk [vmem:[#allocation3 + $0x8] sm:$0xff] %vm1064, %v1611
      %1707 = vst.msk [vmem:[#allocation3 + $0x20] sm:$0xff] %vm1064, %v1613
      %1708 = vst.msk [vmem:[#allocation3 + $0x38] sm:$0xff] %vm1064, %v1615
      %1709 = vst.msk [vmem:[#allocation3 + $0x50] sm:$0xff] %vm1064, %v1617
      %1710 = vst.msk [vmem:[#allocation3 + $0x68] sm:$0xff] %vm1064, %v1619
      %1711 = vst.msk [vmem:[#allocation3 + $0x80] sm:$0xff] %vm1064, %v1621
      %1712 = vst.msk [vmem:[#allocation3 + $0x98] sm:$0xff] %vm1064, %v1623
      %1713 = vst.msk [vmem:[#allocation3 + $0xb0] sm:$0xff] %vm1064, %v1625
      %1714 = vst.msk [vmem:[#allocation3 + $0xc8] sm:$0xff] %vm1064, %v1627
      %1715 = vst.msk [vmem:[#allocation3 + $0xe0] sm:$0xff] %vm1064, %v1629
      %1716 = vst.msk [vmem:[#allocation3 + $0xf8] sm:$0xff] %vm1064, %v1631
      %1717 = vst.msk [vmem:[#allocation3 + $0x110] sm:$0xff] %vm1064, %v1633
      %1718 = vst.msk [vmem:[#allocation3 + $0x128] sm:$0xff] %vm1064, %v1635
      %1719 = vst.msk [vmem:[#allocation3 + $0x140] sm:$0xff] %vm1064, %v1637
      %1720 = vst.msk [vmem:[#allocation3 + $0x158] sm:$0xff] %vm1064, %v1639
      %1721 = vst.msk [vmem:[#allocation3 + $0x170] sm:$0xff] %vm1064, %v1641
      %1722 = vst.msk [vmem:[#allocation3 + $0x188] sm:$0xff] %vm1064, %v1643
      %1723 = vst.msk [vmem:[#allocation3 + $0x1a0] sm:$0xff] %vm1064, %v1645
      %1724 = vst.msk [vmem:[#allocation3 + $0x1b8] sm:$0xff] %vm1064, %v1647
      %1725 = vst.msk [vmem:[#allocation3 + $0x1d0] sm:$0xff] %vm1064, %v1649
      %1726 = vst.msk [vmem:[#allocation3 + $0x1e8] sm:$0xff] %vm1064, %v1651
      %1727 = vst.msk [vmem:[#allocation3 + $0x200] sm:$0xff] %vm1064, %v1653
      %1728 = vst.msk [vmem:[#allocation3 + $0x218] sm:$0xff] %vm1064, %v1655
      %1729 = vst.msk [vmem:[#allocation3 + $0x230] sm:$0xff] %vm1064, %v1657
      %1730 = vst.msk [vmem:[#allocation3 + $0x248] sm:$0xff] %vm1064, %v1659
      %1731 = vst.msk [vmem:[#allocation3 + $0x260] sm:$0xff] %vm1064, %v1661
      %1732 = vst.msk [vmem:[#allocation3 + $0x278] sm:$0xff] %vm1064, %v1663
      %1733 = vst.msk [vmem:[#allocation3 + $0x290] sm:$0xff] %vm1064, %v1665
      %1734 = vst.msk [vmem:[#allocation3 + $0x2a8] sm:$0xff] %vm1064, %v1667
      %1735 = vst.msk [vmem:[#allocation3 + $0x2c0] sm:$0xff] %vm1064, %v1669
      %1736 = vst.msk [vmem:[#allocation3 + $0x2d8] sm:$0xff] %vm1064, %v1671
      %1737 = vst.msk [vmem:[#allocation3 + $0x2f0] sm:$0xff] %vm1064, %v1673
      %v1738 = vld [vmem:[%s1353 + $0x2] sm:$0xff]
      %v1739 = vld [vmem:[%s1353 + $0xa] sm:$0xff]
      %v1740 = vld [vmem:[%s1353 + $0x1a] sm:$0xff]
      %v1741 = vld [vmem:[%s1353 + $0x22] sm:$0xff]
      %v1742 = vld [vmem:[%s1353 + $0x32] sm:$0xff]
      %v1743 = vld [vmem:[%s1353 + $0x3a] sm:$0xff]
      %v1744 = vld [vmem:[%s1353 + $0x4a] sm:$0xff]
      %v1745 = vld [vmem:[%s1353 + $0x52] sm:$0xff]
      %v1746 = vld [vmem:[%s1353 + $0x62] sm:$0xff]
      %v1747 = vld [vmem:[%s1353 + $0x6a] sm:$0xff]
      %v1748 = vld [vmem:[%s1353 + $0x7a] sm:$0xff]
      %v1749 = vld [vmem:[%s1353 + $0x82] sm:$0xff]
      %v1750 = vld [vmem:[%s1353 + $0x92] sm:$0xff]
      %v1751 = vld [vmem:[%s1353 + $0x9a] sm:$0xff]
      %v1752 = vld [vmem:[%s1353 + $0xaa] sm:$0xff]
      %v1753 = vld [vmem:[%s1353 + $0xb2] sm:$0xff]
      %v1754 = vld [vmem:[%s1353 + $0xc2] sm:$0xff]
      %v1755 = vld [vmem:[%s1353 + $0xca] sm:$0xff]
      %v1756 = vld [vmem:[%s1353 + $0xda] sm:$0xff]
      %v1757 = vld [vmem:[%s1353 + $0xe2] sm:$0xff]
      %v1758 = vld [vmem:[%s1353 + $0xf2] sm:$0xff]
      %v1759 = vld [vmem:[%s1353 + $0xfa] sm:$0xff]
      %v1760 = vld [vmem:[%s1353 + $0x10a] sm:$0xff]
      %v1761 = vld [vmem:[%s1353 + $0x112] sm:$0xff]
      %v1762 = vld [vmem:[%s1353 + $0x122] sm:$0xff]
      %v1763 = vld [vmem:[%s1353 + $0x12a] sm:$0xff]
      %v1764 = vld [vmem:[%s1353 + $0x13a] sm:$0xff]
      %v1765 = vld [vmem:[%s1353 + $0x142] sm:$0xff]
      %v1766 = vld [vmem:[%s1353 + $0x152] sm:$0xff]
      %v1767 = vld [vmem:[%s1353 + $0x15a] sm:$0xff]
      %v1768 = vld [vmem:[%s1353 + $0x16a] sm:$0xff]
      %v1769 = vld [vmem:[%s1353 + $0x172] sm:$0xff]
      %1770 = vst.msk [vmem:[#allocation3 + $0x10] sm:$0xff] %vm379, %v1738
      %1771 = vst.msk [vmem:[#allocation3 + $0x28] sm:$0xff] %vm379, %v1739
      %1772 = vst.msk [vmem:[#allocation3 + $0x40] sm:$0xff] %vm379, %v1740
      %1773 = vst.msk [vmem:[#allocation3 + $0x58] sm:$0xff] %vm379, %v1741
      %1774 = vst.msk [vmem:[#allocation3 + $0x70] sm:$0xff] %vm379, %v1742
      %1775 = vst.msk [vmem:[#allocation3 + $0x88] sm:$0xff] %vm379, %v1743
      %1776 = vst.msk [vmem:[#allocation3 + $0xa0] sm:$0xff] %vm379, %v1744
      %1777 = vst.msk [vmem:[#allocation3 + $0xb8] sm:$0xff] %vm379, %v1745
      %1778 = vst.msk [vmem:[#allocation3 + $0xd0] sm:$0xff] %vm379, %v1746
      %1779 = vst.msk [vmem:[#allocation3 + $0xe8] sm:$0xff] %vm379, %v1747
      %1780 = vst.msk [vmem:[#allocation3 + $0x100] sm:$0xff] %vm379, %v1748
      %1781 = vst.msk [vmem:[#allocation3 + $0x118] sm:$0xff] %vm379, %v1749
      %1782 = vst.msk [vmem:[#allocation3 + $0x130] sm:$0xff] %vm379, %v1750
      %1783 = vst.msk [vmem:[#allocation3 + $0x148] sm:$0xff] %vm379, %v1751
      %1784 = vst.msk [vmem:[#allocation3 + $0x160] sm:$0xff] %vm379, %v1752
      %1785 = vst.msk [vmem:[#allocation3 + $0x178] sm:$0xff] %vm379, %v1753
      %1786 = vst.msk [vmem:[#allocation3 + $0x190] sm:$0xff] %vm379, %v1754
      %1787 = vst.msk [vmem:[#allocation3 + $0x1a8] sm:$0xff] %vm379, %v1755
      %1788 = vst.msk [vmem:[#allocation3 + $0x1c0] sm:$0xff] %vm379, %v1756
      %1789 = vst.msk [vmem:[#allocation3 + $0x1d8] sm:$0xff] %vm379, %v1757
      %1790 = vst.msk [vmem:[#allocation3 + $0x1f0] sm:$0xff] %vm379, %v1758
      %1791 = vst.msk [vmem:[#allocation3 + $0x208] sm:$0xff] %vm379, %v1759
      %1792 = vst.msk [vmem:[#allocation3 + $0x220] sm:$0xff] %vm379, %v1760
      %1793 = vst.msk [vmem:[#allocation3 + $0x238] sm:$0xff] %vm379, %v1761
      %1794 = vst.msk [vmem:[#allocation3 + $0x250] sm:$0xff] %vm379, %v1762
      %1795 = vst.msk [vmem:[#allocation3 + $0x268] sm:$0xff] %vm379, %v1763
      %1796 = vst.msk [vmem:[#allocation3 + $0x280] sm:$0xff] %vm379, %v1764
      %1797 = vst.msk [vmem:[#allocation3 + $0x298] sm:$0xff] %vm379, %v1765
      %1798 = vst.msk [vmem:[#allocation3 + $0x2b0] sm:$0xff] %vm379, %v1766
      %1799 = vst.msk [vmem:[#allocation3 + $0x2c8] sm:$0xff] %vm379, %v1767
      %1800 = vst.msk [vmem:[#allocation3 + $0x2e0] sm:$0xff] %vm379, %v1768
      %1801 = vst.msk [vmem:[#allocation3 + $0x2f8] sm:$0xff] %vm379, %v1769
      %v1802 = vld [vmem:[#allocation3] sm:$0xff]
      %v1803 = vld [vmem:[#allocation3 + $0x8] sm:$0xff]
      %v1804 = vld [vmem:[#allocation3 + $0x10] sm:$0xff]
      %v1805 = vld [vmem:[#allocation3 + $0x18] sm:$0xff]
      %v1806 = vld [vmem:[#allocation3 + $0x20] sm:$0xff]
      %v1807 = vld [vmem:[#allocation3 + $0x28] sm:$0xff]
      %v1808 = vld [vmem:[#allocation3 + $0x30] sm:$0xff]
      %v1809 = vld [vmem:[#allocation3 + $0x38] sm:$0xff]
      %v1810 = vld [vmem:[#allocation3 + $0x40] sm:$0xff]
      %v1811 = vld [vmem:[#allocation3 + $0x48] sm:$0xff]
      %v1812 = vld [vmem:[#allocation3 + $0x50] sm:$0xff]
      %v1813 = vld [vmem:[#allocation3 + $0x58] sm:$0xff]
      %v1814 = vld [vmem:[#allocation3 + $0x60] sm:$0xff]
      %v1815 = vld [vmem:[#allocation3 + $0x68] sm:$0xff]
      %v1816 = vld [vmem:[#allocation3 + $0x70] sm:$0xff]
      %v1817 = vld [vmem:[#allocation3 + $0x78] sm:$0xff]
      %v1818 = vld [vmem:[#allocation3 + $0x80] sm:$0xff]
      %v1819 = vld [vmem:[#allocation3 + $0x88] sm:$0xff]
      %v1820 = vld [vmem:[#allocation3 + $0x90] sm:$0xff]
      %v1821 = vld [vmem:[#allocation3 + $0x98] sm:$0xff]
      %v1822 = vld [vmem:[#allocation3 + $0xa0] sm:$0xff]
      %v1823 = vld [vmem:[#allocation3 + $0xa8] sm:$0xff]
      %v1824 = vld [vmem:[#allocation3 + $0xb0] sm:$0xff]
      %v1825 = vld [vmem:[#allocation3 + $0xb8] sm:$0xff]
      %v1826 = vld [vmem:[#allocation3 + $0xc0] sm:$0xff]
      %v1827 = vld [vmem:[#allocation3 + $0xc8] sm:$0xff]
      %v1828 = vld [vmem:[#allocation3 + $0xd0] sm:$0xff]
      %v1829 = vld [vmem:[#allocation3 + $0xd8] sm:$0xff]
      %v1830 = vld [vmem:[#allocation3 + $0xe0] sm:$0xff]
      %v1831 = vld [vmem:[#allocation3 + $0xe8] sm:$0xff]
      %v1832 = vld [vmem:[#allocation3 + $0xf0] sm:$0xff]
      %v1833 = vld [vmem:[#allocation3 + $0xf8] sm:$0xff]
      %v1834 = vld [vmem:[#allocation3 + $0x100] sm:$0xff]
      %v1835 = vld [vmem:[#allocation3 + $0x108] sm:$0xff]
      %v1836 = vld [vmem:[#allocation3 + $0x110] sm:$0xff]
      %v1837 = vld [vmem:[#allocation3 + $0x118] sm:$0xff]
      %v1838 = vld [vmem:[#allocation3 + $0x120] sm:$0xff]
      %v1839 = vld [vmem:[#allocation3 + $0x128] sm:$0xff]
      %v1840 = vld [vmem:[#allocation3 + $0x130] sm:$0xff]
      %v1841 = vld [vmem:[#allocation3 + $0x138] sm:$0xff]
      %v1842 = vld [vmem:[#allocation3 + $0x140] sm:$0xff]
      %v1843 = vld [vmem:[#allocation3 + $0x148] sm:$0xff]
      %v1844 = vld [vmem:[#allocation3 + $0x150] sm:$0xff]
      %v1845 = vld [vmem:[#allocation3 + $0x158] sm:$0xff]
      %v1846 = vld [vmem:[#allocation3 + $0x160] sm:$0xff]
      %v1847 = vld [vmem:[#allocation3 + $0x168] sm:$0xff]
      %v1848 = vld [vmem:[#allocation3 + $0x170] sm:$0xff]
      %v1849 = vld [vmem:[#allocation3 + $0x178] sm:$0xff]
      %v1850 = vld [vmem:[#allocation3 + $0x180] sm:$0xff]
      %v1851 = vld [vmem:[#allocation3 + $0x188] sm:$0xff]
      %v1852 = vld [vmem:[#allocation3 + $0x190] sm:$0xff]
      %v1853 = vld [vmem:[#allocation3 + $0x198] sm:$0xff]
      %v1854 = vld [vmem:[#allocation3 + $0x1a0] sm:$0xff]
      %v1855 = vld [vmem:[#allocation3 + $0x1a8] sm:$0xff]
      %v1856 = vld [vmem:[#allocation3 + $0x1b0] sm:$0xff]
      %v1857 = vld [vmem:[#allocation3 + $0x1b8] sm:$0xff]
      %v1858 = vld [vmem:[#allocation3 + $0x1c0] sm:$0xff]
      %v1859 = vld [vmem:[#allocation3 + $0x1c8] sm:$0xff]
      %v1860 = vld [vmem:[#allocation3 + $0x1d0] sm:$0xff]
      %v1861 = vld [vmem:[#allocation3 + $0x1d8] sm:$0xff]
      %v1862 = vld [vmem:[#allocation3 + $0x1e0] sm:$0xff]
      %v1863 = vld [vmem:[#allocation3 + $0x1e8] sm:$0xff]
      %v1864 = vld [vmem:[#allocation3 + $0x1f0] sm:$0xff]
      %v1865 = vld [vmem:[#allocation3 + $0x1f8] sm:$0xff]
      %v1866 = vld [vmem:[#allocation3 + $0x200] sm:$0xff]
      %v1867 = vld [vmem:[#allocation3 + $0x208] sm:$0xff]
      %v1868 = vld [vmem:[#allocation3 + $0x210] sm:$0xff]
      %v1869 = vld [vmem:[#allocation3 + $0x218] sm:$0xff]
      %v1870 = vld [vmem:[#allocation3 + $0x220] sm:$0xff]
      %v1871 = vld [vmem:[#allocation3 + $0x228] sm:$0xff]
      %v1872 = vld [vmem:[#allocation3 + $0x230] sm:$0xff]
      %v1873 = vld [vmem:[#allocation3 + $0x238] sm:$0xff]
      %v1874 = vld [vmem:[#allocation3 + $0x240] sm:$0xff]
      %v1875 = vld [vmem:[#allocation3 + $0x248] sm:$0xff]
      %v1876 = vld [vmem:[#allocation3 + $0x250] sm:$0xff]
      %v1877 = vld [vmem:[#allocation3 + $0x258] sm:$0xff]
      %v1878 = vld [vmem:[#allocation3 + $0x260] sm:$0xff]
      %v1879 = vld [vmem:[#allocation3 + $0x268] sm:$0xff]
      %v1880 = vld [vmem:[#allocation3 + $0x270] sm:$0xff]
      %v1881 = vld [vmem:[#allocation3 + $0x278] sm:$0xff]
      %v1882 = vld [vmem:[#allocation3 + $0x280] sm:$0xff]
      %v1883 = vld [vmem:[#allocation3 + $0x288] sm:$0xff]
      %v1884 = vld [vmem:[#allocation3 + $0x290] sm:$0xff]
      %v1885 = vld [vmem:[#allocation3 + $0x298] sm:$0xff]
      %v1886 = vld [vmem:[#allocation3 + $0x2a0] sm:$0xff]
      %v1887 = vld [vmem:[#allocation3 + $0x2a8] sm:$0xff]
      %v1888 = vld [vmem:[#allocation3 + $0x2b0] sm:$0xff]
      %v1889 = vld [vmem:[#allocation3 + $0x2b8] sm:$0xff]
      %v1890 = vld [vmem:[#allocation3 + $0x2c0] sm:$0xff]
      %v1891 = vld [vmem:[#allocation3 + $0x2c8] sm:$0xff]
      %v1892 = vld [vmem:[#allocation3 + $0x2d0] sm:$0xff]
      %v1893 = vld [vmem:[#allocation3 + $0x2d8] sm:$0xff]
      %v1894 = vld [vmem:[#allocation3 + $0x2e0] sm:$0xff]
      %v1895 = vld [vmem:[#allocation3 + $0x2e8] sm:$0xff]
      %v1896 = vld [vmem:[#allocation3 + $0x2f0] sm:$0xff]
      %v1897 = vld [vmem:[#allocation3 + $0x2f8] sm:$0xff]
      %v1898 = vpack.c.bf16 %v1805, %v1802
      %v1899 = vpack.c.bf16 %v1806, %v1803
      %v1900 = vpack.c.bf16 %v1807, %v1804
      %v1901 = vpack.c.bf16 %v1811, %v1808
      %v1902 = vpack.c.bf16 %v1812, %v1809
      %v1903 = vpack.c.bf16 %v1813, %v1810
      %v1904 = vpack.c.bf16 %v1817, %v1814
      %v1905 = vpack.c.bf16 %v1818, %v1815
      %v1906 = vpack.c.bf16 %v1819, %v1816
      %v1907 = vpack.c.bf16 %v1823, %v1820
      %v1908 = vpack.c.bf16 %v1824, %v1821
      %v1909 = vpack.c.bf16 %v1825, %v1822
      %v1910 = vpack.c.bf16 %v1829, %v1826
      %v1911 = vpack.c.bf16 %v1830, %v1827
      %v1912 = vpack.c.bf16 %v1831, %v1828
      %v1913 = vpack.c.bf16 %v1835, %v1832
      %v1914 = vpack.c.bf16 %v1836, %v1833
      %v1915 = vpack.c.bf16 %v1837, %v1834
      %v1916 = vpack.c.bf16 %v1841, %v1838
      %v1917 = vpack.c.bf16 %v1842, %v1839
      %v1918 = vpack.c.bf16 %v1843, %v1840
      %v1919 = vpack.c.bf16 %v1847, %v1844
      %v1920 = vpack.c.bf16 %v1848, %v1845
      %v1921 = vpack.c.bf16 %v1849, %v1846
      %v1922 = vpack.c.bf16 %v1853, %v1850
      %v1923 = vpack.c.bf16 %v1854, %v1851
      %v1924 = vpack.c.bf16 %v1855, %v1852
      %v1925 = vpack.c.bf16 %v1859, %v1856
      %v1926 = vpack.c.bf16 %v1860, %v1857
      %v1927 = vpack.c.bf16 %v1861, %v1858
      %v1928 = vpack.c.bf16 %v1865, %v1862
      %v1929 = vpack.c.bf16 %v1866, %v1863
      %v1930 = vpack.c.bf16 %v1867, %v1864
      %v1931 = vpack.c.bf16 %v1871, %v1868
      %v1932 = vpack.c.bf16 %v1872, %v1869
      %v1933 = vpack.c.bf16 %v1873, %v1870
      %v1934 = vpack.c.bf16 %v1877, %v1874
      %v1935 = vpack.c.bf16 %v1878, %v1875
      %v1936 = vpack.c.bf16 %v1879, %v1876
      %v1937 = vpack.c.bf16 %v1883, %v1880
      %v1938 = vpack.c.bf16 %v1884, %v1881
      %v1939 = vpack.c.bf16 %v1885, %v1882
      %v1940 = vpack.c.bf16 %v1889, %v1886
      %v1941 = vpack.c.bf16 %v1890, %v1887
      %v1942 = vpack.c.bf16 %v1891, %v1888
      %v1943 = vpack.c.bf16 %v1895, %v1892
      %v1944 = vpack.c.bf16 %v1896, %v1893
      %v1945 = vpack.c.bf16 %v1897, %v1894
      %v1946 = vld [vmem:[%s3] sm:$0xf]
      %v1947 = vld [vmem:[%s3 + $0x4] sm:$0xf]
      %v1948 = vld [vmem:[%s3 + $0x8] sm:$0xf]
      %v1949 = vld [vmem:[%s3 + $0xc] sm:$0xf]
      %v1950 = vld [vmem:[%s3 + $0x10] sm:$0xf]
      %v1951 = vld [vmem:[%s3 + $0x14] sm:$0xf]
      %v1952 = vld [vmem:[%s3 + $0x18] sm:$0xf]
      %v1953 = vld [vmem:[%s3 + $0x1c] sm:$0xf]
      %v1954 = vld [vmem:[%s3 + $0x20] sm:$0xf]
      %v1955 = vld [vmem:[%s3 + $0x24] sm:$0xf]
      %v1956 = vld [vmem:[%s3 + $0x28] sm:$0xf]
      %v1957 = vld [vmem:[%s3 + $0x2c] sm:$0xf]
      %v1958 = vld [vmem:[%s3 + $0x30] sm:$0xf]
      %v1959 = vld [vmem:[%s3 + $0x34] sm:$0xf]
      %v1960 = vld [vmem:[%s3 + $0x38] sm:$0xf]
      %v1961 = vld [vmem:[%s3 + $0x3c] sm:$0xf]
      %v1962 = vld [vmem:[%s3 + $0x40] sm:$0xf]
      %v1963 = vld [vmem:[%s3 + $0x44] sm:$0xf]
      %v1964 = vld [vmem:[%s3 + $0x48] sm:$0xf]
      %v1965 = vld [vmem:[%s3 + $0x4c] sm:$0xf]
      %v1966 = vld [vmem:[%s3 + $0x50] sm:$0xf]
      %v1967 = vld [vmem:[%s3 + $0x54] sm:$0xf]
      %v1968 = vld [vmem:[%s3 + $0x58] sm:$0xf]
      %v1969 = vld [vmem:[%s3 + $0x5c] sm:$0xf]
      %v1970 = vld [vmem:[%s3 + $0x60] sm:$0xf]
      %v1971 = vld [vmem:[%s3 + $0x64] sm:$0xf]
      %v1972 = vld [vmem:[%s3 + $0x68] sm:$0xf]
      %v1973 = vld [vmem:[%s3 + $0x6c] sm:$0xf]
      %v1974 = vld [vmem:[%s3 + $0x70] sm:$0xf]
      %v1975 = vld [vmem:[%s3 + $0x74] sm:$0xf]
      %v1976 = vld [vmem:[%s3 + $0x78] sm:$0xf]
      %v1977 = vld [vmem:[%s3 + $0x7c] sm:$0xf]
      %v1978 = vld [vmem:[%s3 + $0x80] sm:$0xf]
      %v1979 = vld [vmem:[%s3 + $0x84] sm:$0xf]
      %v1980 = vld [vmem:[%s3 + $0x88] sm:$0xf]
      %v1981 = vld [vmem:[%s3 + $0x8c] sm:$0xf]
      %v2018 = vunpack.c.l.b16 %v1946
      %v2019 = vunpack.c.l.b16 %v1947
      %v2020 = vunpack.c.l.b16 %v1948
      %v2021 = vunpack.c.l.b16 %v1949
      %v2022 = vunpack.c.l.b16 %v1950
      %v2023 = vunpack.c.l.b16 %v1951
      %v2024 = vunpack.c.l.b16 %v1952
      %v2025 = vunpack.c.l.b16 %v1953
      %v2026 = vunpack.c.l.b16 %v1954
      %v2027 = vunpack.c.l.b16 %v1955
      %v2028 = vunpack.c.l.b16 %v1956
      %v2029 = vunpack.c.l.b16 %v1957
      %v2030 = vunpack.c.l.b16 %v1958
      %v2031 = vunpack.c.l.b16 %v1959
      %v2032 = vunpack.c.l.b16 %v1960
      %v2033 = vunpack.c.l.b16 %v1961
      %v2034 = vunpack.c.l.b16 %v1962
      %v2035 = vunpack.c.l.b16 %v1963
      %v2036 = vunpack.c.l.b16 %v1964
      %v2037 = vunpack.c.l.b16 %v1965
      %v2038 = vunpack.c.l.b16 %v1966
      %v2039 = vunpack.c.l.b16 %v1967
      %v2040 = vunpack.c.l.b16 %v1968
      %v2041 = vunpack.c.l.b16 %v1969
      %v2042 = vunpack.c.l.b16 %v1970
      %v2043 = vunpack.c.l.b16 %v1971
      %v2044 = vunpack.c.l.b16 %v1972
      %v2045 = vunpack.c.l.b16 %v1973
      %v2046 = vunpack.c.l.b16 %v1974
      %v2047 = vunpack.c.l.b16 %v1975
      %v2048 = vunpack.c.l.b16 %v1976
      %v2049 = vunpack.c.l.b16 %v1977
      %v2050 = vunpack.c.l.b16 %v1978
      %v2051 = vunpack.c.l.b16 %v1979
      %v2052 = vunpack.c.l.b16 %v1980
      %v2053 = vunpack.c.l.b16 %v1981
      %v2054 = vpack.c.b16 %v2019, %v2018
      %v2055 = vpack.c.b16 %v2021, %v2020
      %v2056 = vpack.c.b16 %v2023, %v2022
      %v2057 = vpack.c.b16 %v2025, %v2024
      %v2058 = vpack.c.b16 %v2027, %v2026
      %v2059 = vpack.c.b16 %v2029, %v2028
      %v2060 = vpack.c.b16 %v2031, %v2030
      %v2061 = vpack.c.b16 %v2033, %v2032
      %v2062 = vpack.c.b16 %v2035, %v2034
      %v2063 = vpack.c.b16 %v2037, %v2036
      %v2064 = vpack.c.b16 %v2039, %v2038
      %v2065 = vpack.c.b16 %v2041, %v2040
      %v2066 = vpack.c.b16 %v2043, %v2042
      %v2067 = vpack.c.b16 %v2045, %v2044
      %v2068 = vpack.c.b16 %v2047, %v2046
      %v2069 = vpack.c.b16 %v2049, %v2048
      %v2070 = vpack.c.b16 %v2051, %v2050
      %v2071 = vpack.c.b16 %v2053, %v2052
      %v2091 = vsel %vm379, %v1900, 0
      %v2094 = vsel %vm379, %v1903, 0
      %v2097 = vsel %vm379, %v1906, 0
      %v2100 = vsel %vm379, %v1909, 0
      %v2103 = vsel %vm379, %v1912, 0
      %v2106 = vsel %vm379, %v1915, 0
      %v2109 = vsel %vm379, %v1918, 0
      %v2112 = vsel %vm379, %v1921, 0
      %v2115 = vsel %vm379, %v1924, 0
      %v2118 = vsel %vm379, %v1927, 0
      %v2121 = vsel %vm379, %v1930, 0
      %v2124 = vsel %vm379, %v1933, 0
      %v2127 = vsel %vm379, %v1936, 0
      %v2130 = vsel %vm379, %v1939, 0
      %v2133 = vsel %vm379, %v1942, 0
      %v2136 = vsel %vm379, %v1945, 0
      %2138 = vmatprep.subr.bf16.mxu0 0
      %2139 = vmatpush1.bf16.msra.mxu0 %v2054
      %2140 = vmatprep.subr.bf16.mxu0 0
      %2141 = vmatpush1.bf16.msra.mxu0 %v2055
      %2142 = vmatprep.subr.bf16.mxu0 0
      %2143 = vmatpush1.bf16.msra.mxu0 %v2056
      %2144 = vmatprep.subr.bf16.mxu0 0
      %2145 = vmatpush1.bf16.msra.mxu0 %v2057
      %2146 = vmatprep.subr.bf16.mxu0 0
      %2147 = vmatpush1.bf16.msra.mxu0 %v2058
      %2148 = vmatprep.subr.bf16.mxu0 0
      %2149 = vmatpush1.bf16.msra.mxu0 %v2059
      %2150 = vmatprep.subr.bf16.mxu0 0
      %2151 = vmatpush1.bf16.msra.mxu0 %v2060
      %2152 = vmatprep.subr.bf16.mxu0 0
      %2153 = vmatpush1.bf16.msra.mxu0 %v2061
      %2154 = vmatprep.subr.bf16.mxu0 0
      %2155 = vmatpush1.bf16.msra.mxu0 %v2062
      %2156 = vmatprep.subr.bf16.mxu0 0
      %2157 = vmatpush1.bf16.msra.mxu0 %v2063
      %2158 = vmatprep.subr.bf16.mxu0 0
      %2159 = vmatpush1.bf16.msra.mxu0 %v2064
      %2160 = vmatprep.subr.bf16.mxu0 0
      %2161 = vmatpush1.bf16.msra.mxu0 %v2065
      %2162 = vmatprep.subr.bf16.mxu0 0
      %2163 = vmatpush1.bf16.msra.mxu0 %v2066
      %2164 = vmatprep.subr.bf16.mxu0 0
      %2165 = vmatpush1.bf16.msra.mxu0 %v2067
      %2166 = vmatprep.subr.bf16.mxu0 0
      %2167 = vmatpush1.bf16.msra.mxu0 %v2068
      %2168 = vmatprep.subr.bf16.mxu0 0
      %2169 = vmatpush1.bf16.msra.mxu0 %v2069
      %2170 = vmatprep.mubr.bf16.mxu0 %v1899
      %2171 = vmatmul.mubr.bf16.gmra.mrb[0].mxu0 %v1898
      %v2172 = vpop.f32.mrb[0].mxu0
      %v2173 = vadd.f32 0.0, %v2172
      %v2174 = vpop.f32.mrb[0].mxu0
      %v2175 = vpop.f32.mrb[0].mxu0
      %v2176 = vadd.f32 0.0, %v2175
      %v2177 = vpop.f32.mrb[0].mxu0
      %2178 = vmatprep.mubr.bf16.mxu0 %v1902
      %2179 = vmatmul.mubr.bf16.gmra.mrb[0].mxu0 %v1901
      %v2180 = vpop.f32.mrb[0].mxu0
      %v2181 = vadd.f32 0.0, %v2180
      %v2182 = vpop.f32.mrb[0].mxu0
      %v2183 = vpop.f32.mrb[0].mxu0
      %v2184 = vadd.f32 0.0, %v2183
      %v2185 = vpop.f32.mrb[0].mxu0
      %2186 = vmatprep.mubr.bf16.mxu0 %v1905
      %2187 = vmatmul.mubr.bf16.gmra.mrb[0].mxu0 %v1904
      %v2188 = vpop.f32.mrb[0].mxu0
      %v2189 = vadd.f32 0.0, %v2188
      %v2190 = vpop.f32.mrb[0].mxu0
      %v2191 = vpop.f32.mrb[0].mxu0
      %v2192 = vadd.f32 0.0, %v2191
      %v2193 = vpop.f32.mrb[0].mxu0
      %2194 = vmatprep.mubr.bf16.mxu0 %v1908
      %2195 = vmatmul.mubr.bf16.gmra.mrb[0].mxu0 %v1907
      %v2196 = vpop.f32.mrb[0].mxu0
      %v2197 = vadd.f32 0.0, %v2196
      %v2198 = vpop.f32.mrb[0].mxu0
      %v2199 = vpop.f32.mrb[0].mxu0
      %v2200 = vadd.f32 0.0, %v2199
      %v2201 = vpop.f32.mrb[0].mxu0
      %2202 = vmatprep.mubr.bf16.mxu0 %v1911
      %2203 = vmatmul.mubr.bf16.gmra.mrb[0].mxu0 %v1910
      %v2204 = vpop.f32.mrb[0].mxu0
      %v2205 = vadd.f32 0.0, %v2204
      %v2206 = vpop.f32.mrb[0].mxu0
      %v2207 = vpop.f32.mrb[0].mxu0
      %v2208 = vadd.f32 0.0, %v2207
      %v2209 = vpop.f32.mrb[0].mxu0
      %2210 = vmatprep.mubr.bf16.mxu0 %v1914
      %2211 = vmatmul.mubr.bf16.gmra.mrb[0].mxu0 %v1913
      %v2212 = vpop.f32.mrb[0].mxu0
      %v2213 = vadd.f32 0.0, %v2212
      %v2214 = vpop.f32.mrb[0].mxu0
      %v2215 = vpop.f32.mrb[0].mxu0
      %v2216 = vadd.f32 0.0, %v2215
      %v2217 = vpop.f32.mrb[0].mxu0
      %2218 = vmatprep.mubr.bf16.mxu0 %v1917
      %2219 = vmatmul.mubr.bf16.gmra.mrb[0].mxu0 %v1916
      %v2220 = vpop.f32.mrb[0].mxu0
      %v2221 = vadd.f32 0.0, %v2220
      %v2222 = vpop.f32.mrb[0].mxu0
      %v2223 = vpop.f32.mrb[0].mxu0
      %v2224 = vadd.f32 0.0, %v2223
      %v2225 = vpop.f32.mrb[0].mxu0
      %2226 = vmatprep.mubr.bf16.mxu0 %v1920
      %2227 = vmatmul.mubr.bf16.gmra.mrb[0].mxu0 %v1919
      %v2228 = vpop.f32.mrb[0].mxu0
      %v2229 = vadd.f32 0.0, %v2228
      %v2230 = vpop.f32.mrb[0].mxu0
      %v2231 = vpop.f32.mrb[0].mxu0
      %v2232 = vadd.f32 0.0, %v2231
      %v2233 = vpop.f32.mrb[0].mxu0
      %2234 = vmatprep.mubr.bf16.mxu0 %v1923
      %2235 = vmatmul.mubr.bf16.gmra.mrb[0].mxu0 %v1922
      %v2236 = vpop.f32.mrb[0].mxu0
      %v2237 = vadd.f32 0.0, %v2236
      %v2238 = vpop.f32.mrb[0].mxu0
      %v2239 = vpop.f32.mrb[0].mxu0
      %v2240 = vadd.f32 0.0, %v2239
      %v2241 = vpop.f32.mrb[0].mxu0
      %2242 = vmatprep.mubr.bf16.mxu0 %v1926
      %2243 = vmatmul.mubr.bf16.gmra.mrb[0].mxu0 %v1925
      %v2244 = vpop.f32.mrb[0].mxu0
      %v2245 = vadd.f32 0.0, %v2244
      %v2246 = vpop.f32.mrb[0].mxu0
      %v2247 = vpop.f32.mrb[0].mxu0
      %v2248 = vadd.f32 0.0, %v2247
      %v2249 = vpop.f32.mrb[0].mxu0
      %2250 = vmatprep.mubr.bf16.mxu0 %v1929
      %2251 = vmatmul.mubr.bf16.gmra.mrb[0].mxu0 %v1928
      %v2252 = vpop.f32.mrb[0].mxu0
      %v2253 = vadd.f32 0.0, %v2252
      %v2254 = vpop.f32.mrb[0].mxu0
      %v2255 = vpop.f32.mrb[0].mxu0
      %v2256 = vadd.f32 0.0, %v2255
      %v2257 = vpop.f32.mrb[0].mxu0
      %2258 = vmatprep.mubr.bf16.mxu0 %v1932
      %2259 = vmatmul.mubr.bf16.gmra.mrb[0].mxu0 %v1931
      %v2260 = vpop.f32.mrb[0].mxu0
      %v2261 = vadd.f32 0.0, %v2260
      %v2262 = vpop.f32.mrb[0].mxu0
      %v2263 = vpop.f32.mrb[0].mxu0
      %v2264 = vadd.f32 0.0, %v2263
      %v2265 = vpop.f32.mrb[0].mxu0
      %2266 = vmatprep.mubr.bf16.mxu0 %v1935
      %2267 = vmatmul.mubr.bf16.gmra.mrb[0].mxu0 %v1934
      %v2268 = vpop.f32.mrb[0].mxu0
      %v2269 = vadd.f32 0.0, %v2268
      %v2270 = vpop.f32.mrb[0].mxu0
      %v2271 = vpop.f32.mrb[0].mxu0
      %v2272 = vadd.f32 0.0, %v2271
      %v2273 = vpop.f32.mrb[0].mxu0
      %2274 = vmatprep.mubr.bf16.mxu0 %v1938
      %2275 = vmatmul.mubr.bf16.gmra.mrb[0].mxu0 %v1937
      %v2276 = vpop.f32.mrb[0].mxu0
      %v2277 = vadd.f32 0.0, %v2276
      %v2278 = vpop.f32.mrb[0].mxu0
      %v2279 = vpop.f32.mrb[0].mxu0
      %v2280 = vadd.f32 0.0, %v2279
      %v2281 = vpop.f32.mrb[0].mxu0
      %2282 = vmatprep.mubr.bf16.mxu0 %v1941
      %2283 = vmatmul.mubr.bf16.gmra.mrb[0].mxu0 %v1940
      %v2284 = vpop.f32.mrb[0].mxu0
      %v2285 = vadd.f32 0.0, %v2284
      %v2286 = vpop.f32.mrb[0].mxu0
      %v2287 = vpop.f32.mrb[0].mxu0
      %v2288 = vadd.f32 0.0, %v2287
      %v2289 = vpop.f32.mrb[0].mxu0
      %2290 = vmatprep.mubr.bf16.mxu0 %v1944
      %2291 = vmatmul.mubr.bf16.gmra.mrb[0].mxu0 %v1943
      %v2292 = vpop.f32.mrb[0].mxu0
      %v2293 = vadd.f32 0.0, %v2292
      %v2294 = vpop.f32.mrb[0].mxu0
      %v2295 = vpop.f32.mrb[0].mxu0
      %v2296 = vadd.f32 0.0, %v2295
      %v2297 = vpop.f32.mrb[0].mxu0
      %2298 = vdwg.mxu0
      %2299 = vmatprep.subr.bf16.mxu0 0
      %2300 = vmatpush1.bf16.msra.mxu0 %v2070
      %2301 = vmatprep.subr.bf16.mxu0 0
      %2302 = vmatpush1.bf16.msra.mxu0 %v2071
      %2303 = vmatprep.subr.bf16.mxu0 0
      %2304 = vmatpush1.bf16.msra.mxu0 0
      %2305 = vmatprep.subr.bf16.mxu0 0
      %2306 = vmatpush1.bf16.msra.mxu0 0
      %2307 = vmatprep.subr.bf16.mxu0 0
      %2308 = vmatpush1.bf16.msra.mxu0 0
      %2309 = vmatprep.subr.bf16.mxu0 0
      %2310 = vmatpush1.bf16.msra.mxu0 0
      %2311 = vmatprep.subr.bf16.mxu0 0
      %2312 = vmatpush1.bf16.msra.mxu0 0
      %2313 = vmatprep.subr.bf16.mxu0 0
      %2314 = vmatpush1.bf16.msra.mxu0 0
      %2315 = vmatprep.subr.bf16.mxu0 0
      %2316 = vmatpush1.bf16.msra.mxu0 0
      %2317 = vmatprep.subr.bf16.mxu0 0
      %2318 = vmatpush1.bf16.msra.mxu0 0
      %2319 = vmatprep.subr.bf16.mxu0 0
      %2320 = vmatpush1.bf16.msra.mxu0 0
      %2321 = vmatprep.subr.bf16.mxu0 0
      %2322 = vmatpush1.bf16.msra.mxu0 0
      %2323 = vmatprep.subr.bf16.mxu0 0
      %2324 = vmatpush1.bf16.msra.mxu0 0
      %2325 = vmatprep.subr.bf16.mxu0 0
      %2326 = vmatpush1.bf16.msra.mxu0 0
      %2327 = vmatprep.subr.bf16.mxu0 0
      %2328 = vmatpush1.bf16.msra.mxu0 0
      %2329 = vmatprep.subr.bf16.mxu0 0
      %2330 = vmatpush1.bf16.msra.mxu0 0
      %2331 = vmatprep.mubr.bf16.mxu0 0
      %2332 = vmatmul.mubr.bf16.gmra.mrb[0].mxu0 %v2091
      %v2333 = vpop.f32.mrb[0].mxu0
      %v2334 = vadd.f32 %v2173, %v2333
      %v2335 = vpop.f32.mrb[0].mxu0
      %v2336 = vpop.f32.mrb[0].mxu0
      %v2337 = vadd.f32 %v2176, %v2336
      %v2338 = vpop.f32.mrb[0].mxu0
      %2339 = vmatprep.mubr.bf16.mxu0 0
      %2340 = vmatmul.mubr.bf16.gmra.mrb[0].mxu0 %v2094
      %v2341 = vpop.f32.mrb[0].mxu0
      %v2342 = vadd.f32 %v2181, %v2341
      %v2343 = vpop.f32.mrb[0].mxu0
      %v2344 = vpop.f32.mrb[0].mxu0
      %v2345 = vadd.f32 %v2184, %v2344
      %v2346 = vpop.f32.mrb[0].mxu0
      %2347 = vmatprep.mubr.bf16.mxu0 0
      %2348 = vmatmul.mubr.bf16.gmra.mrb[0].mxu0 %v2097
      %v2349 = vpop.f32.mrb[0].mxu0
      %v2350 = vadd.f32 %v2189, %v2349
      %v2351 = vpop.f32.mrb[0].mxu0
      %v2352 = vpop.f32.mrb[0].mxu0
      %v2353 = vadd.f32 %v2192, %v2352
      %v2354 = vpop.f32.mrb[0].mxu0
      %2355 = vmatprep.mubr.bf16.mxu0 0
      %2356 = vmatmul.mubr.bf16.gmra.mrb[0].mxu0 %v2100
      %v2357 = vpop.f32.mrb[0].mxu0
      %v2358 = vadd.f32 %v2197, %v2357
      %v2359 = vpop.f32.mrb[0].mxu0
      %v2360 = vpop.f32.mrb[0].mxu0
      %v2361 = vadd.f32 %v2200, %v2360
      %v2362 = vpop.f32.mrb[0].mxu0
      %2363 = vmatprep.mubr.bf16.mxu0 0
      %2364 = vmatmul.mubr.bf16.gmra.mrb[0].mxu0 %v2103
      %v2365 = vpop.f32.mrb[0].mxu0
      %v2366 = vadd.f32 %v2205, %v2365
      %v2367 = vpop.f32.mrb[0].mxu0
      %v2368 = vpop.f32.mrb[0].mxu0
      %v2369 = vadd.f32 %v2208, %v2368
      %v2370 = vpop.f32.mrb[0].mxu0
      %2371 = vmatprep.mubr.bf16.mxu0 0
      %2372 = vmatmul.mubr.bf16.gmra.mrb[0].mxu0 %v2106
      %v2373 = vpop.f32.mrb[0].mxu0
      %v2374 = vadd.f32 %v2213, %v2373
      %v2375 = vpop.f32.mrb[0].mxu0
      %v2376 = vpop.f32.mrb[0].mxu0
      %v2377 = vadd.f32 %v2216, %v2376
      %v2378 = vpop.f32.mrb[0].mxu0
      %2379 = vmatprep.mubr.bf16.mxu0 0
      %2380 = vmatmul.mubr.bf16.gmra.mrb[0].mxu0 %v2109
      %v2381 = vpop.f32.mrb[0].mxu0
      %v2382 = vadd.f32 %v2221, %v2381
      %v2383 = vpop.f32.mrb[0].mxu0
      %v2384 = vpop.f32.mrb[0].mxu0
      %v2385 = vadd.f32 %v2224, %v2384
      %v2386 = vpop.f32.mrb[0].mxu0
      %2387 = vmatprep.mubr.bf16.mxu0 0
      %2388 = vmatmul.mubr.bf16.gmra.mrb[0].mxu0 %v2112
      %v2389 = vpop.f32.mrb[0].mxu0
      %v2390 = vadd.f32 %v2229, %v2389
      %v2391 = vpop.f32.mrb[0].mxu0
      %v2392 = vpop.f32.mrb[0].mxu0
      %v2393 = vadd.f32 %v2232, %v2392
      %v2394 = vpop.f32.mrb[0].mxu0
      %2395 = vmatprep.mubr.bf16.mxu0 0
      %2396 = vmatmul.mubr.bf16.gmra.mrb[0].mxu0 %v2115
      %v2397 = vpop.f32.mrb[0].mxu0
      %v2398 = vadd.f32 %v2237, %v2397
      %v2399 = vpop.f32.mrb[0].mxu0
      %v2400 = vpop.f32.mrb[0].mxu0
      %v2401 = vadd.f32 %v2240, %v2400
      %v2402 = vpop.f32.mrb[0].mxu0
      %2403 = vmatprep.mubr.bf16.mxu0 0
      %2404 = vmatmul.mubr.bf16.gmra.mrb[0].mxu0 %v2118
      %v2405 = vpop.f32.mrb[0].mxu0
      %v2406 = vadd.f32 %v2245, %v2405
      %v2407 = vpop.f32.mrb[0].mxu0
      %v2408 = vpop.f32.mrb[0].mxu0
      %v2409 = vadd.f32 %v2248, %v2408
      %v2410 = vpop.f32.mrb[0].mxu0
      %2411 = vmatprep.mubr.bf16.mxu0 0
      %2412 = vmatmul.mubr.bf16.gmra.mrb[0].mxu0 %v2121
      %v2413 = vpop.f32.mrb[0].mxu0
      %v2414 = vadd.f32 %v2253, %v2413
      %v2415 = vpop.f32.mrb[0].mxu0
      %v2416 = vpop.f32.mrb[0].mxu0
      %v2417 = vadd.f32 %v2256, %v2416
      %v2418 = vpop.f32.mrb[0].mxu0
      %2419 = vmatprep.mubr.bf16.mxu0 0
      %2420 = vmatmul.mubr.bf16.gmra.mrb[0].mxu0 %v2124
      %v2421 = vpop.f32.mrb[0].mxu0
      %v2422 = vadd.f32 %v2261, %v2421
      %v2423 = vpop.f32.mrb[0].mxu0
      %v2424 = vpop.f32.mrb[0].mxu0
      %v2425 = vadd.f32 %v2264, %v2424
      %v2426 = vpop.f32.mrb[0].mxu0
      %2427 = vmatprep.mubr.bf16.mxu0 0
      %2428 = vmatmul.mubr.bf16.gmra.mrb[0].mxu0 %v2127
      %v2429 = vpop.f32.mrb[0].mxu0
      %v2430 = vadd.f32 %v2269, %v2429
      %v2431 = vpop.f32.mrb[0].mxu0
      %v2432 = vpop.f32.mrb[0].mxu0
      %v2433 = vadd.f32 %v2272, %v2432
      %v2434 = vpop.f32.mrb[0].mxu0
      %2435 = vmatprep.mubr.bf16.mxu0 0
      %2436 = vmatmul.mubr.bf16.gmra.mrb[0].mxu0 %v2130
      %v2437 = vpop.f32.mrb[0].mxu0
      %v2438 = vadd.f32 %v2277, %v2437
      %v2439 = vpop.f32.mrb[0].mxu0
      %v2440 = vpop.f32.mrb[0].mxu0
      %v2441 = vadd.f32 %v2280, %v2440
      %v2442 = vpop.f32.mrb[0].mxu0
      %2443 = vmatprep.mubr.bf16.mxu0 0
      %2444 = vmatmul.mubr.bf16.gmra.mrb[0].mxu0 %v2133
      %v2445 = vpop.f32.mrb[0].mxu0
      %v2446 = vadd.f32 %v2285, %v2445
      %v2447 = vpop.f32.mrb[0].mxu0
      %v2448 = vpop.f32.mrb[0].mxu0
      %v2449 = vadd.f32 %v2288, %v2448
      %v2450 = vpop.f32.mrb[0].mxu0
      %2451 = vmatprep.mubr.bf16.mxu0 0
      %2452 = vmatmul.mubr.bf16.gmra.mrb[0].mxu0 %v2136
      %v2453 = vpop.f32.mrb[0].mxu0
      %v2454 = vadd.f32 %v2293, %v2453
      %v2455 = vpop.f32.mrb[0].mxu0
      %v2456 = vpop.f32.mrb[0].mxu0
      %v2457 = vadd.f32 %v2296, %v2456
      %v2458 = vpop.f32.mrb[0].mxu0
      %2459 = vdwg.mxu0
      %2460 = vst.msk [vmem:[%s231] sm:$0xff] %vm379, %v2334
      %2461 = vst.msk [vmem:[%s231 + $0x8] sm:$0xff] %vm379, %v2337
      %2462 = vst.msk [vmem:[%s231 + $0x10] sm:$0xff] %vm379, %v2342
      %2463 = vst.msk [vmem:[%s231 + $0x18] sm:$0xff] %vm379, %v2345
      %2464 = vst.msk [vmem:[%s231 + $0x20] sm:$0xff] %vm379, %v2350
      %2465 = vst.msk [vmem:[%s231 + $0x28] sm:$0xff] %vm379, %v2353
      %2466 = vst.msk [vmem:[%s231 + $0x30] sm:$0xff] %vm379, %v2358
      %2467 = vst.msk [vmem:[%s231 + $0x38] sm:$0xff] %vm379, %v2361
      %2468 = vst.msk [vmem:[%s231 + $0x40] sm:$0xff] %vm379, %v2366
      %2469 = vst.msk [vmem:[%s231 + $0x48] sm:$0xff] %vm379, %v2369
      %2470 = vst.msk [vmem:[%s231 + $0x50] sm:$0xff] %vm379, %v2374
      %2471 = vst.msk [vmem:[%s231 + $0x58] sm:$0xff] %vm379, %v2377
      %2472 = vst.msk [vmem:[%s231 + $0x60] sm:$0xff] %vm379, %v2382
      %2473 = vst.msk [vmem:[%s231 + $0x68] sm:$0xff] %vm379, %v2385
      %2474 = vst.msk [vmem:[%s231 + $0x70] sm:$0xff] %vm379, %v2390
      %2475 = vst.msk [vmem:[%s231 + $0x78] sm:$0xff] %vm379, %v2393
      %2476 = vst.msk [vmem:[%s231 + $0x80] sm:$0xff] %vm379, %v2398
      %2477 = vst.msk [vmem:[%s231 + $0x88] sm:$0xff] %vm379, %v2401
      %2478 = vst.msk [vmem:[%s231 + $0x90] sm:$0xff] %vm379, %v2406
      %2479 = vst.msk [vmem:[%s231 + $0x98] sm:$0xff] %vm379, %v2409
      %2480 = vst.msk [vmem:[%s231 + $0xa0] sm:$0xff] %vm379, %v2414
      %2481 = vst.msk [vmem:[%s231 + $0xa8] sm:$0xff] %vm379, %v2417
      %2482 = vst.msk [vmem:[%s231 + $0xb0] sm:$0xff] %vm379, %v2422
      %2483 = vst.msk [vmem:[%s231 + $0xb8] sm:$0xff] %vm379, %v2425
      %2484 = vst.msk [vmem:[%s231 + $0xc0] sm:$0xff] %vm379, %v2430
      %2485 = vst.msk [vmem:[%s231 + $0xc8] sm:$0xff] %vm379, %v2433
      %2486 = vst.msk [vmem:[%s231 + $0xd0] sm:$0xff] %vm379, %v2438
      %2487 = vst.msk [vmem:[%s231 + $0xd8] sm:$0xff] %vm379, %v2441
      %2488 = vst.msk [vmem:[%s231 + $0xe0] sm:$0xff] %vm379, %v2446
      %2489 = vst.msk [vmem:[%s231 + $0xe8] sm:$0xff] %vm379, %v2449
      %2490 = vst.msk [vmem:[%s231 + $0xf0] sm:$0xff] %vm379, %v2454
      %2491 = vst.msk [vmem:[%s231 + $0xf8] sm:$0xff] %vm379, %v2457
      %v2492 = vsel %vm379, %v2334, 0.0
      %v2493 = vsel %vm379, %v2337, 0.0
      %v2494 = vadd.f32 %v2492, %v2493
      %v2495 = vsel %vm379, %v2342, 0.0
      %v2496 = vadd.f32 %v2494, %v2495
      %v2497 = vsel %vm379, %v2345, 0.0
      %v2498 = vadd.f32 %v2496, %v2497
      %v2499 = vsel %vm379, %v2350, 0.0
      %v2500 = vadd.f32 %v2498, %v2499
      %v2501 = vsel %vm379, %v2353, 0.0
      %v2502 = vadd.f32 %v2500, %v2501
      %v2503 = vsel %vm379, %v2358, 0.0
      %v2504 = vadd.f32 %v2502, %v2503
      %v2505 = vsel %vm379, %v2361, 0.0
      %v2506 = vadd.f32 %v2504, %v2505
      %v2507 = vsel %vm379, %v2366, 0.0
      %v2508 = vadd.f32 %v2506, %v2507
      %v2509 = vsel %vm379, %v2369, 0.0
      %v2510 = vadd.f32 %v2508, %v2509
      %v2511 = vsel %vm379, %v2374, 0.0
      %v2512 = vadd.f32 %v2510, %v2511
      %v2513 = vsel %vm379, %v2377, 0.0
      %v2514 = vadd.f32 %v2512, %v2513
      %v2515 = vsel %vm379, %v2382, 0.0
      %v2516 = vadd.f32 %v2514, %v2515
      %v2517 = vsel %vm379, %v2385, 0.0
      %v2518 = vadd.f32 %v2516, %v2517
      %v2519 = vsel %vm379, %v2390, 0.0
      %v2520 = vadd.f32 %v2518, %v2519
      %v2521 = vsel %vm379, %v2393, 0.0
      %v2522 = vadd.f32 %v2520, %v2521
      %v2523 = vsel %vm379, %v2398, 0.0
      %v2524 = vadd.f32 %v2522, %v2523
      %v2525 = vsel %vm379, %v2401, 0.0
      %v2526 = vadd.f32 %v2524, %v2525
      %v2527 = vsel %vm379, %v2406, 0.0
      %v2528 = vadd.f32 %v2526, %v2527
      %v2529 = vsel %vm379, %v2409, 0.0
      %v2530 = vadd.f32 %v2528, %v2529
      %v2531 = vsel %vm379, %v2414, 0.0
      %v2532 = vadd.f32 %v2530, %v2531
      %v2533 = vsel %vm379, %v2417, 0.0
      %v2534 = vadd.f32 %v2532, %v2533
      %v2535 = vsel %vm379, %v2422, 0.0
      %v2536 = vadd.f32 %v2534, %v2535
      %v2537 = vsel %vm379, %v2425, 0.0
      %v2538 = vadd.f32 %v2536, %v2537
      %v2539 = vsel %vm379, %v2430, 0.0
      %v2540 = vadd.f32 %v2538, %v2539
      %v2541 = vsel %vm379, %v2433, 0.0
      %v2542 = vadd.f32 %v2540, %v2541
      %v2543 = vsel %vm379, %v2438, 0.0
      %v2544 = vadd.f32 %v2542, %v2543
      %v2545 = vsel %vm379, %v2441, 0.0
      %v2546 = vadd.f32 %v2544, %v2545
      %v2547 = vsel %vm379, %v2446, 0.0
      %v2548 = vadd.f32 %v2546, %v2547
      %v2549 = vsel %vm379, %v2449, 0.0
      %v2550 = vadd.f32 %v2548, %v2549
      %v2551 = vsel %vm379, %v2454, 0.0
      %v2552 = vadd.f32 %v2550, %v2551
      %v2553 = vsel %vm379, %v2457, 0.0
      %v2554 = vadd.f32 %v2552, %v2553
      %v2555 = vrot.slane %v2554, 4
      %v2556 = vadd.f32 %v2554, %v2555
      %v2557 = vrot.slane %v2556, 2
      %v2558 = vadd.f32 %v2556, %v2557
      %v2559 = vrot.slane %v2558, 1
      %v2560 = vadd.f32 %v2558, %v2559
      %2561 = vst.msk [vmem:[%s235] sm:$0x1] %vm389, %v2560
      %v2562 = vmul.f32 %v2334, %v2334
      %v2563 = vmul.f32 %v2337, %v2337
      %v2564 = vmul.f32 %v2342, %v2342
      %v2565 = vmul.f32 %v2345, %v2345
      %v2566 = vmul.f32 %v2350, %v2350
      %v2567 = vmul.f32 %v2353, %v2353
      %v2568 = vmul.f32 %v2358, %v2358
      %v2569 = vmul.f32 %v2361, %v2361
      %v2570 = vmul.f32 %v2366, %v2366
      %v2571 = vmul.f32 %v2369, %v2369
      %v2572 = vmul.f32 %v2374, %v2374
      %v2573 = vmul.f32 %v2377, %v2377
      %v2574 = vmul.f32 %v2382, %v2382
      %v2575 = vmul.f32 %v2385, %v2385
      %v2576 = vmul.f32 %v2390, %v2390
      %v2577 = vmul.f32 %v2393, %v2393
      %v2578 = vmul.f32 %v2398, %v2398
      %v2579 = vmul.f32 %v2401, %v2401
      %v2580 = vmul.f32 %v2406, %v2406
      %v2581 = vmul.f32 %v2409, %v2409
      %v2582 = vmul.f32 %v2414, %v2414
      %v2583 = vmul.f32 %v2417, %v2417
      %v2584 = vmul.f32 %v2422, %v2422
      %v2585 = vmul.f32 %v2425, %v2425
      %v2586 = vmul.f32 %v2430, %v2430
      %v2587 = vmul.f32 %v2433, %v2433
      %v2588 = vmul.f32 %v2438, %v2438
      %v2589 = vmul.f32 %v2441, %v2441
      %v2590 = vmul.f32 %v2446, %v2446
      %v2591 = vmul.f32 %v2449, %v2449
      %v2592 = vmul.f32 %v2454, %v2454
      %v2593 = vmul.f32 %v2457, %v2457
      %v2594 = vsel %vm379, %v2562, 0.0
      %v2595 = vsel %vm379, %v2563, 0.0
      %v2596 = vadd.f32 %v2594, %v2595
      %v2597 = vsel %vm379, %v2564, 0.0
      %v2598 = vadd.f32 %v2596, %v2597
      %v2599 = vsel %vm379, %v2565, 0.0
      %v2600 = vadd.f32 %v2598, %v2599
      %v2601 = vsel %vm379, %v2566, 0.0
      %v2602 = vadd.f32 %v2600, %v2601
      %v2603 = vsel %vm379, %v2567, 0.0
      %v2604 = vadd.f32 %v2602, %v2603
      %v2605 = vsel %vm379, %v2568, 0.0
      %v2606 = vadd.f32 %v2604, %v2605
      %v2607 = vsel %vm379, %v2569, 0.0
      %v2608 = vadd.f32 %v2606, %v2607
      %v2609 = vsel %vm379, %v2570, 0.0
      %v2610 = vadd.f32 %v2608, %v2609
      %v2611 = vsel %vm379, %v2571, 0.0
      %v2612 = vadd.f32 %v2610, %v2611
      %v2613 = vsel %vm379, %v2572, 0.0
      %v2614 = vadd.f32 %v2612, %v2613
      %v2615 = vsel %vm379, %v2573, 0.0
      %v2616 = vadd.f32 %v2614, %v2615
      %v2617 = vsel %vm379, %v2574, 0.0
      %v2618 = vadd.f32 %v2616, %v2617
      %v2619 = vsel %vm379, %v2575, 0.0
      %v2620 = vadd.f32 %v2618, %v2619
      %v2621 = vsel %vm379, %v2576, 0.0
      %v2622 = vadd.f32 %v2620, %v2621
      %v2623 = vsel %vm379, %v2577, 0.0
      %v2624 = vadd.f32 %v2622, %v2623
      %v2625 = vsel %vm379, %v2578, 0.0
      %v2626 = vadd.f32 %v2624, %v2625
      %v2627 = vsel %vm379, %v2579, 0.0
      %v2628 = vadd.f32 %v2626, %v2627
      %v2629 = vsel %vm379, %v2580, 0.0
      %v2630 = vadd.f32 %v2628, %v2629
      %v2631 = vsel %vm379, %v2581, 0.0
      %v2632 = vadd.f32 %v2630, %v2631
      %v2633 = vsel %vm379, %v2582, 0.0
      %v2634 = vadd.f32 %v2632, %v2633
      %v2635 = vsel %vm379, %v2583, 0.0
      %v2636 = vadd.f32 %v2634, %v2635
      %v2637 = vsel %vm379, %v2584, 0.0
      %v2638 = vadd.f32 %v2636, %v2637
      %v2639 = vsel %vm379, %v2585, 0.0
      %v2640 = vadd.f32 %v2638, %v2639
      %v2641 = vsel %vm379, %v2586, 0.0
      %v2642 = vadd.f32 %v2640, %v2641
      %v2643 = vsel %vm379, %v2587, 0.0
      %v2644 = vadd.f32 %v2642, %v2643
      %v2645 = vsel %vm379, %v2588, 0.0
      %v2646 = vadd.f32 %v2644, %v2645
      %v2647 = vsel %vm379, %v2589, 0.0
      %v2648 = vadd.f32 %v2646, %v2647
      %v2649 = vsel %vm379, %v2590, 0.0
      %v2650 = vadd.f32 %v2648, %v2649
      %v2651 = vsel %vm379, %v2591, 0.0
      %v2652 = vadd.f32 %v2650, %v2651
      %v2653 = vsel %vm379, %v2592, 0.0
      %v2654 = vadd.f32 %v2652, %v2653
      %v2655 = vsel %vm379, %v2593, 0.0
      %v2656 = vadd.f32 %v2654, %v2655
      %v2657 = vrot.slane %v2656, 4
      %v2658 = vadd.f32 %v2656, %v2657
      %v2659 = vrot.slane %v2658, 2
      %v2660 = vadd.f32 %v2658, %v2659
      %v2661 = vrot.slane %v2660, 1
      %v2662 = vadd.f32 %v2660, %v2661
      %2663 = vst.msk [vmem:[%s235 + $0x1] sm:$0x1] %vm389, %v2662
      %p2664 = scmp.lt.s32.totalorder %s17, 1
      %s2665 = scalar_select %p2664, %s17, 1
      %s2666 = smul.addr %s2665, 32
      %s2667 = smul.addr %s2666, 8
      %s2668 = scalar_lea.vmem %s4, %s2667
      %p2669 = scmp.lt.s32.totalorder %s17, 1
      %s2670 = scalar_select %p2669, %s17, 1
      %s2671 = smul.addr %s2670, 2
      %s2672 = scalar_lea.vmem %s5, %s2671
      // Predicated region
      $region37: #{bottleneck_forward.5} parent=35 // pred_check
        %p2673 = pneg %p124
      $region38: #{bottleneck_forward.5} parent=35 // pred_check_branch
        %2675 = sbr.rel (%p2673) target = $region40
      $region39: #{bottleneck_forward.5} parent=35 // pred_region
        _
      $region40: #{bottleneck_forward.5} parent=35 // pred_fallthru
        _
      // Predicated region
      $region41: #{bottleneck_forward.5} parent=35 // pred_check
        %p2676 = pneg %p150
      $region42: #{bottleneck_forward.5} parent=35 // pred_check_branch
        %2678 = sbr.rel (%p2676) target = $region44
      $region43: #{bottleneck_forward.5} parent=35 // pred_region
        _
      $region44: #{bottleneck_forward.5} parent=35 // pred_fallthru
        _
    $region36: #{bottleneck_forward.5} parent=5 // pred_fallthru
      _
    %p2679 = scmp.le.s32.totalorder 2, %s12
    // Predicated region
    $region45: #{bottleneck_forward.5} parent=5 // pred_check
      %p2680 = pneg %p2679
    $region46: #{bottleneck_forward.5} parent=5 // pred_check_branch
      %2682 = sbr.rel (%p2680) target = $region48
    $region47: #{bottleneck_forward.5} parent=5 // pred_region
      %s2683 = ssub.s32 %s12, 2
      // Predicated region
      $region49: #{bottleneck_forward.5} parent=47 // pred_check
        %p2684 = pneg %p130
      $region50: #{bottleneck_forward.5} parent=47 // pred_check_branch
        %2686 = sbr.rel (%p2684) target = $region52
      $region51: #{bottleneck_forward.5} parent=47 // pred_region
        %p2687 = scmp.lt.s32.totalorder %s18, 1
        %s2688 = scalar_select %p2687, %s18, 1
        %s2689 = smul.addr %s2688, 32
        %s2690 = smul.addr %s2689, 8
        %s2691 = scalar_lea.vmem %s4, %s2690
      $region52: #{bottleneck_forward.5} parent=47 // pred_fallthru
        _
      // Predicated region
      $region53: #{bottleneck_forward.5} parent=47 // pred_check
        %p2692 = pneg %p156
      $region54: #{bottleneck_forward.5} parent=47 // pred_check_branch
        %2694 = sbr.rel (%p2692) target = $region56
      $region55: #{bottleneck_forward.5} parent=47 // pred_region
        %p2695 = scmp.lt.s32.totalorder %s18, 1
        %s2696 = scalar_select %p2695, %s18, 1
        %s2697 = smul.addr %s2696, 2
        %s2698 = scalar_lea.vmem %s5, %s2697
      $region56: #{bottleneck_forward.5} parent=47 // pred_fallthru
        _
    $region48: #{bottleneck_forward.5} parent=5 // pred_fallthru
      _
  $region6: #{bottleneck_forward.5} parent=0 // loop_footer
    %s16 = sadd.s32 1, %s12
  $region7: #{bottleneck_forward.5} parent=0 // loop_footer_branch
    %11 = sbr.rel target = $region3
  $region8: #{bottleneck_forward.5} parent=0 // loop_exit
    _

</llo_original>
